<compile_context>
chip_gen: v7x
topology: tpu7x:2x2x1
jax: 0.10.0
libtpu: 0.0.40
codegen_flags: <defaults>
</compile_context>

<pallas_src>
import jax
import jax.numpy as jnp
from jax import lax
from jax.experimental import pallas as pl
from jax.experimental.pallas import tpu as pltpu

# ----------------------------- model hyper-params (small) -------------------
MAX_FRAMES = 16
PATCH = 8            # spatial patch size
TUBELET = 2          # temporal tubelet size
HIDDEN = 32          # hidden_size
HEADS = 4
HEAD_DIM = HIDDEN // HEADS
MLP_DIM = 4 * HIDDEN
DEPTH = 2
LN_EPS = 1e-6
IN_DIM = 3 * TUBELET * PATCH * PATCH        # 384
ATTN_SCALE = HEAD_DIM ** -0.5


# ----------------------------- in-kernel helpers -----------------------------
def _layernorm(x, g, b):
    mean = jnp.mean(x, axis=-1, keepdims=True)
    var = jnp.mean(jnp.square(x - mean), axis=-1, keepdims=True)
    return (x - mean) * lax.rsqrt(var + LN_EPS) * g + b


def _gelu(x):
    # exact (erf) GELU, matching torch.nn.GELU default
    return 0.5 * x * (1.0 + lax.erf(x * 0.7071067811865476))


# ----------------------------- fused encoder kernel --------------------------
def _encoder_kernel(patch_ref, pos_ref, pw_ref, pb_ref,
                    ln1g_ref, ln1b_ref, qkvw_ref, qkvb_ref,
                    projw_ref, projb_ref, ln2g_ref, ln2b_ref,
                    fc1w_ref, fc1b_ref, fc2w_ref, fc2b_ref,
                    lnfg_ref, lnfb_ref, out_ref):
    """One grid step == one batch element. Everything stays in VMEM/vregs."""
    # ---- patch embedding (+ pos embed) ----
    x_patch = patch_ref[0]                                            # (N, IN_DIM)
    tokens = jnp.dot(x_patch, pw_ref[...],
                     preferred_element_type=jnp.float32) + pb_ref[...]
    tokens = tokens + pos_ref[...]                                    # (N, HIDDEN)

    # ---- transformer blocks (statically unrolled, DEPTH=2) ----
    for l in range(DEPTH):
        # attention sub-block (residual stays in `tokens`)
        h = _layernorm(tokens, ln1g_ref[l], ln1b_ref[l])
        qkv = jnp.dot(h, qkvw_ref[l],
                      preferred_element_type=jnp.float32) + qkvb_ref[l]   # (N, 3*HIDDEN)
        proj_w = projw_ref[l]                                             # (HIDDEN, HIDDEN)
        attn = None
        for hh in range(HEADS):
            lo = hh * HEAD_DIM
            q = qkv[:, lo:lo + HEAD_DIM]
            k = qkv[:, HIDDEN + lo:HIDDEN + lo + HEAD_DIM]
            v = qkv[:, 2 * HIDDEN + lo:2 * HIDDEN + lo + HEAD_DIM]
            # q @ k^T without an explicit transpose: contract the head dim.
            s = lax.dot_general(q, k, (((1,), (1,)), ((), ())),
                                preferred_element_type=jnp.float32) * ATTN_SCALE
            s = s - jnp.max(s, axis=-1, keepdims=True)
            p = jnp.exp(s)
            p = p * pl.reciprocal(jnp.sum(p, axis=-1, keepdims=True), approx=True)
            o = jnp.dot(p, v, preferred_element_type=jnp.float32)         # (N, d)
            # concat(heads) @ proj_w  ==  sum_h  o_h @ proj_w[h*d:(h+1)*d, :]
            contrib = jnp.dot(o, proj_w[lo:lo + HEAD_DIM, :],
                              preferred_element_type=jnp.float32)
            attn = contrib if attn is None else attn + contrib
        tokens = tokens + attn + projb_ref[l]

        # MLP sub-block
        h2 = _layernorm(tokens, ln2g_ref[l], ln2b_ref[l])
        m = jnp.dot(h2, fc1w_ref[l], preferred_element_type=jnp.float32) + fc1b_ref[l]
        m = _gelu(m)
        m = jnp.dot(m, fc2w_ref[l], preferred_element_type=jnp.float32) + fc2b_ref[l]
        tokens = tokens + m

    # final LayerNorm -> last_hidden_state
    out_ref[0] = _layernorm(tokens, lnfg_ref[...], lnfb_ref[...])


# ----------------------------- parameters ------------------------------------
def init_params(key):
    keys = jax.random.split(key, 5)

    def w(k, shape):
        return 0.02 * jax.random.normal(k, shape, dtype=jnp.float32)

    return {
        "patch_w": w(keys[0], (IN_DIM, HIDDEN)),
        "patch_b": jnp.zeros((1, HIDDEN), jnp.float32),
        "ln1_g": jnp.ones((DEPTH, 1, HIDDEN), jnp.float32),
        "ln1_b": jnp.zeros((DEPTH, 1, HIDDEN), jnp.float32),
        "qkv_w": w(keys[1], (DEPTH, HIDDEN, 3 * HIDDEN)),
        "qkv_b": jnp.zeros((DEPTH, 1, 3 * HIDDEN), jnp.float32),
        "proj_w": w(keys[2], (DEPTH, HIDDEN, HIDDEN)),
        "proj_b": jnp.zeros((DEPTH, 1, HIDDEN), jnp.float32),
        "ln2_g": jnp.ones((DEPTH, 1, HIDDEN), jnp.float32),
        "ln2_b": jnp.zeros((DEPTH, 1, HIDDEN), jnp.float32),
        "fc1_w": w(keys[3], (DEPTH, HIDDEN, MLP_DIM)),
        "fc1_b": jnp.zeros((DEPTH, 1, MLP_DIM), jnp.float32),
        "fc2_w": w(keys[4], (DEPTH, MLP_DIM, HIDDEN)),
        "fc2_b": jnp.zeros((DEPTH, 1, HIDDEN), jnp.float32),
        "ln_f_g": jnp.ones((1, HIDDEN), jnp.float32),
        "ln_f_b": jnp.zeros((1, HIDDEN), jnp.float32),
    }


def sinusoid_pos_embed(n_pos, d):
    pos = jnp.arange(n_pos, dtype=jnp.float32)[:, None]
    i = jnp.arange(d)[None, :]
    angle = pos / jnp.power(10000.0, (2.0 * (i // 2)) / d)
    return jnp.where(i % 2 == 0, jnp.sin(angle), jnp.cos(angle)).astype(jnp.float32)


# ----------------------------- forward ---------------------------------------
def visual_encoder_forward(video, params):
    """video: (B, num_frames, 3, H, W) float32 -> (B, num_patches, HIDDEN)."""
    if video.ndim != 5 or video.shape[2] != 3:
        raise ValueError(
            f"Input video must be (batch, num_frames, 3, H, W), got {video.shape}")

    video = video.astype(jnp.float32)
    # data-dependent [0,1] normalization; folded into the patch-embed weight
    # below (the conv is linear in the pixels, bias unaffected).
    scale = jnp.where(jnp.max(video) > 1.1, 1.0 / 255.0, 1.0)

    B, T, C, H, W = video.shape
    if T > MAX_FRAMES:
        idx = jnp.linspace(0.0, T - 1, MAX_FRAMES).astype(jnp.int32)
        video = video[:, idx]
        T = MAX_FRAMES

    # (B,T,C,H,W) -> (B,C,T,H,W) like pixel_values, then im2col (tiny tensor)
    x = jnp.transpose(video, (0, 2, 1, 3, 4))
    Tt, Hp, Wp = T // TUBELET, H // PATCH, W // PATCH
    x = x.reshape(B, C, Tt, TUBELET, Hp, PATCH, Wp, PATCH)
    x = jnp.transpose(x, (0, 2, 4, 6, 1, 3, 5, 7))     # (B,Tt,Hp,Wp,C,tt,p,p)
    patches = x.reshape(B, Tt * Hp * Wp, IN_DIM)

    N = Tt * Hp * Wp
    pos = sinusoid_pos_embed(N, HIDDEN)                 # (N, HIDDEN)
    patch_w = params["patch_w"] * scale                 # fold normalization

    full2 = lambda b: (0, 0)
    full3 = lambda b: (0, 0, 0)

    return pl.pallas_call(
        _encoder_kernel,
        out_shape=jax.ShapeDtypeStruct((B, N, HIDDEN), jnp.float32),
        grid=(B,),
        in_specs=[
            pl.BlockSpec((1, N, IN_DIM), lambda b: (b, 0, 0)),          # patches
            pl.BlockSpec((N, HIDDEN), full2),                           # pos embed
            pl.BlockSpec((IN_DIM, HIDDEN), full2),                      # patch_w
            pl.BlockSpec((1, HIDDEN), full2),                           # patch_b
            pl.BlockSpec((DEPTH, 1, HIDDEN), full3),                    # ln1_g
            pl.BlockSpec((DEPTH, 1, HIDDEN), full3),                    # ln1_b
            pl.BlockSpec((DEPTH, HIDDEN, 3 * HIDDEN), full3),           # qkv_w
            pl.BlockSpec((DEPTH, 1, 3 * HIDDEN), full3),                # qkv_b
            pl.BlockSpec((DEPTH, HIDDEN, HIDDEN), full3),               # proj_w
            pl.BlockSpec((DEPTH, 1, HIDDEN), full3),                    # proj_b
            pl.BlockSpec((DEPTH, 1, HIDDEN), full3),                    # ln2_g
            pl.BlockSpec((DEPTH, 1, HIDDEN), full3),                    # ln2_b
            pl.BlockSpec((DEPTH, HIDDEN, MLP_DIM), full3),              # fc1_w
            pl.BlockSpec((DEPTH, 1, MLP_DIM), full3),                   # fc1_b
            pl.BlockSpec((DEPTH, MLP_DIM, HIDDEN), full3),              # fc2_w
            pl.BlockSpec((DEPTH, 1, HIDDEN), full3),                    # fc2_b
            pl.BlockSpec((1, HIDDEN), full2),                           # ln_f_g
            pl.BlockSpec((1, HIDDEN), full2),                           # ln_f_b
        ],
        out_specs=pl.BlockSpec((1, N, HIDDEN), lambda b: (b, 0, 0)),
        compiler_params=pltpu.CompilerParams(
            dimension_semantics=("parallel",),      # shard batches on v7x's 2 TCs
            vmem_limit_bytes=32 * 1024 * 1024,
        ),
    )(patches, pos, patch_w, params["patch_b"],
      params["ln1_g"], params["ln1_b"], params["qkv_w"], params["qkv_b"],
      params["proj_w"], params["proj_b"], params["ln2_g"], params["ln2_b"],
      params["fc1_w"], params["fc1_b"], params["fc2_w"], params["fc2_b"],
      params["ln_f_g"], params["ln_f_b"])


# ----------------------------- pure-JAX reference (correctness check) --------
def _reference_forward(video, params):
    video = video.astype(jnp.float32)
    scale = jnp.where(jnp.max(video) > 1.1, 1.0 / 255.0, 1.0)
    B, T, C, H, W = video.shape
    if T > MAX_FRAMES:
        idx = jnp.linspace(0.0, T - 1, MAX_FRAMES).astype(jnp.int32)
        video = video[:, idx]
        T = MAX_FRAMES
    x = jnp.transpose(video * scale, (0, 2, 1, 3, 4))
    Tt, Hp, Wp = T // TUBELET, H // PATCH, W // PATCH
    x = x.reshape(B, C, Tt, TUBELET, Hp, PATCH, Wp, PATCH)
    x = jnp.transpose(x, (0, 2, 4, 6, 1, 3, 5, 7)).reshape(B, Tt * Hp * Wp, IN_DIM)
    N = Tt * Hp * Wp

    def ln(t, g, b):
        mu = t.mean(-1, keepdims=True)
        var = ((t - mu) ** 2).mean(-1, keepdims=True)
        return (t - mu) / jnp.sqrt(var + LN_EPS) * g + b

    tok = x @ params["patch_w"] + params["patch_b"]
    tok = tok + sinusoid_pos_embed(N, HIDDEN)[None]
    for l in range(DEPTH):
        h = ln(tok, params["ln1_g"][l], params["ln1_b"][l])
        qkv = (h @ params["qkv_w"][l] + params["qkv_b"][l]).reshape(B, N, 3, HEADS, HEAD_DIM)
        q = jnp.transpose(qkv[:, :, 0], (0, 2, 1, 3))
        k = jnp.transpose(qkv[:, :, 1], (0, 2, 1, 3))
        v = jnp.transpose(qkv[:, :, 2], (0, 2, 1, 3))
        s = jnp.einsum("bhqd,bhkd->bhqk", q, k) * ATTN_SCALE
        p = jax.nn.softmax(s, axis=-1)
        o = jnp.einsum("bhqk,bhkd->bhqd", p, v)
        o = jnp.transpose(o, (0, 2, 1, 3)).reshape(B, N, HIDDEN)
        tok = tok + o @ params["proj_w"][l] + params["proj_b"][l]
        h2 = ln(tok, params["ln2_g"][l], params["ln2_b"][l])
        m = h2 @ params["fc1_w"][l] + params["fc1_b"][l]
        m = 0.5 * m * (1.0 + lax.erf(m * 0.7071067811865476))
        m = m @ params["fc2_w"][l] + params["fc2_b"][l]
        tok = tok + m
    return ln(tok, params["ln_f_g"], params["ln_f_b"])


# ----------------------------- main ------------------------------------------
if __name__ == "__main__":
    key = jax.random.PRNGKey(0)
    k_video, k_params = jax.random.split(key)

    # small, VideoMAE-consistent shapes: batch=2, frames=4, 3 channels, 16x16
    video = jax.random.uniform(k_video, (2, 4, 3, 16, 16),
                               minval=0.0, maxval=255.0, dtype=jnp.float32)
    params = init_params(k_params)

    fwd = jax.jit(visual_encoder_forward)
    feats = jax.block_until_ready(fwd(video, params))

    # num_patches = (4/2) * (16/8) * (16/8) = 8
    assert feats.shape == (2, 8, HIDDEN), feats.shape
    assert bool(jnp.all(jnp.isfinite(feats)))

    ref = _reference_forward(video, params)
    err = float(jnp.max(jnp.abs(feats - ref)))
    assert jnp.allclose(feats, ref, atol=5e-2, rtol=5e-2), err

    print("KERNEL_OK")
</pallas_src>

<mosaic_0001>
module attributes {stable_mosaic.version = 11 : i64} {
  func.func @_encoder_kernel(%arg0: i32, %arg1: memref<1x8x384xf32, #tpu.memory_space<vmem>>, %arg2: memref<8x32xf32, #tpu.memory_space<vmem>>, %arg3: memref<384x32xf32, #tpu.memory_space<vmem>>, %arg4: memref<1x32xf32, #tpu.memory_space<vmem>>, %arg5: memref<2x1x32xf32, #tpu.memory_space<vmem>>, %arg6: memref<2x1x32xf32, #tpu.memory_space<vmem>>, %arg7: memref<2x32x96xf32, #tpu.memory_space<vmem>>, %arg8: memref<2x1x96xf32, #tpu.memory_space<vmem>>, %arg9: memref<2x32x32xf32, #tpu.memory_space<vmem>>, %arg10: memref<2x1x32xf32, #tpu.memory_space<vmem>>, %arg11: memref<2x1x32xf32, #tpu.memory_space<vmem>>, %arg12: memref<2x1x32xf32, #tpu.memory_space<vmem>>, %arg13: memref<2x32x128xf32, #tpu.memory_space<vmem>>, %arg14: memref<2x1x128xf32, #tpu.memory_space<vmem>>, %arg15: memref<2x128x32xf32, #tpu.memory_space<vmem>>, %arg16: memref<2x1x32xf32, #tpu.memory_space<vmem>>, %arg17: memref<1x32xf32, #tpu.memory_space<vmem>>, %arg18: memref<1x32xf32, #tpu.memory_space<vmem>>, %arg19: memref<1x8x32xf32, #tpu.memory_space<vmem>>) attributes {dimension_semantics = [#tpu.dimension_semantics<parallel>], iteration_bounds = array<i64: 2>, scalar_prefetch = 0 : i64, scratch_operands = 0 : i64, tpu.core_type = #tpu.core_type<tc>, window_params = [{transform_indices = @transform_0, window_bounds = array<i64: 1, 8, 384>}, {pipeline_mode = #tpu.pipeline_mode<synchronous>, transform_indices = @transform_1, window_bounds = array<i64: 8, 32>}, {pipeline_mode = #tpu.pipeline_mode<synchronous>, transform_indices = @transform_2, window_bounds = array<i64: 384, 32>}, {pipeline_mode = #tpu.pipeline_mode<synchronous>, transform_indices = @transform_3, window_bounds = array<i64: 1, 32>}, {pipeline_mode = #tpu.pipeline_mode<synchronous>, transform_indices = @transform_4, window_bounds = array<i64: 2, 1, 32>}, {pipeline_mode = #tpu.pipeline_mode<synchronous>, transform_indices = @transform_5, window_bounds = array<i64: 2, 1, 32>}, {pipeline_mode = #tpu.pipeline_mode<synchronous>, transform_indices = @transform_6, window_bounds = array<i64: 2, 32, 96>}, {pipeline_mode = #tpu.pipeline_mode<synchronous>, transform_indices = @transform_7, window_bounds = array<i64: 2, 1, 96>}, {pipeline_mode = #tpu.pipeline_mode<synchronous>, transform_indices = @transform_8, window_bounds = array<i64: 2, 32, 32>}, {pipeline_mode = #tpu.pipeline_mode<synchronous>, transform_indices = @transform_9, window_bounds = array<i64: 2, 1, 32>}, {pipeline_mode = #tpu.pipeline_mode<synchronous>, transform_indices = @transform_10, window_bounds = array<i64: 2, 1, 32>}, {pipeline_mode = #tpu.pipeline_mode<synchronous>, transform_indices = @transform_11, window_bounds = array<i64: 2, 1, 32>}, {pipeline_mode = #tpu.pipeline_mode<synchronous>, transform_indices = @transform_12, window_bounds = array<i64: 2, 32, 128>}, {pipeline_mode = #tpu.pipeline_mode<synchronous>, transform_indices = @transform_13, window_bounds = array<i64: 2, 1, 128>}, {pipeline_mode = #tpu.pipeline_mode<synchronous>, transform_indices = @transform_14, window_bounds = array<i64: 2, 128, 32>}, {pipeline_mode = #tpu.pipeline_mode<synchronous>, transform_indices = @transform_15, window_bounds = array<i64: 2, 1, 32>}, {pipeline_mode = #tpu.pipeline_mode<synchronous>, transform_indices = @transform_16, window_bounds = array<i64: 1, 32>}, {pipeline_mode = #tpu.pipeline_mode<synchronous>, transform_indices = @transform_17, window_bounds = array<i64: 1, 32>}, {transform_indices = @transform_18, window_bounds = array<i64: 1, 8, 32>}]} {
    %c0 = arith.constant 0 : index
    %c0_0 = arith.constant 0 : index
    %c0_1 = arith.constant 0 : index
    %0 = vector.load %arg1[%c0, %c0_0, %c0_1] : memref<1x8x384xf32, #tpu.memory_space<vmem>>, vector<1x8x384xf32>
    %1 = vector.shape_cast %0 : vector<1x8x384xf32> to vector<8x384xf32>
    %c0_2 = arith.constant 0 : index
    %c0_3 = arith.constant 0 : index
    %2 = vector.load %arg3[%c0_2, %c0_3] : memref<384x32xf32, #tpu.memory_space<vmem>>, vector<384x32xf32>
    %cst = arith.constant dense<0.000000e+00> : vector<8x32xf32>
    %3 = tpu.matmul %1, %2, %cst {dimension_numbers = #tpu.dot_dimension_numbers<[1], [0], [0], [1], [0, 0, 1, 1], [], []>} : vector<8x384xf32>, vector<384x32xf32>, vector<8x32xf32> -> vector<8x32xf32>
    %c0_4 = arith.constant 0 : index
    %c0_5 = arith.constant 0 : index
    %4 = vector.load %arg4[%c0_4, %c0_5] : memref<1x32xf32, #tpu.memory_space<vmem>>, vector<1x32xf32>
    %5 = vector.broadcast %4 : vector<1x32xf32> to vector<8x32xf32>
    %6 = arith.addf %3, %5 : vector<8x32xf32>
    %c0_6 = arith.constant 0 : index
    %c0_7 = arith.constant 0 : index
    %7 = vector.load %arg2[%c0_6, %c0_7] : memref<8x32xf32, #tpu.memory_space<vmem>>, vector<8x32xf32>
    %8 = arith.addf %6, %7 : vector<8x32xf32>
    %c0_8 = arith.constant 0 : index
    %c0_9 = arith.constant 0 : index
    %c0_10 = arith.constant 0 : index
    %9 = vector.load %arg5[%c0_8, %c0_9, %c0_10] : memref<2x1x32xf32, #tpu.memory_space<vmem>>, vector<1x1x32xf32>
    %10 = vector.shape_cast %9 : vector<1x1x32xf32> to vector<1x32xf32>
    %c0_11 = arith.constant 0 : index
    %c0_12 = arith.constant 0 : index
    %c0_13 = arith.constant 0 : index
    %11 = vector.load %arg6[%c0_11, %c0_12, %c0_13] : memref<2x1x32xf32, #tpu.memory_space<vmem>>, vector<1x1x32xf32>
    %12 = vector.shape_cast %11 : vector<1x1x32xf32> to vector<1x32xf32>
    %cst_14 = arith.constant dense<0.000000e+00> : vector<8xf32>
    %13 = vector.multi_reduction <add>, %8, %cst_14 [1] : vector<8x32xf32> to vector<8xf32>
    %14 = vector.shape_cast %13 : vector<8xf32> to vector<8x1xf32>
    %cst_15 = arith.constant 3.200000e+01 : f32
    %15 = vector.broadcast %cst_15 : f32 to vector<8x1xf32>
    %16 = arith.divf %14, %15 : vector<8x1xf32>
    %17 = vector.broadcast %16 : vector<8x1xf32> to vector<8x32xf32>
    %18 = arith.subf %8, %17 : vector<8x32xf32>
    %19 = arith.mulf %18, %18 : vector<8x32xf32>
    %cst_16 = arith.constant dense<0.000000e+00> : vector<8xf32>
    %20 = vector.multi_reduction <add>, %19, %cst_16 [1] : vector<8x32xf32> to vector<8xf32>
    %21 = vector.shape_cast %20 : vector<8xf32> to vector<8x1xf32>
    %cst_17 = arith.constant 3.200000e+01 : f32
    %22 = vector.broadcast %cst_17 : f32 to vector<8x1xf32>
    %23 = arith.divf %21, %22 : vector<8x1xf32>
    %24 = vector.broadcast %16 : vector<8x1xf32> to vector<8x32xf32>
    %25 = arith.subf %8, %24 : vector<8x32xf32>
    %cst_18 = arith.constant 9.99999997E-7 : f32
    %26 = vector.broadcast %cst_18 : f32 to vector<8x1xf32>
    %27 = arith.addf %23, %26 : vector<8x1xf32>
    %28 = math.rsqrt %27 : vector<8x1xf32>
    %29 = vector.broadcast %28 : vector<8x1xf32> to vector<8x32xf32>
    %30 = arith.mulf %25, %29 : vector<8x32xf32>
    %31 = vector.broadcast %10 : vector<1x32xf32> to vector<8x32xf32>
    %32 = arith.mulf %30, %31 : vector<8x32xf32>
    %33 = vector.broadcast %12 : vector<1x32xf32> to vector<8x32xf32>
    %34 = arith.addf %32, %33 : vector<8x32xf32>
    %c0_19 = arith.constant 0 : index
    %c0_20 = arith.constant 0 : index
    %c0_21 = arith.constant 0 : index
    %35 = vector.load %arg7[%c0_19, %c0_20, %c0_21] : memref<2x32x96xf32, #tpu.memory_space<vmem>>, vector<1x32x96xf32>
    %36 = vector.shape_cast %35 : vector<1x32x96xf32> to vector<32x96xf32>
    %cst_22 = arith.constant dense<0.000000e+00> : vector<8x96xf32>
    %37 = tpu.matmul %34, %36, %cst_22 {dimension_numbers = #tpu.dot_dimension_numbers<[1], [0], [0], [1], [0, 0, 1, 1], [], []>} : vector<8x32xf32>, vector<32x96xf32>, vector<8x96xf32> -> vector<8x96xf32>
    %c0_23 = arith.constant 0 : index
    %c0_24 = arith.constant 0 : index
    %c0_25 = arith.constant 0 : index
    %38 = vector.load %arg8[%c0_23, %c0_24, %c0_25] : memref<2x1x96xf32, #tpu.memory_space<vmem>>, vector<1x1x96xf32>
    %39 = vector.shape_cast %38 : vector<1x1x96xf32> to vector<1x96xf32>
    %40 = vector.broadcast %39 : vector<1x96xf32> to vector<8x96xf32>
    %41 = arith.addf %37, %40 : vector<8x96xf32>
    %c0_26 = arith.constant 0 : index
    %c0_27 = arith.constant 0 : index
    %c0_28 = arith.constant 0 : index
    %42 = vector.load %arg9[%c0_26, %c0_27, %c0_28] : memref<2x32x32xf32, #tpu.memory_space<vmem>>, vector<1x32x32xf32>
    %43 = vector.shape_cast %42 : vector<1x32x32xf32> to vector<32x32xf32>
    %44 = vector.extract_strided_slice %41 {offsets = [0, 0], sizes = [8, 8], strides = [1, 1]} : vector<8x96xf32> to vector<8x8xf32>
    %45 = vector.extract_strided_slice %41 {offsets = [0, 32], sizes = [8, 8], strides = [1, 1]} : vector<8x96xf32> to vector<8x8xf32>
    %46 = vector.extract_strided_slice %41 {offsets = [0, 64], sizes = [8, 8], strides = [1, 1]} : vector<8x96xf32> to vector<8x8xf32>
    %cst_29 = arith.constant dense<0.000000e+00> : vector<8x8xf32>
    %47 = tpu.matmul %44, %45, %cst_29 {dimension_numbers = #tpu.dot_dimension_numbers<[1], [1], [0], [0], [0, 0, 1, 0], [], []>} : vector<8x8xf32>, vector<8x8xf32>, vector<8x8xf32> -> vector<8x8xf32>
    %cst_30 = arith.constant 0.353553385 : f32
    %48 = vector.broadcast %cst_30 : f32 to vector<8x8xf32>
    %49 = arith.mulf %47, %48 : vector<8x8xf32>
    %cst_31 = arith.constant dense<0xFF800000> : vector<8xf32>
    %50 = vector.multi_reduction <maximumf>, %49, %cst_31 [1] : vector<8x8xf32> to vector<8xf32>
    %51 = vector.shape_cast %50 : vector<8xf32> to vector<8x1xf32>
    %52 = vector.broadcast %51 : vector<8x1xf32> to vector<8x8xf32>
    %53 = arith.subf %49, %52 : vector<8x8xf32>
    %54 = math.exp %53 : vector<8x8xf32>
    %cst_32 = arith.constant dense<0.000000e+00> : vector<8xf32>
    %55 = vector.multi_reduction <add>, %54, %cst_32 [1] : vector<8x8xf32> to vector<8xf32>
    %56 = vector.shape_cast %55 : vector<8xf32> to vector<8x1xf32>
    %57 = tpu.reciprocal %56 {approx = true} : vector<8x1xf32> -> vector<8x1xf32>
    %58 = vector.broadcast %57 : vector<8x1xf32> to vector<8x8xf32>
    %59 = arith.mulf %54, %58 : vector<8x8xf32>
    %cst_33 = arith.constant dense<0.000000e+00> : vector<8x8xf32>
    %60 = tpu.matmul %59, %46, %cst_33 {dimension_numbers = #tpu.dot_dimension_numbers<[1], [0], [0], [1], [0, 0, 1, 1], [], []>} : vector<8x8xf32>, vector<8x8xf32>, vector<8x8xf32> -> vector<8x8xf32>
    %61 = vector.extract_strided_slice %43 {offsets = [0, 0], sizes = [8, 32], strides = [1, 1]} : vector<32x32xf32> to vector<8x32xf32>
    %cst_34 = arith.constant dense<0.000000e+00> : vector<8x32xf32>
    %62 = tpu.matmul %60, %61, %cst_34 {dimension_numbers = #tpu.dot_dimension_numbers<[1], [0], [0], [1], [0, 0, 1, 1], [], []>} : vector<8x8xf32>, vector<8x32xf32>, vector<8x32xf32> -> vector<8x32xf32>
    %63 = vector.extract_strided_slice %41 {offsets = [0, 8], sizes = [8, 8], strides = [1, 1]} : vector<8x96xf32> to vector<8x8xf32>
    %64 = vector.extract_strided_slice %41 {offsets = [0, 40], sizes = [8, 8], strides = [1, 1]} : vector<8x96xf32> to vector<8x8xf32>
    %65 = vector.extract_strided_slice %41 {offsets = [0, 72], sizes = [8, 8], strides = [1, 1]} : vector<8x96xf32> to vector<8x8xf32>
    %cst_35 = arith.constant dense<0.000000e+00> : vector<8x8xf32>
    %66 = tpu.matmul %63, %64, %cst_35 {dimension_numbers = #tpu.dot_dimension_numbers<[1], [1], [0], [0], [0, 0, 1, 0], [], []>} : vector<8x8xf32>, vector<8x8xf32>, vector<8x8xf32> -> vector<8x8xf32>
    %cst_36 = arith.constant 0.353553385 : f32
    %67 = vector.broadcast %cst_36 : f32 to vector<8x8xf32>
    %68 = arith.mulf %66, %67 : vector<8x8xf32>
    %cst_37 = arith.constant dense<0xFF800000> : vector<8xf32>
    %69 = vector.multi_reduction <maximumf>, %68, %cst_37 [1] : vector<8x8xf32> to vector<8xf32>
    %70 = vector.shape_cast %69 : vector<8xf32> to vector<8x1xf32>
    %71 = vector.broadcast %70 : vector<8x1xf32> to vector<8x8xf32>
    %72 = arith.subf %68, %71 : vector<8x8xf32>
    %73 = math.exp %72 : vector<8x8xf32>
    %cst_38 = arith.constant dense<0.000000e+00> : vector<8xf32>
    %74 = vector.multi_reduction <add>, %73, %cst_38 [1] : vector<8x8xf32> to vector<8xf32>
    %75 = vector.shape_cast %74 : vector<8xf32> to vector<8x1xf32>
    %76 = tpu.reciprocal %75 {approx = true} : vector<8x1xf32> -> vector<8x1xf32>
    %77 = vector.broadcast %76 : vector<8x1xf32> to vector<8x8xf32>
    %78 = arith.mulf %73, %77 : vector<8x8xf32>
    %cst_39 = arith.constant dense<0.000000e+00> : vector<8x8xf32>
    %79 = tpu.matmul %78, %65, %cst_39 {dimension_numbers = #tpu.dot_dimension_numbers<[1], [0], [0], [1], [0, 0, 1, 1], [], []>} : vector<8x8xf32>, vector<8x8xf32>, vector<8x8xf32> -> vector<8x8xf32>
    %80 = vector.extract_strided_slice %43 {offsets = [8, 0], sizes = [8, 32], strides = [1, 1]} : vector<32x32xf32> to vector<8x32xf32>
    %cst_40 = arith.constant dense<0.000000e+00> : vector<8x32xf32>
    %81 = tpu.matmul %79, %80, %cst_40 {dimension_numbers = #tpu.dot_dimension_numbers<[1], [0], [0], [1], [0, 0, 1, 1], [], []>} : vector<8x8xf32>, vector<8x32xf32>, vector<8x32xf32> -> vector<8x32xf32>
    %82 = arith.addf %62, %81 : vector<8x32xf32>
    %83 = vector.extract_strided_slice %41 {offsets = [0, 16], sizes = [8, 8], strides = [1, 1]} : vector<8x96xf32> to vector<8x8xf32>
    %84 = vector.extract_strided_slice %41 {offsets = [0, 48], sizes = [8, 8], strides = [1, 1]} : vector<8x96xf32> to vector<8x8xf32>
    %85 = vector.extract_strided_slice %41 {offsets = [0, 80], sizes = [8, 8], strides = [1, 1]} : vector<8x96xf32> to vector<8x8xf32>
    %cst_41 = arith.constant dense<0.000000e+00> : vector<8x8xf32>
    %86 = tpu.matmul %83, %84, %cst_41 {dimension_numbers = #tpu.dot_dimension_numbers<[1], [1], [0], [0], [0, 0, 1, 0], [], []>} : vector<8x8xf32>, vector<8x8xf32>, vector<8x8xf32> -> vector<8x8xf32>
    %cst_42 = arith.constant 0.353553385 : f32
    %87 = vector.broadcast %cst_42 : f32 to vector<8x8xf32>
    %88 = arith.mulf %86, %87 : vector<8x8xf32>
    %cst_43 = arith.constant dense<0xFF800000> : vector<8xf32>
    %89 = vector.multi_reduction <maximumf>, %88, %cst_43 [1] : vector<8x8xf32> to vector<8xf32>
    %90 = vector.shape_cast %89 : vector<8xf32> to vector<8x1xf32>
    %91 = vector.broadcast %90 : vector<8x1xf32> to vector<8x8xf32>
    %92 = arith.subf %88, %91 : vector<8x8xf32>
    %93 = math.exp %92 : vector<8x8xf32>
    %cst_44 = arith.constant dense<0.000000e+00> : vector<8xf32>
    %94 = vector.multi_reduction <add>, %93, %cst_44 [1] : vector<8x8xf32> to vector<8xf32>
    %95 = vector.shape_cast %94 : vector<8xf32> to vector<8x1xf32>
    %96 = tpu.reciprocal %95 {approx = true} : vector<8x1xf32> -> vector<8x1xf32>
    %97 = vector.broadcast %96 : vector<8x1xf32> to vector<8x8xf32>
    %98 = arith.mulf %93, %97 : vector<8x8xf32>
    %cst_45 = arith.constant dense<0.000000e+00> : vector<8x8xf32>
    %99 = tpu.matmul %98, %85, %cst_45 {dimension_numbers = #tpu.dot_dimension_numbers<[1], [0], [0], [1], [0, 0, 1, 1], [], []>} : vector<8x8xf32>, vector<8x8xf32>, vector<8x8xf32> -> vector<8x8xf32>
    %100 = vector.extract_strided_slice %43 {offsets = [16, 0], sizes = [8, 32], strides = [1, 1]} : vector<32x32xf32> to vector<8x32xf32>
    %cst_46 = arith.constant dense<0.000000e+00> : vector<8x32xf32>
    %101 = tpu.matmul %99, %100, %cst_46 {dimension_numbers = #tpu.dot_dimension_numbers<[1], [0], [0], [1], [0, 0, 1, 1], [], []>} : vector<8x8xf32>, vector<8x32xf32>, vector<8x32xf32> -> vector<8x32xf32>
    %102 = arith.addf %82, %101 : vector<8x32xf32>
    %103 = vector.extract_strided_slice %41 {offsets = [0, 24], sizes = [8, 8], strides = [1, 1]} : vector<8x96xf32> to vector<8x8xf32>
    %104 = vector.extract_strided_slice %41 {offsets = [0, 56], sizes = [8, 8], strides = [1, 1]} : vector<8x96xf32> to vector<8x8xf32>
    %105 = vector.extract_strided_slice %41 {offsets = [0, 88], sizes = [8, 8], strides = [1, 1]} : vector<8x96xf32> to vector<8x8xf32>
    %cst_47 = arith.constant dense<0.000000e+00> : vector<8x8xf32>
    %106 = tpu.matmul %103, %104, %cst_47 {dimension_numbers = #tpu.dot_dimension_numbers<[1], [1], [0], [0], [0, 0, 1, 0], [], []>} : vector<8x8xf32>, vector<8x8xf32>, vector<8x8xf32> -> vector<8x8xf32>
    %cst_48 = arith.constant 0.353553385 : f32
    %107 = vector.broadcast %cst_48 : f32 to vector<8x8xf32>
    %108 = arith.mulf %106, %107 : vector<8x8xf32>
    %cst_49 = arith.constant dense<0xFF800000> : vector<8xf32>
    %109 = vector.multi_reduction <maximumf>, %108, %cst_49 [1] : vector<8x8xf32> to vector<8xf32>
    %110 = vector.shape_cast %109 : vector<8xf32> to vector<8x1xf32>
    %111 = vector.broadcast %110 : vector<8x1xf32> to vector<8x8xf32>
    %112 = arith.subf %108, %111 : vector<8x8xf32>
    %113 = math.exp %112 : vector<8x8xf32>
    %cst_50 = arith.constant dense<0.000000e+00> : vector<8xf32>
    %114 = vector.multi_reduction <add>, %113, %cst_50 [1] : vector<8x8xf32> to vector<8xf32>
    %115 = vector.shape_cast %114 : vector<8xf32> to vector<8x1xf32>
    %116 = tpu.reciprocal %115 {approx = true} : vector<8x1xf32> -> vector<8x1xf32>
    %117 = vector.broadcast %116 : vector<8x1xf32> to vector<8x8xf32>
    %118 = arith.mulf %113, %117 : vector<8x8xf32>
    %cst_51 = arith.constant dense<0.000000e+00> : vector<8x8xf32>
    %119 = tpu.matmul %118, %105, %cst_51 {dimension_numbers = #tpu.dot_dimension_numbers<[1], [0], [0], [1], [0, 0, 1, 1], [], []>} : vector<8x8xf32>, vector<8x8xf32>, vector<8x8xf32> -> vector<8x8xf32>
    %120 = vector.extract_strided_slice %43 {offsets = [24, 0], sizes = [8, 32], strides = [1, 1]} : vector<32x32xf32> to vector<8x32xf32>
    %cst_52 = arith.constant dense<0.000000e+00> : vector<8x32xf32>
    %121 = tpu.matmul %119, %120, %cst_52 {dimension_numbers = #tpu.dot_dimension_numbers<[1], [0], [0], [1], [0, 0, 1, 1], [], []>} : vector<8x8xf32>, vector<8x32xf32>, vector<8x32xf32> -> vector<8x32xf32>
    %122 = arith.addf %102, %121 : vector<8x32xf32>
    %123 = arith.addf %8, %122 : vector<8x32xf32>
    %c0_53 = arith.constant 0 : index
    %c0_54 = arith.constant 0 : index
    %c0_55 = arith.constant 0 : index
    %124 = vector.load %arg10[%c0_53, %c0_54, %c0_55] : memref<2x1x32xf32, #tpu.memory_space<vmem>>, vector<1x1x32xf32>
    %125 = vector.shape_cast %124 : vector<1x1x32xf32> to vector<1x32xf32>
    %126 = vector.broadcast %125 : vector<1x32xf32> to vector<8x32xf32>
    %127 = arith.addf %123, %126 : vector<8x32xf32>
    %c0_56 = arith.constant 0 : index
    %c0_57 = arith.constant 0 : index
    %c0_58 = arith.constant 0 : index
    %128 = vector.load %arg11[%c0_56, %c0_57, %c0_58] : memref<2x1x32xf32, #tpu.memory_space<vmem>>, vector<1x1x32xf32>
    %129 = vector.shape_cast %128 : vector<1x1x32xf32> to vector<1x32xf32>
    %c0_59 = arith.constant 0 : index
    %c0_60 = arith.constant 0 : index
    %c0_61 = arith.constant 0 : index
    %130 = vector.load %arg12[%c0_59, %c0_60, %c0_61] : memref<2x1x32xf32, #tpu.memory_space<vmem>>, vector<1x1x32xf32>
    %131 = vector.shape_cast %130 : vector<1x1x32xf32> to vector<1x32xf32>
    %cst_62 = arith.constant dense<0.000000e+00> : vector<8xf32>
    %132 = vector.multi_reduction <add>, %127, %cst_62 [1] : vector<8x32xf32> to vector<8xf32>
    %133 = vector.shape_cast %132 : vector<8xf32> to vector<8x1xf32>
    %cst_63 = arith.constant 3.200000e+01 : f32
    %134 = vector.broadcast %cst_63 : f32 to vector<8x1xf32>
    %135 = arith.divf %133, %134 : vector<8x1xf32>
    %136 = vector.broadcast %135 : vector<8x1xf32> to vector<8x32xf32>
    %137 = arith.subf %127, %136 : vector<8x32xf32>
    %138 = arith.mulf %137, %137 : vector<8x32xf32>
    %cst_64 = arith.constant dense<0.000000e+00> : vector<8xf32>
    %139 = vector.multi_reduction <add>, %138, %cst_64 [1] : vector<8x32xf32> to vector<8xf32>
    %140 = vector.shape_cast %139 : vector<8xf32> to vector<8x1xf32>
    %cst_65 = arith.constant 3.200000e+01 : f32
    %141 = vector.broadcast %cst_65 : f32 to vector<8x1xf32>
    %142 = arith.divf %140, %141 : vector<8x1xf32>
    %143 = vector.broadcast %135 : vector<8x1xf32> to vector<8x32xf32>
    %144 = arith.subf %127, %143 : vector<8x32xf32>
    %cst_66 = arith.constant 9.99999997E-7 : f32
    %145 = vector.broadcast %cst_66 : f32 to vector<8x1xf32>
    %146 = arith.addf %142, %145 : vector<8x1xf32>
    %147 = math.rsqrt %146 : vector<8x1xf32>
    %148 = vector.broadcast %147 : vector<8x1xf32> to vector<8x32xf32>
    %149 = arith.mulf %144, %148 : vector<8x32xf32>
    %150 = vector.broadcast %129 : vector<1x32xf32> to vector<8x32xf32>
    %151 = arith.mulf %149, %150 : vector<8x32xf32>
    %152 = vector.broadcast %131 : vector<1x32xf32> to vector<8x32xf32>
    %153 = arith.addf %151, %152 : vector<8x32xf32>
    %c0_67 = arith.constant 0 : index
    %c0_68 = arith.constant 0 : index
    %c0_69 = arith.constant 0 : index
    %154 = vector.load %arg13[%c0_67, %c0_68, %c0_69] : memref<2x32x128xf32, #tpu.memory_space<vmem>>, vector<1x32x128xf32>
    %155 = vector.shape_cast %154 : vector<1x32x128xf32> to vector<32x128xf32>
    %cst_70 = arith.constant dense<0.000000e+00> : vector<8x128xf32>
    %156 = tpu.matmul %153, %155, %cst_70 {dimension_numbers = #tpu.dot_dimension_numbers<[1], [0], [0], [1], [0, 0, 1, 1], [], []>} : vector<8x32xf32>, vector<32x128xf32>, vector<8x128xf32> -> vector<8x128xf32>
    %c0_71 = arith.constant 0 : index
    %c0_72 = arith.constant 0 : index
    %c0_73 = arith.constant 0 : index
    %157 = vector.load %arg14[%c0_71, %c0_72, %c0_73] : memref<2x1x128xf32, #tpu.memory_space<vmem>>, vector<1x1x128xf32>
    %158 = vector.shape_cast %157 : vector<1x1x128xf32> to vector<1x128xf32>
    %159 = vector.broadcast %158 : vector<1x128xf32> to vector<8x128xf32>
    %160 = arith.addf %156, %159 : vector<8x128xf32>
    %cst_74 = arith.constant 5.000000e-01 : f32
    %161 = vector.broadcast %cst_74 : f32 to vector<8x128xf32>
    %162 = arith.mulf %161, %160 : vector<8x128xf32>
    %cst_75 = arith.constant 0.707106769 : f32
    %163 = vector.broadcast %cst_75 : f32 to vector<8x128xf32>
    %164 = arith.mulf %160, %163 : vector<8x128xf32>
    %165 = math.erf %164 : vector<8x128xf32>
    %cst_76 = arith.constant 1.000000e+00 : f32
    %166 = vector.broadcast %cst_76 : f32 to vector<8x128xf32>
    %167 = arith.addf %166, %165 : vector<8x128xf32>
    %168 = arith.mulf %162, %167 : vector<8x128xf32>
    %c0_77 = arith.constant 0 : index
    %c0_78 = arith.constant 0 : index
    %c0_79 = arith.constant 0 : index
    %169 = vector.load %arg15[%c0_77, %c0_78, %c0_79] : memref<2x128x32xf32, #tpu.memory_space<vmem>>, vector<1x128x32xf32>
    %170 = vector.shape_cast %169 : vector<1x128x32xf32> to vector<128x32xf32>
    %cst_80 = arith.constant dense<0.000000e+00> : vector<8x32xf32>
    %171 = tpu.matmul %168, %170, %cst_80 {dimension_numbers = #tpu.dot_dimension_numbers<[1], [0], [0], [1], [0, 0, 1, 1], [], []>} : vector<8x128xf32>, vector<128x32xf32>, vector<8x32xf32> -> vector<8x32xf32>
    %c0_81 = arith.constant 0 : index
    %c0_82 = arith.constant 0 : index
    %c0_83 = arith.constant 0 : index
    %172 = vector.load %arg16[%c0_81, %c0_82, %c0_83] : memref<2x1x32xf32, #tpu.memory_space<vmem>>, vector<1x1x32xf32>
    %173 = vector.shape_cast %172 : vector<1x1x32xf32> to vector<1x32xf32>
    %174 = vector.broadcast %173 : vector<1x32xf32> to vector<8x32xf32>
    %175 = arith.addf %171, %174 : vector<8x32xf32>
    %176 = arith.addf %127, %175 : vector<8x32xf32>
    %c1 = arith.constant 1 : index
    %c0_84 = arith.constant 0 : index
    %c0_85 = arith.constant 0 : index
    %177 = vector.load %arg5[%c1, %c0_84, %c0_85] : memref<2x1x32xf32, #tpu.memory_space<vmem>>, vector<1x1x32xf32>
    %178 = vector.shape_cast %177 : vector<1x1x32xf32> to vector<1x32xf32>
    %c1_86 = arith.constant 1 : index
    %c0_87 = arith.constant 0 : index
    %c0_88 = arith.constant 0 : index
    %179 = vector.load %arg6[%c1_86, %c0_87, %c0_88] : memref<2x1x32xf32, #tpu.memory_space<vmem>>, vector<1x1x32xf32>
    %180 = vector.shape_cast %179 : vector<1x1x32xf32> to vector<1x32xf32>
    %cst_89 = arith.constant dense<0.000000e+00> : vector<8xf32>
    %181 = vector.multi_reduction <add>, %176, %cst_89 [1] : vector<8x32xf32> to vector<8xf32>
    %182 = vector.shape_cast %181 : vector<8xf32> to vector<8x1xf32>
    %cst_90 = arith.constant 3.200000e+01 : f32
    %183 = vector.broadcast %cst_90 : f32 to vector<8x1xf32>
    %184 = arith.divf %182, %183 : vector<8x1xf32>
    %185 = vector.broadcast %184 : vector<8x1xf32> to vector<8x32xf32>
    %186 = arith.subf %176, %185 : vector<8x32xf32>
    %187 = arith.mulf %186, %186 : vector<8x32xf32>
    %cst_91 = arith.constant dense<0.000000e+00> : vector<8xf32>
    %188 = vector.multi_reduction <add>, %187, %cst_91 [1] : vector<8x32xf32> to vector<8xf32>
    %189 = vector.shape_cast %188 : vector<8xf32> to vector<8x1xf32>
    %cst_92 = arith.constant 3.200000e+01 : f32
    %190 = vector.broadcast %cst_92 : f32 to vector<8x1xf32>
    %191 = arith.divf %189, %190 : vector<8x1xf32>
    %192 = vector.broadcast %184 : vector<8x1xf32> to vector<8x32xf32>
    %193 = arith.subf %176, %192 : vector<8x32xf32>
    %cst_93 = arith.constant 9.99999997E-7 : f32
    %194 = vector.broadcast %cst_93 : f32 to vector<8x1xf32>
    %195 = arith.addf %191, %194 : vector<8x1xf32>
    %196 = math.rsqrt %195 : vector<8x1xf32>
    %197 = vector.broadcast %196 : vector<8x1xf32> to vector<8x32xf32>
    %198 = arith.mulf %193, %197 : vector<8x32xf32>
    %199 = vector.broadcast %178 : vector<1x32xf32> to vector<8x32xf32>
    %200 = arith.mulf %198, %199 : vector<8x32xf32>
    %201 = vector.broadcast %180 : vector<1x32xf32> to vector<8x32xf32>
    %202 = arith.addf %200, %201 : vector<8x32xf32>
    %c1_94 = arith.constant 1 : index
    %c0_95 = arith.constant 0 : index
    %c0_96 = arith.constant 0 : index
    %203 = vector.load %arg7[%c1_94, %c0_95, %c0_96] : memref<2x32x96xf32, #tpu.memory_space<vmem>>, vector<1x32x96xf32>
    %204 = vector.shape_cast %203 : vector<1x32x96xf32> to vector<32x96xf32>
    %cst_97 = arith.constant dense<0.000000e+00> : vector<8x96xf32>
    %205 = tpu.matmul %202, %204, %cst_97 {dimension_numbers = #tpu.dot_dimension_numbers<[1], [0], [0], [1], [0, 0, 1, 1], [], []>} : vector<8x32xf32>, vector<32x96xf32>, vector<8x96xf32> -> vector<8x96xf32>
    %c1_98 = arith.constant 1 : index
    %c0_99 = arith.constant 0 : index
    %c0_100 = arith.constant 0 : index
    %206 = vector.load %arg8[%c1_98, %c0_99, %c0_100] : memref<2x1x96xf32, #tpu.memory_space<vmem>>, vector<1x1x96xf32>
    %207 = vector.shape_cast %206 : vector<1x1x96xf32> to vector<1x96xf32>
    %208 = vector.broadcast %207 : vector<1x96xf32> to vector<8x96xf32>
    %209 = arith.addf %205, %208 : vector<8x96xf32>
    %c1_101 = arith.constant 1 : index
    %c0_102 = arith.constant 0 : index
    %c0_103 = arith.constant 0 : index
    %210 = vector.load %arg9[%c1_101, %c0_102, %c0_103] : memref<2x32x32xf32, #tpu.memory_space<vmem>>, vector<1x32x32xf32>
    %211 = vector.shape_cast %210 : vector<1x32x32xf32> to vector<32x32xf32>
    %212 = vector.extract_strided_slice %209 {offsets = [0, 0], sizes = [8, 8], strides = [1, 1]} : vector<8x96xf32> to vector<8x8xf32>
    %213 = vector.extract_strided_slice %209 {offsets = [0, 32], sizes = [8, 8], strides = [1, 1]} : vector<8x96xf32> to vector<8x8xf32>
    %214 = vector.extract_strided_slice %209 {offsets = [0, 64], sizes = [8, 8], strides = [1, 1]} : vector<8x96xf32> to vector<8x8xf32>
    %cst_104 = arith.constant dense<0.000000e+00> : vector<8x8xf32>
    %215 = tpu.matmul %212, %213, %cst_104 {dimension_numbers = #tpu.dot_dimension_numbers<[1], [1], [0], [0], [0, 0, 1, 0], [], []>} : vector<8x8xf32>, vector<8x8xf32>, vector<8x8xf32> -> vector<8x8xf32>
    %cst_105 = arith.constant 0.353553385 : f32
    %216 = vector.broadcast %cst_105 : f32 to vector<8x8xf32>
    %217 = arith.mulf %215, %216 : vector<8x8xf32>
    %cst_106 = arith.constant dense<0xFF800000> : vector<8xf32>
    %218 = vector.multi_reduction <maximumf>, %217, %cst_106 [1] : vector<8x8xf32> to vector<8xf32>
    %219 = vector.shape_cast %218 : vector<8xf32> to vector<8x1xf32>
    %220 = vector.broadcast %219 : vector<8x1xf32> to vector<8x8xf32>
    %221 = arith.subf %217, %220 : vector<8x8xf32>
    %222 = math.exp %221 : vector<8x8xf32>
    %cst_107 = arith.constant dense<0.000000e+00> : vector<8xf32>
    %223 = vector.multi_reduction <add>, %222, %cst_107 [1] : vector<8x8xf32> to vector<8xf32>
    %224 = vector.shape_cast %223 : vector<8xf32> to vector<8x1xf32>
    %225 = tpu.reciprocal %224 {approx = true} : vector<8x1xf32> -> vector<8x1xf32>
    %226 = vector.broadcast %225 : vector<8x1xf32> to vector<8x8xf32>
    %227 = arith.mulf %222, %226 : vector<8x8xf32>
    %cst_108 = arith.constant dense<0.000000e+00> : vector<8x8xf32>
    %228 = tpu.matmul %227, %214, %cst_108 {dimension_numbers = #tpu.dot_dimension_numbers<[1], [0], [0], [1], [0, 0, 1, 1], [], []>} : vector<8x8xf32>, vector<8x8xf32>, vector<8x8xf32> -> vector<8x8xf32>
    %229 = vector.extract_strided_slice %211 {offsets = [0, 0], sizes = [8, 32], strides = [1, 1]} : vector<32x32xf32> to vector<8x32xf32>
    %cst_109 = arith.constant dense<0.000000e+00> : vector<8x32xf32>
    %230 = tpu.matmul %228, %229, %cst_109 {dimension_numbers = #tpu.dot_dimension_numbers<[1], [0], [0], [1], [0, 0, 1, 1], [], []>} : vector<8x8xf32>, vector<8x32xf32>, vector<8x32xf32> -> vector<8x32xf32>
    %231 = vector.extract_strided_slice %209 {offsets = [0, 8], sizes = [8, 8], strides = [1, 1]} : vector<8x96xf32> to vector<8x8xf32>
    %232 = vector.extract_strided_slice %209 {offsets = [0, 40], sizes = [8, 8], strides = [1, 1]} : vector<8x96xf32> to vector<8x8xf32>
    %233 = vector.extract_strided_slice %209 {offsets = [0, 72], sizes = [8, 8], strides = [1, 1]} : vector<8x96xf32> to vector<8x8xf32>
    %cst_110 = arith.constant dense<0.000000e+00> : vector<8x8xf32>
    %234 = tpu.matmul %231, %232, %cst_110 {dimension_numbers = #tpu.dot_dimension_numbers<[1], [1], [0], [0], [0, 0, 1, 0], [], []>} : vector<8x8xf32>, vector<8x8xf32>, vector<8x8xf32> -> vector<8x8xf32>
    %cst_111 = arith.constant 0.353553385 : f32
    %235 = vector.broadcast %cst_111 : f32 to vector<8x8xf32>
    %236 = arith.mulf %234, %235 : vector<8x8xf32>
    %cst_112 = arith.constant dense<0xFF800000> : vector<8xf32>
    %237 = vector.multi_reduction <maximumf>, %236, %cst_112 [1] : vector<8x8xf32> to vector<8xf32>
    %238 = vector.shape_cast %237 : vector<8xf32> to vector<8x1xf32>
    %239 = vector.broadcast %238 : vector<8x1xf32> to vector<8x8xf32>
    %240 = arith.subf %236, %239 : vector<8x8xf32>
    %241 = math.exp %240 : vector<8x8xf32>
    %cst_113 = arith.constant dense<0.000000e+00> : vector<8xf32>
    %242 = vector.multi_reduction <add>, %241, %cst_113 [1] : vector<8x8xf32> to vector<8xf32>
    %243 = vector.shape_cast %242 : vector<8xf32> to vector<8x1xf32>
    %244 = tpu.reciprocal %243 {approx = true} : vector<8x1xf32> -> vector<8x1xf32>
    %245 = vector.broadcast %244 : vector<8x1xf32> to vector<8x8xf32>
    %246 = arith.mulf %241, %245 : vector<8x8xf32>
    %cst_114 = arith.constant dense<0.000000e+00> : vector<8x8xf32>
    %247 = tpu.matmul %246, %233, %cst_114 {dimension_numbers = #tpu.dot_dimension_numbers<[1], [0], [0], [1], [0, 0, 1, 1], [], []>} : vector<8x8xf32>, vector<8x8xf32>, vector<8x8xf32> -> vector<8x8xf32>
    %248 = vector.extract_strided_slice %211 {offsets = [8, 0], sizes = [8, 32], strides = [1, 1]} : vector<32x32xf32> to vector<8x32xf32>
    %cst_115 = arith.constant dense<0.000000e+00> : vector<8x32xf32>
    %249 = tpu.matmul %247, %248, %cst_115 {dimension_numbers = #tpu.dot_dimension_numbers<[1], [0], [0], [1], [0, 0, 1, 1], [], []>} : vector<8x8xf32>, vector<8x32xf32>, vector<8x32xf32> -> vector<8x32xf32>
    %250 = arith.addf %230, %249 : vector<8x32xf32>
    %251 = vector.extract_strided_slice %209 {offsets = [0, 16], sizes = [8, 8], strides = [1, 1]} : vector<8x96xf32> to vector<8x8xf32>
    %252 = vector.extract_strided_slice %209 {offsets = [0, 48], sizes = [8, 8], strides = [1, 1]} : vector<8x96xf32> to vector<8x8xf32>
    %253 = vector.extract_strided_slice %209 {offsets = [0, 80], sizes = [8, 8], strides = [1, 1]} : vector<8x96xf32> to vector<8x8xf32>
    %cst_116 = arith.constant dense<0.000000e+00> : vector<8x8xf32>
    %254 = tpu.matmul %251, %252, %cst_116 {dimension_numbers = #tpu.dot_dimension_numbers<[1], [1], [0], [0], [0, 0, 1, 0], [], []>} : vector<8x8xf32>, vector<8x8xf32>, vector<8x8xf32> -> vector<8x8xf32>
    %cst_117 = arith.constant 0.353553385 : f32
    %255 = vector.broadcast %cst_117 : f32 to vector<8x8xf32>
    %256 = arith.mulf %254, %255 : vector<8x8xf32>
    %cst_118 = arith.constant dense<0xFF800000> : vector<8xf32>
    %257 = vector.multi_reduction <maximumf>, %256, %cst_118 [1] : vector<8x8xf32> to vector<8xf32>
    %258 = vector.shape_cast %257 : vector<8xf32> to vector<8x1xf32>
    %259 = vector.broadcast %258 : vector<8x1xf32> to vector<8x8xf32>
    %260 = arith.subf %256, %259 : vector<8x8xf32>
    %261 = math.exp %260 : vector<8x8xf32>
    %cst_119 = arith.constant dense<0.000000e+00> : vector<8xf32>
    %262 = vector.multi_reduction <add>, %261, %cst_119 [1] : vector<8x8xf32> to vector<8xf32>
    %263 = vector.shape_cast %262 : vector<8xf32> to vector<8x1xf32>
    %264 = tpu.reciprocal %263 {approx = true} : vector<8x1xf32> -> vector<8x1xf32>
    %265 = vector.broadcast %264 : vector<8x1xf32> to vector<8x8xf32>
    %266 = arith.mulf %261, %265 : vector<8x8xf32>
    %cst_120 = arith.constant dense<0.000000e+00> : vector<8x8xf32>
    %267 = tpu.matmul %266, %253, %cst_120 {dimension_numbers = #tpu.dot_dimension_numbers<[1], [0], [0], [1], [0, 0, 1, 1], [], []>} : vector<8x8xf32>, vector<8x8xf32>, vector<8x8xf32> -> vector<8x8xf32>
    %268 = vector.extract_strided_slice %211 {offsets = [16, 0], sizes = [8, 32], strides = [1, 1]} : vector<32x32xf32> to vector<8x32xf32>
    %cst_121 = arith.constant dense<0.000000e+00> : vector<8x32xf32>
    %269 = tpu.matmul %267, %268, %cst_121 {dimension_numbers = #tpu.dot_dimension_numbers<[1], [0], [0], [1], [0, 0, 1, 1], [], []>} : vector<8x8xf32>, vector<8x32xf32>, vector<8x32xf32> -> vector<8x32xf32>
    %270 = arith.addf %250, %269 : vector<8x32xf32>
    %271 = vector.extract_strided_slice %209 {offsets = [0, 24], sizes = [8, 8], strides = [1, 1]} : vector<8x96xf32> to vector<8x8xf32>
    %272 = vector.extract_strided_slice %209 {offsets = [0, 56], sizes = [8, 8], strides = [1, 1]} : vector<8x96xf32> to vector<8x8xf32>
    %273 = vector.extract_strided_slice %209 {offsets = [0, 88], sizes = [8, 8], strides = [1, 1]} : vector<8x96xf32> to vector<8x8xf32>
    %cst_122 = arith.constant dense<0.000000e+00> : vector<8x8xf32>
    %274 = tpu.matmul %271, %272, %cst_122 {dimension_numbers = #tpu.dot_dimension_numbers<[1], [1], [0], [0], [0, 0, 1, 0], [], []>} : vector<8x8xf32>, vector<8x8xf32>, vector<8x8xf32> -> vector<8x8xf32>
    %cst_123 = arith.constant 0.353553385 : f32
    %275 = vector.broadcast %cst_123 : f32 to vector<8x8xf32>
    %276 = arith.mulf %274, %275 : vector<8x8xf32>
    %cst_124 = arith.constant dense<0xFF800000> : vector<8xf32>
    %277 = vector.multi_reduction <maximumf>, %276, %cst_124 [1] : vector<8x8xf32> to vector<8xf32>
    %278 = vector.shape_cast %277 : vector<8xf32> to vector<8x1xf32>
    %279 = vector.broadcast %278 : vector<8x1xf32> to vector<8x8xf32>
    %280 = arith.subf %276, %279 : vector<8x8xf32>
    %281 = math.exp %280 : vector<8x8xf32>
    %cst_125 = arith.constant dense<0.000000e+00> : vector<8xf32>
    %282 = vector.multi_reduction <add>, %281, %cst_125 [1] : vector<8x8xf32> to vector<8xf32>
    %283 = vector.shape_cast %282 : vector<8xf32> to vector<8x1xf32>
    %284 = tpu.reciprocal %283 {approx = true} : vector<8x1xf32> -> vector<8x1xf32>
    %285 = vector.broadcast %284 : vector<8x1xf32> to vector<8x8xf32>
    %286 = arith.mulf %281, %285 : vector<8x8xf32>
    %cst_126 = arith.constant dense<0.000000e+00> : vector<8x8xf32>
    %287 = tpu.matmul %286, %273, %cst_126 {dimension_numbers = #tpu.dot_dimension_numbers<[1], [0], [0], [1], [0, 0, 1, 1], [], []>} : vector<8x8xf32>, vector<8x8xf32>, vector<8x8xf32> -> vector<8x8xf32>
    %288 = vector.extract_strided_slice %211 {offsets = [24, 0], sizes = [8, 32], strides = [1, 1]} : vector<32x32xf32> to vector<8x32xf32>
    %cst_127 = arith.constant dense<0.000000e+00> : vector<8x32xf32>
    %289 = tpu.matmul %287, %288, %cst_127 {dimension_numbers = #tpu.dot_dimension_numbers<[1], [0], [0], [1], [0, 0, 1, 1], [], []>} : vector<8x8xf32>, vector<8x32xf32>, vector<8x32xf32> -> vector<8x32xf32>
    %290 = arith.addf %270, %289 : vector<8x32xf32>
    %291 = arith.addf %176, %290 : vector<8x32xf32>
    %c1_128 = arith.constant 1 : index
    %c0_129 = arith.constant 0 : index
    %c0_130 = arith.constant 0 : index
    %292 = vector.load %arg10[%c1_128, %c0_129, %c0_130] : memref<2x1x32xf32, #tpu.memory_space<vmem>>, vector<1x1x32xf32>
    %293 = vector.shape_cast %292 : vector<1x1x32xf32> to vector<1x32xf32>
    %294 = vector.broadcast %293 : vector<1x32xf32> to vector<8x32xf32>
    %295 = arith.addf %291, %294 : vector<8x32xf32>
    %c1_131 = arith.constant 1 : index
    %c0_132 = arith.constant 0 : index
    %c0_133 = arith.constant 0 : index
    %296 = vector.load %arg11[%c1_131, %c0_132, %c0_133] : memref<2x1x32xf32, #tpu.memory_space<vmem>>, vector<1x1x32xf32>
    %297 = vector.shape_cast %296 : vector<1x1x32xf32> to vector<1x32xf32>
    %c1_134 = arith.constant 1 : index
    %c0_135 = arith.constant 0 : index
    %c0_136 = arith.constant 0 : index
    %298 = vector.load %arg12[%c1_134, %c0_135, %c0_136] : memref<2x1x32xf32, #tpu.memory_space<vmem>>, vector<1x1x32xf32>
    %299 = vector.shape_cast %298 : vector<1x1x32xf32> to vector<1x32xf32>
    %cst_137 = arith.constant dense<0.000000e+00> : vector<8xf32>
    %300 = vector.multi_reduction <add>, %295, %cst_137 [1] : vector<8x32xf32> to vector<8xf32>
    %301 = vector.shape_cast %300 : vector<8xf32> to vector<8x1xf32>
    %cst_138 = arith.constant 3.200000e+01 : f32
    %302 = vector.broadcast %cst_138 : f32 to vector<8x1xf32>
    %303 = arith.divf %301, %302 : vector<8x1xf32>
    %304 = vector.broadcast %303 : vector<8x1xf32> to vector<8x32xf32>
    %305 = arith.subf %295, %304 : vector<8x32xf32>
    %306 = arith.mulf %305, %305 : vector<8x32xf32>
    %cst_139 = arith.constant dense<0.000000e+00> : vector<8xf32>
    %307 = vector.multi_reduction <add>, %306, %cst_139 [1] : vector<8x32xf32> to vector<8xf32>
    %308 = vector.shape_cast %307 : vector<8xf32> to vector<8x1xf32>
    %cst_140 = arith.constant 3.200000e+01 : f32
    %309 = vector.broadcast %cst_140 : f32 to vector<8x1xf32>
    %310 = arith.divf %308, %309 : vector<8x1xf32>
    %311 = vector.broadcast %303 : vector<8x1xf32> to vector<8x32xf32>
    %312 = arith.subf %295, %311 : vector<8x32xf32>
    %cst_141 = arith.constant 9.99999997E-7 : f32
    %313 = vector.broadcast %cst_141 : f32 to vector<8x1xf32>
    %314 = arith.addf %310, %313 : vector<8x1xf32>
    %315 = math.rsqrt %314 : vector<8x1xf32>
    %316 = vector.broadcast %315 : vector<8x1xf32> to vector<8x32xf32>
    %317 = arith.mulf %312, %316 : vector<8x32xf32>
    %318 = vector.broadcast %297 : vector<1x32xf32> to vector<8x32xf32>
    %319 = arith.mulf %317, %318 : vector<8x32xf32>
    %320 = vector.broadcast %299 : vector<1x32xf32> to vector<8x32xf32>
    %321 = arith.addf %319, %320 : vector<8x32xf32>
    %c1_142 = arith.constant 1 : index
    %c0_143 = arith.constant 0 : index
    %c0_144 = arith.constant 0 : index
    %322 = vector.load %arg13[%c1_142, %c0_143, %c0_144] : memref<2x32x128xf32, #tpu.memory_space<vmem>>, vector<1x32x128xf32>
    %323 = vector.shape_cast %322 : vector<1x32x128xf32> to vector<32x128xf32>
    %cst_145 = arith.constant dense<0.000000e+00> : vector<8x128xf32>
    %324 = tpu.matmul %321, %323, %cst_145 {dimension_numbers = #tpu.dot_dimension_numbers<[1], [0], [0], [1], [0, 0, 1, 1], [], []>} : vector<8x32xf32>, vector<32x128xf32>, vector<8x128xf32> -> vector<8x128xf32>
    %c1_146 = arith.constant 1 : index
    %c0_147 = arith.constant 0 : index
    %c0_148 = arith.constant 0 : index
    %325 = vector.load %arg14[%c1_146, %c0_147, %c0_148] : memref<2x1x128xf32, #tpu.memory_space<vmem>>, vector<1x1x128xf32>
    %326 = vector.shape_cast %325 : vector<1x1x128xf32> to vector<1x128xf32>
    %327 = vector.broadcast %326 : vector<1x128xf32> to vector<8x128xf32>
    %328 = arith.addf %324, %327 : vector<8x128xf32>
    %cst_149 = arith.constant 5.000000e-01 : f32
    %329 = vector.broadcast %cst_149 : f32 to vector<8x128xf32>
    %330 = arith.mulf %329, %328 : vector<8x128xf32>
    %cst_150 = arith.constant 0.707106769 : f32
    %331 = vector.broadcast %cst_150 : f32 to vector<8x128xf32>
    %332 = arith.mulf %328, %331 : vector<8x128xf32>
    %333 = math.erf %332 : vector<8x128xf32>
    %cst_151 = arith.constant 1.000000e+00 : f32
    %334 = vector.broadcast %cst_151 : f32 to vector<8x128xf32>
    %335 = arith.addf %334, %333 : vector<8x128xf32>
    %336 = arith.mulf %330, %335 : vector<8x128xf32>
    %c1_152 = arith.constant 1 : index
    %c0_153 = arith.constant 0 : index
    %c0_154 = arith.constant 0 : index
    %337 = vector.load %arg15[%c1_152, %c0_153, %c0_154] : memref<2x128x32xf32, #tpu.memory_space<vmem>>, vector<1x128x32xf32>
    %338 = vector.shape_cast %337 : vector<1x128x32xf32> to vector<128x32xf32>
    %cst_155 = arith.constant dense<0.000000e+00> : vector<8x32xf32>
    %339 = tpu.matmul %336, %338, %cst_155 {dimension_numbers = #tpu.dot_dimension_numbers<[1], [0], [0], [1], [0, 0, 1, 1], [], []>} : vector<8x128xf32>, vector<128x32xf32>, vector<8x32xf32> -> vector<8x32xf32>
    %c1_156 = arith.constant 1 : index
    %c0_157 = arith.constant 0 : index
    %c0_158 = arith.constant 0 : index
    %340 = vector.load %arg16[%c1_156, %c0_157, %c0_158] : memref<2x1x32xf32, #tpu.memory_space<vmem>>, vector<1x1x32xf32>
    %341 = vector.shape_cast %340 : vector<1x1x32xf32> to vector<1x32xf32>
    %342 = vector.broadcast %341 : vector<1x32xf32> to vector<8x32xf32>
    %343 = arith.addf %339, %342 : vector<8x32xf32>
    %344 = arith.addf %295, %343 : vector<8x32xf32>
    %c0_159 = arith.constant 0 : index
    %c0_160 = arith.constant 0 : index
    %345 = vector.load %arg17[%c0_159, %c0_160] : memref<1x32xf32, #tpu.memory_space<vmem>>, vector<1x32xf32>
    %c0_161 = arith.constant 0 : index
    %c0_162 = arith.constant 0 : index
    %346 = vector.load %arg18[%c0_161, %c0_162] : memref<1x32xf32, #tpu.memory_space<vmem>>, vector<1x32xf32>
    %cst_163 = arith.constant dense<0.000000e+00> : vector<8xf32>
    %347 = vector.multi_reduction <add>, %344, %cst_163 [1] : vector<8x32xf32> to vector<8xf32>
    %348 = vector.shape_cast %347 : vector<8xf32> to vector<8x1xf32>
    %cst_164 = arith.constant 3.200000e+01 : f32
    %349 = vector.broadcast %cst_164 : f32 to vector<8x1xf32>
    %350 = arith.divf %348, %349 : vector<8x1xf32>
    %351 = vector.broadcast %350 : vector<8x1xf32> to vector<8x32xf32>
    %352 = arith.subf %344, %351 : vector<8x32xf32>
    %353 = arith.mulf %352, %352 : vector<8x32xf32>
    %cst_165 = arith.constant dense<0.000000e+00> : vector<8xf32>
    %354 = vector.multi_reduction <add>, %353, %cst_165 [1] : vector<8x32xf32> to vector<8xf32>
    %355 = vector.shape_cast %354 : vector<8xf32> to vector<8x1xf32>
    %cst_166 = arith.constant 3.200000e+01 : f32
    %356 = vector.broadcast %cst_166 : f32 to vector<8x1xf32>
    %357 = arith.divf %355, %356 : vector<8x1xf32>
    %358 = vector.broadcast %350 : vector<8x1xf32> to vector<8x32xf32>
    %359 = arith.subf %344, %358 : vector<8x32xf32>
    %cst_167 = arith.constant 9.99999997E-7 : f32
    %360 = vector.broadcast %cst_167 : f32 to vector<8x1xf32>
    %361 = arith.addf %357, %360 : vector<8x1xf32>
    %362 = math.rsqrt %361 : vector<8x1xf32>
    %363 = vector.broadcast %362 : vector<8x1xf32> to vector<8x32xf32>
    %364 = arith.mulf %359, %363 : vector<8x32xf32>
    %365 = vector.broadcast %345 : vector<1x32xf32> to vector<8x32xf32>
    %366 = arith.mulf %364, %365 : vector<8x32xf32>
    %367 = vector.broadcast %346 : vector<1x32xf32> to vector<8x32xf32>
    %368 = arith.addf %366, %367 : vector<8x32xf32>
    %c0_168 = arith.constant 0 : index
    %c0_169 = arith.constant 0 : index
    %c0_170 = arith.constant 0 : index
    %369 = vector.load %arg19[%c0_168, %c0_169, %c0_170] : memref<1x8x32xf32, #tpu.memory_space<vmem>>, vector<1x8x32xf32>
    %370 = vector.shape_cast %369 : vector<1x8x32xf32> to vector<8x32xf32>
    %371 = vector.shape_cast %368 : vector<8x32xf32> to vector<1x8x32xf32>
    tpu.vector_store %arg19[%c0_168, %c0_169, %c0_170], %371 {strides = array<i32>} : memref<1x8x32xf32, #tpu.memory_space<vmem>>, vector<1x8x32xf32>,
    return
  }
  func.func @transform_0(%arg0: i32) -> (i32, i32, i32) {
    %c0_i32 = arith.constant 0 : i32
    %c0_i32_0 = arith.constant 0 : i32
    %c0_i32_1 = arith.constant 0 : i32
    return %arg0, %c0_i32, %c0_i32_0 : i32, i32, i32
  }
  func.func @transform_1(%arg0: i32) -> (i32, i32) {
    %c0_i32 = arith.constant 0 : i32
    %c0_i32_0 = arith.constant 0 : i32
    %c0_i32_1 = arith.constant 0 : i32
    return %c0_i32, %c0_i32_0 : i32, i32
  }
  func.func @transform_2(%arg0: i32) -> (i32, i32) {
    %c0_i32 = arith.constant 0 : i32
    %c0_i32_0 = arith.constant 0 : i32
    %c0_i32_1 = arith.constant 0 : i32
    return %c0_i32, %c0_i32_0 : i32, i32
  }
  func.func @transform_3(%arg0: i32) -> (i32, i32) {
    %c0_i32 = arith.constant 0 : i32
    %c0_i32_0 = arith.constant 0 : i32
    %c0_i32_1 = arith.constant 0 : i32
    return %c0_i32, %c0_i32_0 : i32, i32
  }
  func.func @transform_4(%arg0: i32) -> (i32, i32, i32) {
    %c0_i32 = arith.constant 0 : i32
    %c0_i32_0 = arith.constant 0 : i32
    %c0_i32_1 = arith.constant 0 : i32
    %c0_i32_2 = arith.constant 0 : i32
    return %c0_i32, %c0_i32_0, %c0_i32_1 : i32, i32, i32
  }
  func.func @transform_5(%arg0: i32) -> (i32, i32, i32) {
    %c0_i32 = arith.constant 0 : i32
    %c0_i32_0 = arith.constant 0 : i32
    %c0_i32_1 = arith.constant 0 : i32
    %c0_i32_2 = arith.constant 0 : i32
    return %c0_i32, %c0_i32_0, %c0_i32_1 : i32, i32, i32
  }
  func.func @transform_6(%arg0: i32) -> (i32, i32, i32) {
    %c0_i32 = arith.constant 0 : i32
    %c0_i32_0 = arith.constant 0 : i32
    %c0_i32_1 = arith.constant 0 : i32
    %c0_i32_2 = arith.constant 0 : i32
    return %c0_i32, %c0_i32_0, %c0_i32_1 : i32, i32, i32
  }
  func.func @transform_7(%arg0: i32) -> (i32, i32, i32) {
    %c0_i32 = arith.constant 0 : i32
    %c0_i32_0 = arith.constant 0 : i32
    %c0_i32_1 = arith.constant 0 : i32
    %c0_i32_2 = arith.constant 0 : i32
    return %c0_i32, %c0_i32_0, %c0_i32_1 : i32, i32, i32
  }
  func.func @transform_8(%arg0: i32) -> (i32, i32, i32) {
    %c0_i32 = arith.constant 0 : i32
    %c0_i32_0 = arith.constant 0 : i32
    %c0_i32_1 = arith.constant 0 : i32
    %c0_i32_2 = arith.constant 0 : i32
    return %c0_i32, %c0_i32_0, %c0_i32_1 : i32, i32, i32
  }
  func.func @transform_9(%arg0: i32) -> (i32, i32, i32) {
    %c0_i32 = arith.constant 0 : i32
    %c0_i32_0 = arith.constant 0 : i32
    %c0_i32_1 = arith.constant 0 : i32
    %c0_i32_2 = arith.constant 0 : i32
    return %c0_i32, %c0_i32_0, %c0_i32_1 : i32, i32, i32
  }
  func.func @transform_10(%arg0: i32) -> (i32, i32, i32) {
    %c0_i32 = arith.constant 0 : i32
    %c0_i32_0 = arith.constant 0 : i32
    %c0_i32_1 = arith.constant 0 : i32
    %c0_i32_2 = arith.constant 0 : i32
    return %c0_i32, %c0_i32_0, %c0_i32_1 : i32, i32, i32
  }
  func.func @transform_11(%arg0: i32) -> (i32, i32, i32) {
    %c0_i32 = arith.constant 0 : i32
    %c0_i32_0 = arith.constant 0 : i32
    %c0_i32_1 = arith.constant 0 : i32
    %c0_i32_2 = arith.constant 0 : i32
    return %c0_i32, %c0_i32_0, %c0_i32_1 : i32, i32, i32
  }
  func.func @transform_12(%arg0: i32) -> (i32, i32, i32) {
    %c0_i32 = arith.constant 0 : i32
    %c0_i32_0 = arith.constant 0 : i32
    %c0_i32_1 = arith.constant 0 : i32
    %c0_i32_2 = arith.constant 0 : i32
    return %c0_i32, %c0_i32_0, %c0_i32_1 : i32, i32, i32
  }
  func.func @transform_13(%arg0: i32) -> (i32, i32, i32) {
    %c0_i32 = arith.constant 0 : i32
    %c0_i32_0 = arith.constant 0 : i32
    %c0_i32_1 = arith.constant 0 : i32
    %c0_i32_2 = arith.constant 0 : i32
    return %c0_i32, %c0_i32_0, %c0_i32_1 : i32, i32, i32
  }
  func.func @transform_14(%arg0: i32) -> (i32, i32, i32) {
    %c0_i32 = arith.constant 0 : i32
    %c0_i32_0 = arith.constant 0 : i32
    %c0_i32_1 = arith.constant 0 : i32
    %c0_i32_2 = arith.constant 0 : i32
    return %c0_i32, %c0_i32_0, %c0_i32_1 : i32, i32, i32
  }
  func.func @transform_15(%arg0: i32) -> (i32, i32, i32) {
    %c0_i32 = arith.constant 0 : i32
    %c0_i32_0 = arith.constant 0 : i32
    %c0_i32_1 = arith.constant 0 : i32
    %c0_i32_2 = arith.constant 0 : i32
    return %c0_i32, %c0_i32_0, %c0_i32_1 : i32, i32, i32
  }
  func.func @transform_16(%arg0: i32) -> (i32, i32) {
    %c0_i32 = arith.constant 0 : i32
    %c0_i32_0 = arith.constant 0 : i32
    %c0_i32_1 = arith.constant 0 : i32
    return %c0_i32, %c0_i32_0 : i32, i32
  }
  func.func @transform_17(%arg0: i32) -> (i32, i32) {
    %c0_i32 = arith.constant 0 : i32
    %c0_i32_0 = arith.constant 0 : i32
    %c0_i32_1 = arith.constant 0 : i32
    return %c0_i32, %c0_i32_0 : i32, i32
  }
  func.func @transform_18(%arg0: i32) -> (i32, i32, i32) {
    %c0_i32 = arith.constant 0 : i32
    %c0_i32_0 = arith.constant 0 : i32
    %c0_i32_1 = arith.constant 0 : i32
    return %arg0, %c0_i32, %c0_i32_0 : i32, i32, i32
  }
}

</mosaic_0001>

<llo_original>
// kernel: visual_encoder_forward.1
$region0: #{visual_encoder_forward.1}
  #allocation0 [shape = 'u32[]', space=smem, size = 0x4, offset = 0x4, fixed_abs, tag = 'smem constant byte address 0x4 - core index']
  #allocation1 [shape = 'u32[144,128]{1,0:T(1,128)}', space=vmem, size = 0x12000, scoped, tag = 'internal scratch']
  %s0 = inlined_call_operand.vmem [shape: f32[2,8,384], index: 0, kind: input, shape index: {}]
  %s1 = inlined_call_operand.vmem [shape: f32[8,32], index: 1, kind: input, shape index: {}]
  %s2 = inlined_call_operand.vmem [shape: f32[384,32], index: 2, kind: input, shape index: {}]
  %s3 = inlined_call_operand.vmem [shape: f32[1,32], index: 3, kind: input, shape index: {}]
  %s4 = inlined_call_operand.vmem [shape: f32[2,1,32], index: 4, kind: input, shape index: {}]
  %s5 = inlined_call_operand.vmem [shape: f32[2,1,32], index: 5, kind: input, shape index: {}]
  %s6 = inlined_call_operand.vmem [shape: f32[2,32,96], index: 6, kind: input, shape index: {}]
  %s7 = inlined_call_operand.vmem [shape: f32[2,1,96], index: 7, kind: input, shape index: {}]
  %s8 = inlined_call_operand.vmem [shape: f32[2,32,32], index: 8, kind: input, shape index: {}]
  %s9 = inlined_call_operand.vmem [shape: f32[2,1,32], index: 9, kind: input, shape index: {}]
  %s10 = inlined_call_operand.vmem [shape: f32[2,1,32], index: 10, kind: input, shape index: {}]
  %s11 = inlined_call_operand.vmem [shape: f32[2,1,32], index: 11, kind: input, shape index: {}]
  %s12 = inlined_call_operand.vmem [shape: f32[2,32,128], index: 12, kind: input, shape index: {}]
  %s13 = inlined_call_operand.vmem [shape: f32[2,1,128], index: 13, kind: input, shape index: {}]
  %s14 = inlined_call_operand.vmem [shape: f32[2,128,32], index: 14, kind: input, shape index: {}]
  %s15 = inlined_call_operand.vmem [shape: f32[2,1,32], index: 15, kind: input, shape index: {}]
  %s16 = inlined_call_operand.vmem [shape: f32[1,32], index: 16, kind: input, shape index: {}]
  %s17 = inlined_call_operand.vmem [shape: f32[1,32], index: 17, kind: input, shape index: {}]
  %s18 = inlined_call_operand.hbm [shape: f32[2,8,32], index: 18, kind: output, shape index: {}]
  %s19 = sld [smem:[#allocation0]]
  $region105: #{visual_encoder_forward.1} parent=0
    _
  %s21 = ssub.s32 1, %s19
  %s22 = scalar_select 0, %s21, %s19
  $region1: #{visual_encoder_forward.1} parent=0
    #allocation2 [shape = 'u8[8192]{0}', space=vmem, size = 0x2000, scoped, tag = 'output window, operand 0']
    #allocation3 [shape = 's32[2]{0}', space=sflag, size = 0x8, scoped, tag = 'scoped memory for visual_encoder_forward.1']
    %23 = vsyncpa [#allocation3], 0
    %s24 = scalar_lea.sflag [#allocation3], 1
    %25 = vsyncpa %s24, 0
    loop: start=0, step=1, limit=4
    $region2: #{visual_encoder_forward.1} parent=1 // loop_pre_header
      _
    $region3: #{visual_encoder_forward.1} parent=1 // loop_header
      %s27 = sphi 0, %s31
      %p28 = scmp.ge.s32.totalorder %s27, 4
      %s37 = sphi 0, %s39
      %s40 = sphi 0, %s37
      %s41 = sphi 0, %s40
      %s57 = sphi 0, %s41
      %s61 = sphi 0, %s61
      %s63 = sphi 0, %s61
      %s64 = sphi 0, %s63
      %s78 = sphi 0, %s64
      %s82 = sphi 0, %s82
      %s84 = sphi 0, %s82
      %s85 = sphi 0, %s84
      %s99 = sphi 0, %s85
      %s103 = sphi 0, %s103
      %s105 = sphi 0, %s103
      %s106 = sphi 0, %s105
      %s120 = sphi 0, %s106
      %s124 = sphi 0, %s124
      %s126 = sphi 0, %s124
      %s127 = sphi 0, %s126
      %s141 = sphi 0, %s127
      %s145 = sphi 0, %s145
      %s147 = sphi 0, %s145
      %s148 = sphi 0, %s147
      %s162 = sphi 0, %s148
      %s166 = sphi 0, %s166
      %s168 = sphi 0, %s166
      %s169 = sphi 0, %s168
      %s183 = sphi 0, %s169
      %s187 = sphi 0, %s187
      %s189 = sphi 0, %s187
      %s190 = sphi 0, %s189
      %s204 = sphi 0, %s190
      %s208 = sphi 0, %s208
      %s210 = sphi 0, %s208
      %s211 = sphi 0, %s210
      %s225 = sphi 0, %s211
      %s229 = sphi 0, %s229
      %s231 = sphi 0, %s229
      %s232 = sphi 0, %s231
      %s246 = sphi 0, %s232
      %s250 = sphi 0, %s250
      %s252 = sphi 0, %s250
      %s253 = sphi 0, %s252
      %s267 = sphi 0, %s253
      %s271 = sphi 0, %s271
      %s273 = sphi 0, %s271
      %s274 = sphi 0, %s273
      %s288 = sphi 0, %s274
      %s292 = sphi 0, %s292
      %s294 = sphi 0, %s292
      %s295 = sphi 0, %s294
      %s309 = sphi 0, %s295
      %s313 = sphi 0, %s313
      %s315 = sphi 0, %s313
      %s316 = sphi 0, %s315
      %s330 = sphi 0, %s316
      %s334 = sphi 0, %s334
      %s336 = sphi 0, %s334
      %s337 = sphi 0, %s336
      %s351 = sphi 0, %s337
      %s355 = sphi 0, %s355
      %s357 = sphi 0, %s355
      %s358 = sphi 0, %s357
      %s372 = sphi 0, %s358
      %s376 = sphi 0, %s376
      %s378 = sphi 0, %s376
      %s379 = sphi 0, %s378
      %s393 = sphi 0, %s379
      %s397 = sphi 0, %s397
      %s399 = sphi 0, %s397
      %s400 = sphi 0, %s399
      %s414 = sphi 0, %s400
      %s420 = sphi 0, %s422
      %s423 = sphi 0, %s420
      %s424 = sphi 0, %s423
      %s440 = sphi 0, %s424
    $region4: #{visual_encoder_forward.1} parent=1 // loop_header_branch
      %30 = sbr.rel (%p28) target = $region8
    $region5: #{visual_encoder_forward.1} parent=1 // loop_body
      %s32 = ssub.s32 %s27, 1
      %s33 = ssub.s32 %s27, 2
      %s34 = sadd.s32 %s27, 1
      %s35 = ssub.s32 %s27, %s34
      %p36 = scmp.eq.s32.totalorder %s35, 0
      %s38 = sadd.s32 %s37, 1
      %s39 = scalar_select %p36, %s37, %s38
      %p42 = pneg %p36
      %p43 = scmp.eq.s32.totalorder %s27, 1
      %p44 = por %p42, %p43
      %p45 = scmp.ne.s32.totalorder %s37, %s40
      %p46 = scmp.eq.s32.totalorder %s27, 0
      %p47 = por %p45, %p46
      %p48 = scmp.ne.s32.totalorder %s37, %s40
      %p49 = scmp.eq.s32.totalorder %s32, 1
      %p50 = por %p48, %p49
      %p51 = scmp.ne.s32.totalorder %s40, %s41
      %p52 = scmp.eq.s32.totalorder %s32, 0
      %p53 = por %p51, %p52
      %p54 = scmp.ne.s32.totalorder %s40, %s41
      %p55 = scmp.eq.s32.totalorder %s33, 1
      %p56 = por %p54, %p55
      %p58 = scmp.ne.s32.totalorder %s41, %s57
      %p59 = scmp.eq.s32.totalorder %s33, 0
      %p60 = por %p58, %p59
      %s62 = sadd.s32 %s61, 1
      %p65 = scmp.eq.s32.totalorder %s27, 1
      %p66 = scmp.ne.s32.totalorder %s61, %s63
      %p67 = scmp.eq.s32.totalorder %s27, 0
      %p68 = por %p66, %p67
      %p69 = scmp.ne.s32.totalorder %s61, %s63
      %p70 = scmp.eq.s32.totalorder %s32, 1
      %p71 = por %p69, %p70
      %p72 = scmp.ne.s32.totalorder %s63, %s64
      %p73 = scmp.eq.s32.totalorder %s32, 0
      %p74 = por %p72, %p73
      %p75 = scmp.ne.s32.totalorder %s63, %s64
      %p76 = scmp.eq.s32.totalorder %s33, 1
      %p77 = por %p75, %p76
      %p79 = scmp.ne.s32.totalorder %s64, %s78
      %p80 = scmp.eq.s32.totalorder %s33, 0
      %p81 = por %p79, %p80
      %s83 = sadd.s32 %s82, 1
      %p86 = scmp.eq.s32.totalorder %s27, 1
      %p87 = scmp.ne.s32.totalorder %s82, %s84
      %p88 = scmp.eq.s32.totalorder %s27, 0
      %p89 = por %p87, %p88
      %p90 = scmp.ne.s32.totalorder %s82, %s84
      %p91 = scmp.eq.s32.totalorder %s32, 1
      %p92 = por %p90, %p91
      %p93 = scmp.ne.s32.totalorder %s84, %s85
      %p94 = scmp.eq.s32.totalorder %s32, 0
      %p95 = por %p93, %p94
      %p96 = scmp.ne.s32.totalorder %s84, %s85
      %p97 = scmp.eq.s32.totalorder %s33, 1
      %p98 = por %p96, %p97
      %p100 = scmp.ne.s32.totalorder %s85, %s99
      %p101 = scmp.eq.s32.totalorder %s33, 0
      %p102 = por %p100, %p101
      %s104 = sadd.s32 %s103, 1
      %p107 = scmp.eq.s32.totalorder %s27, 1
      %p108 = scmp.ne.s32.totalorder %s103, %s105
      %p109 = scmp.eq.s32.totalorder %s27, 0
      %p110 = por %p108, %p109
      %p111 = scmp.ne.s32.totalorder %s103, %s105
      %p112 = scmp.eq.s32.totalorder %s32, 1
      %p113 = por %p111, %p112
      %p114 = scmp.ne.s32.totalorder %s105, %s106
      %p115 = scmp.eq.s32.totalorder %s32, 0
      %p116 = por %p114, %p115
      %p117 = scmp.ne.s32.totalorder %s105, %s106
      %p118 = scmp.eq.s32.totalorder %s33, 1
      %p119 = por %p117, %p118
      %p121 = scmp.ne.s32.totalorder %s106, %s120
      %p122 = scmp.eq.s32.totalorder %s33, 0
      %p123 = por %p121, %p122
      %s125 = sadd.s32 %s124, 1
      %p128 = scmp.eq.s32.totalorder %s27, 1
      %p129 = scmp.ne.s32.totalorder %s124, %s126
      %p130 = scmp.eq.s32.totalorder %s27, 0
      %p131 = por %p129, %p130
      %p132 = scmp.ne.s32.totalorder %s124, %s126
      %p133 = scmp.eq.s32.totalorder %s32, 1
      %p134 = por %p132, %p133
      %p135 = scmp.ne.s32.totalorder %s126, %s127
      %p136 = scmp.eq.s32.totalorder %s32, 0
      %p137 = por %p135, %p136
      %p138 = scmp.ne.s32.totalorder %s126, %s127
      %p139 = scmp.eq.s32.totalorder %s33, 1
      %p140 = por %p138, %p139
      %p142 = scmp.ne.s32.totalorder %s127, %s141
      %p143 = scmp.eq.s32.totalorder %s33, 0
      %p144 = por %p142, %p143
      %s146 = sadd.s32 %s145, 1
      %p149 = scmp.eq.s32.totalorder %s27, 1
      %p150 = scmp.ne.s32.totalorder %s145, %s147
      %p151 = scmp.eq.s32.totalorder %s27, 0
      %p152 = por %p150, %p151
      %p153 = scmp.ne.s32.totalorder %s145, %s147
      %p154 = scmp.eq.s32.totalorder %s32, 1
      %p155 = por %p153, %p154
      %p156 = scmp.ne.s32.totalorder %s147, %s148
      %p157 = scmp.eq.s32.totalorder %s32, 0
      %p158 = por %p156, %p157
      %p159 = scmp.ne.s32.totalorder %s147, %s148
      %p160 = scmp.eq.s32.totalorder %s33, 1
      %p161 = por %p159, %p160
      %p163 = scmp.ne.s32.totalorder %s148, %s162
      %p164 = scmp.eq.s32.totalorder %s33, 0
      %p165 = por %p163, %p164
      %s167 = sadd.s32 %s166, 1
      %p170 = scmp.eq.s32.totalorder %s27, 1
      %p171 = scmp.ne.s32.totalorder %s166, %s168
      %p172 = scmp.eq.s32.totalorder %s27, 0
      %p173 = por %p171, %p172
      %p174 = scmp.ne.s32.totalorder %s166, %s168
      %p175 = scmp.eq.s32.totalorder %s32, 1
      %p176 = por %p174, %p175
      %p177 = scmp.ne.s32.totalorder %s168, %s169
      %p178 = scmp.eq.s32.totalorder %s32, 0
      %p179 = por %p177, %p178
      %p180 = scmp.ne.s32.totalorder %s168, %s169
      %p181 = scmp.eq.s32.totalorder %s33, 1
      %p182 = por %p180, %p181
      %p184 = scmp.ne.s32.totalorder %s169, %s183
      %p185 = scmp.eq.s32.totalorder %s33, 0
      %p186 = por %p184, %p185
      %s188 = sadd.s32 %s187, 1
      %p191 = scmp.eq.s32.totalorder %s27, 1
      %p192 = scmp.ne.s32.totalorder %s187, %s189
      %p193 = scmp.eq.s32.totalorder %s27, 0
      %p194 = por %p192, %p193
      %p195 = scmp.ne.s32.totalorder %s187, %s189
      %p196 = scmp.eq.s32.totalorder %s32, 1
      %p197 = por %p195, %p196
      %p198 = scmp.ne.s32.totalorder %s189, %s190
      %p199 = scmp.eq.s32.totalorder %s32, 0
      %p200 = por %p198, %p199
      %p201 = scmp.ne.s32.totalorder %s189, %s190
      %p202 = scmp.eq.s32.totalorder %s33, 1
      %p203 = por %p201, %p202
      %p205 = scmp.ne.s32.totalorder %s190, %s204
      %p206 = scmp.eq.s32.totalorder %s33, 0
      %p207 = por %p205, %p206
      %s209 = sadd.s32 %s208, 1
      %p212 = scmp.eq.s32.totalorder %s27, 1
      %p213 = scmp.ne.s32.totalorder %s208, %s210
      %p214 = scmp.eq.s32.totalorder %s27, 0
      %p215 = por %p213, %p214
      %p216 = scmp.ne.s32.totalorder %s208, %s210
      %p217 = scmp.eq.s32.totalorder %s32, 1
      %p218 = por %p216, %p217
      %p219 = scmp.ne.s32.totalorder %s210, %s211
      %p220 = scmp.eq.s32.totalorder %s32, 0
      %p221 = por %p219, %p220
      %p222 = scmp.ne.s32.totalorder %s210, %s211
      %p223 = scmp.eq.s32.totalorder %s33, 1
      %p224 = por %p222, %p223
      %p226 = scmp.ne.s32.totalorder %s211, %s225
      %p227 = scmp.eq.s32.totalorder %s33, 0
      %p228 = por %p226, %p227
      %s230 = sadd.s32 %s229, 1
      %p233 = scmp.eq.s32.totalorder %s27, 1
      %p234 = scmp.ne.s32.totalorder %s229, %s231
      %p235 = scmp.eq.s32.totalorder %s27, 0
      %p236 = por %p234, %p235
      %p237 = scmp.ne.s32.totalorder %s229, %s231
      %p238 = scmp.eq.s32.totalorder %s32, 1
      %p239 = por %p237, %p238
      %p240 = scmp.ne.s32.totalorder %s231, %s232
      %p241 = scmp.eq.s32.totalorder %s32, 0
      %p242 = por %p240, %p241
      %p243 = scmp.ne.s32.totalorder %s231, %s232
      %p244 = scmp.eq.s32.totalorder %s33, 1
      %p245 = por %p243, %p244
      %p247 = scmp.ne.s32.totalorder %s232, %s246
      %p248 = scmp.eq.s32.totalorder %s33, 0
      %p249 = por %p247, %p248
      %s251 = sadd.s32 %s250, 1
      %p254 = scmp.eq.s32.totalorder %s27, 1
      %p255 = scmp.ne.s32.totalorder %s250, %s252
      %p256 = scmp.eq.s32.totalorder %s27, 0
      %p257 = por %p255, %p256
      %p258 = scmp.ne.s32.totalorder %s250, %s252
      %p259 = scmp.eq.s32.totalorder %s32, 1
      %p260 = por %p258, %p259
      %p261 = scmp.ne.s32.totalorder %s252, %s253
      %p262 = scmp.eq.s32.totalorder %s32, 0
      %p263 = por %p261, %p262
      %p264 = scmp.ne.s32.totalorder %s252, %s253
      %p265 = scmp.eq.s32.totalorder %s33, 1
      %p266 = por %p264, %p265
      %p268 = scmp.ne.s32.totalorder %s253, %s267
      %p269 = scmp.eq.s32.totalorder %s33, 0
      %p270 = por %p268, %p269
      %s272 = sadd.s32 %s271, 1
      %p275 = scmp.eq.s32.totalorder %s27, 1
      %p276 = scmp.ne.s32.totalorder %s271, %s273
      %p277 = scmp.eq.s32.totalorder %s27, 0
      %p278 = por %p276, %p277
      %p279 = scmp.ne.s32.totalorder %s271, %s273
      %p280 = scmp.eq.s32.totalorder %s32, 1
      %p281 = por %p279, %p280
      %p282 = scmp.ne.s32.totalorder %s273, %s274
      %p283 = scmp.eq.s32.totalorder %s32, 0
      %p284 = por %p282, %p283
      %p285 = scmp.ne.s32.totalorder %s273, %s274
      %p286 = scmp.eq.s32.totalorder %s33, 1
      %p287 = por %p285, %p286
      %p289 = scmp.ne.s32.totalorder %s274, %s288
      %p290 = scmp.eq.s32.totalorder %s33, 0
      %p291 = por %p289, %p290
      %s293 = sadd.s32 %s292, 1
      %p296 = scmp.eq.s32.totalorder %s27, 1
      %p297 = scmp.ne.s32.totalorder %s292, %s294
      %p298 = scmp.eq.s32.totalorder %s27, 0
      %p299 = por %p297, %p298
      %p300 = scmp.ne.s32.totalorder %s292, %s294
      %p301 = scmp.eq.s32.totalorder %s32, 1
      %p302 = por %p300, %p301
      %p303 = scmp.ne.s32.totalorder %s294, %s295
      %p304 = scmp.eq.s32.totalorder %s32, 0
      %p305 = por %p303, %p304
      %p306 = scmp.ne.s32.totalorder %s294, %s295
      %p307 = scmp.eq.s32.totalorder %s33, 1
      %p308 = por %p306, %p307
      %p310 = scmp.ne.s32.totalorder %s295, %s309
      %p311 = scmp.eq.s32.totalorder %s33, 0
      %p312 = por %p310, %p311
      %s314 = sadd.s32 %s313, 1
      %p317 = scmp.eq.s32.totalorder %s27, 1
      %p318 = scmp.ne.s32.totalorder %s313, %s315
      %p319 = scmp.eq.s32.totalorder %s27, 0
      %p320 = por %p318, %p319
      %p321 = scmp.ne.s32.totalorder %s313, %s315
      %p322 = scmp.eq.s32.totalorder %s32, 1
      %p323 = por %p321, %p322
      %p324 = scmp.ne.s32.totalorder %s315, %s316
      %p325 = scmp.eq.s32.totalorder %s32, 0
      %p326 = por %p324, %p325
      %p327 = scmp.ne.s32.totalorder %s315, %s316
      %p328 = scmp.eq.s32.totalorder %s33, 1
      %p329 = por %p327, %p328
      %p331 = scmp.ne.s32.totalorder %s316, %s330
      %p332 = scmp.eq.s32.totalorder %s33, 0
      %p333 = por %p331, %p332
      %s335 = sadd.s32 %s334, 1
      %p338 = scmp.eq.s32.totalorder %s27, 1
      %p339 = scmp.ne.s32.totalorder %s334, %s336
      %p340 = scmp.eq.s32.totalorder %s27, 0
      %p341 = por %p339, %p340
      %p342 = scmp.ne.s32.totalorder %s334, %s336
      %p343 = scmp.eq.s32.totalorder %s32, 1
      %p344 = por %p342, %p343
      %p345 = scmp.ne.s32.totalorder %s336, %s337
      %p346 = scmp.eq.s32.totalorder %s32, 0
      %p347 = por %p345, %p346
      %p348 = scmp.ne.s32.totalorder %s336, %s337
      %p349 = scmp.eq.s32.totalorder %s33, 1
      %p350 = por %p348, %p349
      %p352 = scmp.ne.s32.totalorder %s337, %s351
      %p353 = scmp.eq.s32.totalorder %s33, 0
      %p354 = por %p352, %p353
      %s356 = sadd.s32 %s355, 1
      %p359 = scmp.eq.s32.totalorder %s27, 1
      %p360 = scmp.ne.s32.totalorder %s355, %s357
      %p361 = scmp.eq.s32.totalorder %s27, 0
      %p362 = por %p360, %p361
      %p363 = scmp.ne.s32.totalorder %s355, %s357
      %p364 = scmp.eq.s32.totalorder %s32, 1
      %p365 = por %p363, %p364
      %p366 = scmp.ne.s32.totalorder %s357, %s358
      %p367 = scmp.eq.s32.totalorder %s32, 0
      %p368 = por %p366, %p367
      %p369 = scmp.ne.s32.totalorder %s357, %s358
      %p370 = scmp.eq.s32.totalorder %s33, 1
      %p371 = por %p369, %p370
      %p373 = scmp.ne.s32.totalorder %s358, %s372
      %p374 = scmp.eq.s32.totalorder %s33, 0
      %p375 = por %p373, %p374
      %s377 = sadd.s32 %s376, 1
      %p380 = scmp.eq.s32.totalorder %s27, 1
      %p381 = scmp.ne.s32.totalorder %s376, %s378
      %p382 = scmp.eq.s32.totalorder %s27, 0
      %p383 = por %p381, %p382
      %p384 = scmp.ne.s32.totalorder %s376, %s378
      %p385 = scmp.eq.s32.totalorder %s32, 1
      %p386 = por %p384, %p385
      %p387 = scmp.ne.s32.totalorder %s378, %s379
      %p388 = scmp.eq.s32.totalorder %s32, 0
      %p389 = por %p387, %p388
      %p390 = scmp.ne.s32.totalorder %s378, %s379
      %p391 = scmp.eq.s32.totalorder %s33, 1
      %p392 = por %p390, %p391
      %p394 = scmp.ne.s32.totalorder %s379, %s393
      %p395 = scmp.eq.s32.totalorder %s33, 0
      %p396 = por %p394, %p395
      %s398 = sadd.s32 %s397, 1
      %p401 = scmp.eq.s32.totalorder %s27, 1
      %p402 = scmp.ne.s32.totalorder %s397, %s399
      %p403 = scmp.eq.s32.totalorder %s27, 0
      %p404 = por %p402, %p403
      %p405 = scmp.ne.s32.totalorder %s397, %s399
      %p406 = scmp.eq.s32.totalorder %s32, 1
      %p407 = por %p405, %p406
      %p408 = scmp.ne.s32.totalorder %s399, %s400
      %p409 = scmp.eq.s32.totalorder %s32, 0
      %p410 = por %p408, %p409
      %p411 = scmp.ne.s32.totalorder %s399, %s400
      %p412 = scmp.eq.s32.totalorder %s33, 1
      %p413 = por %p411, %p412
      %p415 = scmp.ne.s32.totalorder %s400, %s414
      %p416 = scmp.eq.s32.totalorder %s33, 0
      %p417 = por %p415, %p416
      %s418 = ssub.s32 %s27, %s34
      %p419 = scmp.eq.s32.totalorder %s418, 0
      %s421 = sadd.s32 %s420, 1
      %s422 = scalar_select %p419, %s420, %s421
      %p425 = pneg %p419
      %p426 = scmp.eq.s32.totalorder %s27, 1
      %p427 = por %p425, %p426
      %p428 = scmp.ne.s32.totalorder %s420, %s423
      %p429 = scmp.eq.s32.totalorder %s27, 0
      %p430 = por %p428, %p429
      %p431 = scmp.ne.s32.totalorder %s420, %s423
      %p432 = scmp.eq.s32.totalorder %s32, 1
      %p433 = por %p431, %p432
      %p434 = scmp.ne.s32.totalorder %s423, %s424
      %p435 = scmp.eq.s32.totalorder %s32, 0
      %p436 = por %p434, %p435
      %p437 = scmp.ne.s32.totalorder %s423, %s424
      %p438 = scmp.eq.s32.totalorder %s33, 1
      %p439 = por %p437, %p438
      %p441 = scmp.ne.s32.totalorder %s424, %s440
      %p442 = scmp.eq.s32.totalorder %s33, 0
      %p443 = por %p441, %p442
      %p444 = scmp.le.s32.totalorder 1, %s27
      %p445 = scmp.lt.s32.totalorder %s27, 3
      %p446 = pnand %p444, %p445
      %p447 = pneg %p446
      // Predicated region
      $region9: #{visual_encoder_forward.1} parent=5 // pred_check
        _
      $region10: #{visual_encoder_forward.1} parent=5 // pred_check_branch
        %449 = sbr.rel (%p446) target = $region12
      $region11: #{visual_encoder_forward.1} parent=5 // pred_region
        %s450 = ssub.s32 %s27, 1
        // Predicated region
        $region13: #{visual_encoder_forward.1} parent=11 // pred_check
          %p451 = pneg %p74
        $region14: #{visual_encoder_forward.1} parent=11 // pred_check_branch
          %453 = sbr.rel (%p451) target = $region16
        $region15: #{visual_encoder_forward.1} parent=11 // pred_region
          _
        $region16: #{visual_encoder_forward.1} parent=11 // pred_fallthru
          _
        // Predicated region
        $region17: #{visual_encoder_forward.1} parent=11 // pred_check
          %p454 = pneg %p95
        $region18: #{visual_encoder_forward.1} parent=11 // pred_check_branch
          %456 = sbr.rel (%p454) target = $region20
        $region19: #{visual_encoder_forward.1} parent=11 // pred_region
          _
        $region20: #{visual_encoder_forward.1} parent=11 // pred_fallthru
          _
        // Predicated region
        $region21: #{visual_encoder_forward.1} parent=11 // pred_check
          %p457 = pneg %p116
        $region22: #{visual_encoder_forward.1} parent=11 // pred_check_branch
          %459 = sbr.rel (%p457) target = $region24
        $region23: #{visual_encoder_forward.1} parent=11 // pred_region
          _
        $region24: #{visual_encoder_forward.1} parent=11 // pred_fallthru
          _
        // Predicated region
        $region25: #{visual_encoder_forward.1} parent=11 // pred_check
          %p460 = pneg %p137
        $region26: #{visual_encoder_forward.1} parent=11 // pred_check_branch
          %462 = sbr.rel (%p460) target = $region28
        $region27: #{visual_encoder_forward.1} parent=11 // pred_region
          _
        $region28: #{visual_encoder_forward.1} parent=11 // pred_fallthru
          _
        // Predicated region
        $region29: #{visual_encoder_forward.1} parent=11 // pred_check
          %p463 = pneg %p158
        $region30: #{visual_encoder_forward.1} parent=11 // pred_check_branch
          %465 = sbr.rel (%p463) target = $region32
        $region31: #{visual_encoder_forward.1} parent=11 // pred_region
          _
        $region32: #{visual_encoder_forward.1} parent=11 // pred_fallthru
          _
        // Predicated region
        $region33: #{visual_encoder_forward.1} parent=11 // pred_check
          %p466 = pneg %p179
        $region34: #{visual_encoder_forward.1} parent=11 // pred_check_branch
          %468 = sbr.rel (%p466) target = $region36
        $region35: #{visual_encoder_forward.1} parent=11 // pred_region
          _
        $region36: #{visual_encoder_forward.1} parent=11 // pred_fallthru
          _
        // Predicated region
        $region37: #{visual_encoder_forward.1} parent=11 // pred_check
          %p469 = pneg %p200
        $region38: #{visual_encoder_forward.1} parent=11 // pred_check_branch
          %471 = sbr.rel (%p469) target = $region40
        $region39: #{visual_encoder_forward.1} parent=11 // pred_region
          _
        $region40: #{visual_encoder_forward.1} parent=11 // pred_fallthru
          _
        // Predicated region
        $region41: #{visual_encoder_forward.1} parent=11 // pred_check
          %p472 = pneg %p221
        $region42: #{visual_encoder_forward.1} parent=11 // pred_check_branch
          %474 = sbr.rel (%p472) target = $region44
        $region43: #{visual_encoder_forward.1} parent=11 // pred_region
          _
        $region44: #{visual_encoder_forward.1} parent=11 // pred_fallthru
          _
        // Predicated region
        $region45: #{visual_encoder_forward.1} parent=11 // pred_check
          %p475 = pneg %p242
        $region46: #{visual_encoder_forward.1} parent=11 // pred_check_branch
          %477 = sbr.rel (%p475) target = $region48
        $region47: #{visual_encoder_forward.1} parent=11 // pred_region
          _
        $region48: #{visual_encoder_forward.1} parent=11 // pred_fallthru
          _
        // Predicated region
        $region49: #{visual_encoder_forward.1} parent=11 // pred_check
          %p478 = pneg %p263
        $region50: #{visual_encoder_forward.1} parent=11 // pred_check_branch
          %480 = sbr.rel (%p478) target = $region52
        $region51: #{visual_encoder_forward.1} parent=11 // pred_region
          _
        $region52: #{visual_encoder_forward.1} parent=11 // pred_fallthru
          _
        // Predicated region
        $region53: #{visual_encoder_forward.1} parent=11 // pred_check
          %p481 = pneg %p284
        $region54: #{visual_encoder_forward.1} parent=11 // pred_check_branch
          %483 = sbr.rel (%p481) target = $region56
        $region55: #{visual_encoder_forward.1} parent=11 // pred_region
          _
        $region56: #{visual_encoder_forward.1} parent=11 // pred_fallthru
          _
        // Predicated region
        $region57: #{visual_encoder_forward.1} parent=11 // pred_check
          %p484 = pneg %p305
        $region58: #{visual_encoder_forward.1} parent=11 // pred_check_branch
          %486 = sbr.rel (%p484) target = $region60
        $region59: #{visual_encoder_forward.1} parent=11 // pred_region
          _
        $region60: #{visual_encoder_forward.1} parent=11 // pred_fallthru
          _
        // Predicated region
        $region61: #{visual_encoder_forward.1} parent=11 // pred_check
          %p487 = pneg %p326
        $region62: #{visual_encoder_forward.1} parent=11 // pred_check_branch
          %489 = sbr.rel (%p487) target = $region64
        $region63: #{visual_encoder_forward.1} parent=11 // pred_region
          _
        $region64: #{visual_encoder_forward.1} parent=11 // pred_fallthru
          _
        // Predicated region
        $region65: #{visual_encoder_forward.1} parent=11 // pred_check
          %p490 = pneg %p347
        $region66: #{visual_encoder_forward.1} parent=11 // pred_check_branch
          %492 = sbr.rel (%p490) target = $region68
        $region67: #{visual_encoder_forward.1} parent=11 // pred_region
          _
        $region68: #{visual_encoder_forward.1} parent=11 // pred_fallthru
          _
        // Predicated region
        $region69: #{visual_encoder_forward.1} parent=11 // pred_check
          %p493 = pneg %p368
        $region70: #{visual_encoder_forward.1} parent=11 // pred_check_branch
          %495 = sbr.rel (%p493) target = $region72
        $region71: #{visual_encoder_forward.1} parent=11 // pred_region
          _
        $region72: #{visual_encoder_forward.1} parent=11 // pred_fallthru
          _
        // Predicated region
        $region73: #{visual_encoder_forward.1} parent=11 // pred_check
          %p496 = pneg %p389
        $region74: #{visual_encoder_forward.1} parent=11 // pred_check_branch
          %498 = sbr.rel (%p496) target = $region76
        $region75: #{visual_encoder_forward.1} parent=11 // pred_region
          _
        $region76: #{visual_encoder_forward.1} parent=11 // pred_fallthru
          _
        // Predicated region
        $region77: #{visual_encoder_forward.1} parent=11 // pred_check
          %p499 = pneg %p410
        $region78: #{visual_encoder_forward.1} parent=11 // pred_check_branch
          %501 = sbr.rel (%p499) target = $region80
        $region79: #{visual_encoder_forward.1} parent=11 // pred_region
          _
        $region80: #{visual_encoder_forward.1} parent=11 // pred_fallthru
          _
      $region12: #{visual_encoder_forward.1} parent=5 // pred_fallthru
        _
      %p502 = scmp.lt.s32.totalorder %s27, 2
      // Predicated region
      $region81: #{visual_encoder_forward.1} parent=5 // pred_check
        %p503 = pneg %p502
      $region82: #{visual_encoder_forward.1} parent=5 // pred_check_branch
        %505 = sbr.rel (%p503) target = $region84
      $region83: #{visual_encoder_forward.1} parent=5 // pred_region
        // Predicated region
        $region85: #{visual_encoder_forward.1} parent=83 // pred_check
          %p506 = pneg %p47
        $region86: #{visual_encoder_forward.1} parent=83 // pred_check_branch
          %508 = sbr.rel (%p506) target = $region88
        $region87: #{visual_encoder_forward.1} parent=83 // pred_region
          %p509 = scmp.lt.s32.totalorder %s27, 1
          %s510 = scalar_select %p509, %s27, 1
          %s511 = smul.addr %s510, 3
          %s512 = smul.addr %s511, 8
          %s513 = scalar_lea.vmem %s0, %s512
        $region88: #{visual_encoder_forward.1} parent=83 // pred_fallthru
          _
      $region84: #{visual_encoder_forward.1} parent=5 // pred_fallthru
        _
      %p514 = scmp.le.s32.totalorder 1, %s27
      %p515 = scmp.lt.s32.totalorder %s27, 3
      %p516 = pnand %p514, %p515
      %p517 = pneg %p516
      // Predicated region
      $region89: #{visual_encoder_forward.1} parent=5 // pred_check
        _
      $region90: #{visual_encoder_forward.1} parent=5 // pred_check_branch
        %519 = sbr.rel (%p516) target = $region92
      $region91: #{visual_encoder_forward.1} parent=5 // pred_region
        %s520 = ssub.s32 %s27, 1
        %p521 = scmp.lt.s32.totalorder %s32, 1
        %s522 = scalar_select %p521, %s32, 1
        %s523 = smul.addr %s522, 3
        %s524 = smul.addr %s523, 8
        %s525 = scalar_lea.vmem %s0, %s524
        %p526 = pneg %p53
        %p527 = pneg %p50
        %p528 = pneg %p74
        %p529 = pneg %p71
        %p530 = pneg %p95
        %p531 = pneg %p92
        %p532 = pneg %p116
        %p533 = pneg %p113
        %p534 = pneg %p137
        %p535 = pneg %p134
        %p536 = pneg %p158
        %p537 = pneg %p155
        %p538 = pneg %p179
        %p539 = pneg %p176
        %p540 = pneg %p200
        %p541 = pneg %p197
        %p542 = pneg %p221
        %p543 = pneg %p218
        %p544 = pneg %p242
        %p545 = pneg %p239
        %p546 = pneg %p263
        %p547 = pneg %p260
        %p548 = pneg %p284
        %p549 = pneg %p281
        %p550 = pneg %p305
        %p551 = pneg %p302
        %p552 = pneg %p326
        %p553 = pneg %p323
        %p554 = pneg %p347
        %p555 = pneg %p344
        %p556 = pneg %p368
        %p557 = pneg %p365
        %p558 = pneg %p389
        %p559 = pneg %p386
        %p560 = pneg %p410
        %p561 = pneg %p407
        %p562 = pneg %p436
        %p563 = pneg %p433
        %s564 = sand.u32 %s423, 1
        %s565 = scalar_lea.sflag [#allocation3], %s564
        %s566 = sand.u32 %s423, 1
        %s567 = smul.addr %s566, 8
        %s568 = scalar_lea.vmem [#allocation2], %s567
        %p569 = scmp.lt.s32.totalorder %s32, 1
        %s570 = scalar_select %p569, %s32, 1
        %s571 = smul.addr %s570, 3
        %s572 = smul.addr %s571, 8
        %s573 = scalar_lea.vmem %s0, %s572
        %v574 = vld [vmem:[%s573] sm:$0xff]
        %v575 = vld [vmem:[%s573 + $0x8] sm:$0xff]
        %v576 = vld [vmem:[%s573 + $0x10] sm:$0xff]
        %v577 = vld [vmem:[%s2] sm:$0xff]
        %v578 = vld [vmem:[%s2 + $0x8] sm:$0xff]
        %v579 = vld [vmem:[%s2 + $0x10] sm:$0xff]
        %v580 = vld [vmem:[%s2 + $0x18] sm:$0xff]
        %v581 = vld [vmem:[%s2 + $0x20] sm:$0xff]
        %v582 = vld [vmem:[%s2 + $0x28] sm:$0xff]
        %v583 = vld [vmem:[%s2 + $0x30] sm:$0xff]
        %v584 = vld [vmem:[%s2 + $0x38] sm:$0xff]
        %v585 = vld [vmem:[%s2 + $0x40] sm:$0xff]
        %v586 = vld [vmem:[%s2 + $0x48] sm:$0xff]
        %v587 = vld [vmem:[%s2 + $0x50] sm:$0xff]
        %v588 = vld [vmem:[%s2 + $0x58] sm:$0xff]
        %v589 = vld [vmem:[%s2 + $0x60] sm:$0xff]
        %v590 = vld [vmem:[%s2 + $0x68] sm:$0xff]
        %v591 = vld [vmem:[%s2 + $0x70] sm:$0xff]
        %v592 = vld [vmem:[%s2 + $0x78] sm:$0xff]
        %v593 = vld [vmem:[%s2 + $0x80] sm:$0xff]
        %v594 = vld [vmem:[%s2 + $0x88] sm:$0xff]
        %v595 = vld [vmem:[%s2 + $0x90] sm:$0xff]
        %v596 = vld [vmem:[%s2 + $0x98] sm:$0xff]
        %v597 = vld [vmem:[%s2 + $0xa0] sm:$0xff]
        %v598 = vld [vmem:[%s2 + $0xa8] sm:$0xff]
        %v599 = vld [vmem:[%s2 + $0xb0] sm:$0xff]
        %v600 = vld [vmem:[%s2 + $0xb8] sm:$0xff]
        %v601 = vld [vmem:[%s2 + $0xc0] sm:$0xff]
        %v602 = vld [vmem:[%s2 + $0xc8] sm:$0xff]
        %v603 = vld [vmem:[%s2 + $0xd0] sm:$0xff]
        %v604 = vld [vmem:[%s2 + $0xd8] sm:$0xff]
        %v605 = vld [vmem:[%s2 + $0xe0] sm:$0xff]
        %v606 = vld [vmem:[%s2 + $0xe8] sm:$0xff]
        %v607 = vld [vmem:[%s2 + $0xf0] sm:$0xff]
        %v608 = vld [vmem:[%s2 + $0xf8] sm:$0xff]
        %v609 = vld [vmem:[%s2 + $0x100] sm:$0xff]
        %v610 = vld [vmem:[%s2 + $0x108] sm:$0xff]
        %v611 = vld [vmem:[%s2 + $0x110] sm:$0xff]
        %v612 = vld [vmem:[%s2 + $0x118] sm:$0xff]
        %v613 = vld [vmem:[%s2 + $0x120] sm:$0xff]
        %v614 = vld [vmem:[%s2 + $0x128] sm:$0xff]
        %v615 = vld [vmem:[%s2 + $0x130] sm:$0xff]
        %v616 = vld [vmem:[%s2 + $0x138] sm:$0xff]
        %v617 = vld [vmem:[%s2 + $0x140] sm:$0xff]
        %v618 = vld [vmem:[%s2 + $0x148] sm:$0xff]
        %v619 = vld [vmem:[%s2 + $0x150] sm:$0xff]
        %v620 = vld [vmem:[%s2 + $0x158] sm:$0xff]
        %v621 = vld [vmem:[%s2 + $0x160] sm:$0xff]
        %v622 = vld [vmem:[%s2 + $0x168] sm:$0xff]
        %v623 = vld [vmem:[%s2 + $0x170] sm:$0xff]
        %v624 = vld [vmem:[%s2 + $0x178] sm:$0xff]
        %v625 = vld [vmem:[%s3] sm:$0x1]
        %v627 = vlaneseq
        %v628 = vshrl.u32 %v627, 7
        %v629 = vsub.s32 0, %v628
        %v630 = vrot.slane %v625, %v629
        %632 = vmatprep.subr.mxu0 0.0
        %633 = vmatpush1.msra.mxu0 %v577
        %634 = vmatprep.subr.mxu0 0.0
        %635 = vmatpush1.msra.mxu0 %v578
        %636 = vmatprep.subr.mxu0 0.0
        %637 = vmatpush1.msra.mxu0 %v579
        %638 = vmatprep.subr.mxu0 0.0
        %639 = vmatpush1.msra.mxu0 %v580
        %640 = vmatprep.subr.mxu0 0.0
        %641 = vmatpush1.msra.mxu0 %v581
        %642 = vmatprep.subr.mxu0 0.0
        %643 = vmatpush1.msra.mxu0 %v582
        %644 = vmatprep.subr.mxu0 0.0
        %645 = vmatpush1.msra.mxu0 %v583
        %646 = vmatprep.subr.mxu0 0.0
        %647 = vmatpush1.msra.mxu0 %v584
        %648 = vmatprep.subr.mxu0 0.0
        %649 = vmatpush1.msra.mxu0 %v585
        %650 = vmatprep.subr.mxu0 0.0
        %651 = vmatpush1.msra.mxu0 %v586
        %652 = vmatprep.subr.mxu0 0.0
        %653 = vmatpush1.msra.mxu0 %v587
        %654 = vmatprep.subr.mxu0 0.0
        %655 = vmatpush1.msra.mxu0 %v588
        %656 = vmatprep.subr.mxu0 0.0
        %657 = vmatpush1.msra.mxu0 %v589
        %658 = vmatprep.subr.mxu0 0.0
        %659 = vmatpush1.msra.mxu0 %v590
        %660 = vmatprep.subr.mxu0 0.0
        %661 = vmatpush1.msra.mxu0 %v591
        %662 = vmatprep.subr.mxu0 0.0
        %663 = vmatpush1.msra.mxu0 %v592
        %664 = vmatprep.subr.mxu0 0.0
        %665 = vmatpush1.msra.mxu0 %v593
        %666 = vmatprep.subr.mxu0 0.0
        %667 = vmatpush1.msra.mxu0 %v594
        %668 = vmatprep.subr.mxu0 0.0
        %669 = vmatpush1.msra.mxu0 %v595
        %670 = vmatprep.subr.mxu0 0.0
        %671 = vmatpush1.msra.mxu0 %v596
        %672 = vmatprep.subr.mxu0 0.0
        %673 = vmatpush1.msra.mxu0 %v597
        %674 = vmatprep.subr.mxu0 0.0
        %675 = vmatpush1.msra.mxu0 %v598
        %676 = vmatprep.subr.mxu0 0.0
        %677 = vmatpush1.msra.mxu0 %v599
        %678 = vmatprep.subr.mxu0 0.0
        %679 = vmatpush1.msra.mxu0 %v600
        %680 = vmatprep.subr.mxu0 0.0
        %681 = vmatpush1.msra.mxu0 %v601
        %682 = vmatprep.subr.mxu0 0.0
        %683 = vmatpush1.msra.mxu0 %v602
        %684 = vmatprep.subr.mxu0 0.0
        %685 = vmatpush1.msra.mxu0 %v603
        %686 = vmatprep.subr.mxu0 0.0
        %687 = vmatpush1.msra.mxu0 %v604
        %688 = vmatprep.subr.mxu0 0.0
        %689 = vmatpush1.msra.mxu0 %v605
        %690 = vmatprep.subr.mxu0 0.0
        %691 = vmatpush1.msra.mxu0 %v606
        %692 = vmatprep.subr.mxu0 0.0
        %693 = vmatpush1.msra.mxu0 %v607
        %694 = vmatprep.subr.mxu0 0.0
        %695 = vmatpush1.msra.mxu0 %v608
        %696 = vmatprep.mubr.f32.mxu0 %v575
        %697 = vmatmul.mubr.f32.gmra.mrb[0].mxu0 %v574
        %v698 = vpop.f32.mrb[0].mxu0
        %v699 = vadd.f32 %v630, %v698
        %v700 = vpop.f32.mrb[0].mxu0
        %701 = vdwg.mxu0
        %702 = vmatprep.subr.mxu0 0.0
        %703 = vmatpush1.msra.mxu0 %v609
        %704 = vmatprep.subr.mxu0 0.0
        %705 = vmatpush1.msra.mxu0 %v610
        %706 = vmatprep.subr.mxu0 0.0
        %707 = vmatpush1.msra.mxu0 %v611
        %708 = vmatprep.subr.mxu0 0.0
        %709 = vmatpush1.msra.mxu0 %v612
        %710 = vmatprep.subr.mxu0 0.0
        %711 = vmatpush1.msra.mxu0 %v613
        %712 = vmatprep.subr.mxu0 0.0
        %713 = vmatpush1.msra.mxu0 %v614
        %714 = vmatprep.subr.mxu0 0.0
        %715 = vmatpush1.msra.mxu0 %v615
        %716 = vmatprep.subr.mxu0 0.0
        %717 = vmatpush1.msra.mxu0 %v616
        %718 = vmatprep.subr.mxu0 0.0
        %719 = vmatpush1.msra.mxu0 %v617
        %720 = vmatprep.subr.mxu0 0.0
        %721 = vmatpush1.msra.mxu0 %v618
        %722 = vmatprep.subr.mxu0 0.0
        %723 = vmatpush1.msra.mxu0 %v619
        %724 = vmatprep.subr.mxu0 0.0
        %725 = vmatpush1.msra.mxu0 %v620
        %726 = vmatprep.subr.mxu0 0.0
        %727 = vmatpush1.msra.mxu0 %v621
        %728 = vmatprep.subr.mxu0 0.0
        %729 = vmatpush1.msra.mxu0 %v622
        %730 = vmatprep.subr.mxu0 0.0
        %731 = vmatpush1.msra.mxu0 %v623
        %732 = vmatprep.subr.mxu0 0.0
        %733 = vmatpush1.msra.mxu0 %v624
        %734 = vmatprep.subr.mxu0 0.0
        %735 = vmatpush1.msra.mxu0 0.0
        %736 = vmatprep.subr.mxu0 0.0
        %737 = vmatpush1.msra.mxu0 0.0
        %738 = vmatprep.subr.mxu0 0.0
        %739 = vmatpush1.msra.mxu0 0.0
        %740 = vmatprep.subr.mxu0 0.0
        %741 = vmatpush1.msra.mxu0 0.0
        %742 = vmatprep.subr.mxu0 0.0
        %743 = vmatpush1.msra.mxu0 0.0
        %744 = vmatprep.subr.mxu0 0.0
        %745 = vmatpush1.msra.mxu0 0.0
        %746 = vmatprep.subr.mxu0 0.0
        %747 = vmatpush1.msra.mxu0 0.0
        %748 = vmatprep.subr.mxu0 0.0
        %749 = vmatpush1.msra.mxu0 0.0
        %750 = vmatprep.subr.mxu0 0.0
        %751 = vmatpush1.msra.mxu0 0.0
        %752 = vmatprep.subr.mxu0 0.0
        %753 = vmatpush1.msra.mxu0 0.0
        %754 = vmatprep.subr.mxu0 0.0
        %755 = vmatpush1.msra.mxu0 0.0
        %756 = vmatprep.subr.mxu0 0.0
        %757 = vmatpush1.msra.mxu0 0.0
        %758 = vmatprep.subr.mxu0 0.0
        %759 = vmatpush1.msra.mxu0 0.0
        %760 = vmatprep.subr.mxu0 0.0
        %761 = vmatpush1.msra.mxu0 0.0
        %762 = vmatprep.subr.mxu0 0.0
        %763 = vmatpush1.msra.mxu0 0.0
        %764 = vmatprep.subr.mxu0 0.0
        %765 = vmatpush1.msra.mxu0 0.0
        %766 = vmatprep.mubr.f32.mxu0 0.0
        %767 = vmatmul.mubr.f32.gmra.mrb[0].mxu0 %v576
        %v768 = vpop.f32.mrb[0].mxu0
        %v769 = vadd.f32 %v699, %v768
        %v770 = vpop.f32.mrb[0].mxu0
        %771 = vdwg.mxu0
        %v772 = vld [vmem:[%s1] sm:$0xff]
        %v773 = vadd.f32 %v769, %v772
        %v774 = vld [vmem:[%s4] sm:$0x1]
        %v775 = vld [vmem:[%s5] sm:$0x1]
        %vm776 = vcmask 261120
        %v777 = vsel %vm776, %v773, 0.0
        %778 = vadd.xlane.f32.xlu0 %v777
        %v779 = vpop.xlane.xlu0 %778
        %v780 = vrcp.pop 32.0
        %v781 = vmul.f32 %v779, %v780
        %v782 = vsub.f32 %v773, %v781
        %v783 = vmul.f32 %v782, %v782
        %v784 = vsel %vm776, %v783, 0.0
        %785 = vadd.xlane.f32.xlu0 %v784
        %v786 = vpop.xlane.xlu0 %785
        %v787 = vmul.f32 %v786, %v780
        %v788 = vadd.f32 %v787, 1e-06
        %v789 = vrsqrt.pop %v788
        %v790 = vmul.f32 %v782, %v789
        %v792 = vlaneseq
        %v793 = vshrl.u32 %v792, 7
        %v794 = vsub.s32 0, %v793
        %v795 = vrot.slane %v774, %v794
        %v797 = vmul.f32 %v790, %v795
        %v799 = vlaneseq
        %v800 = vshrl.u32 %v799, 7
        %v801 = vsub.s32 0, %v800
        %v802 = vrot.slane %v775, %v801
        %v804 = vadd.f32 %v797, %v802
        %v805 = vld [vmem:[%s6] sm:$0xff]
        %v806 = vld [vmem:[%s6 + $0x8] sm:$0xff]
        %v807 = vld [vmem:[%s6 + $0x10] sm:$0xff]
        %v808 = vld [vmem:[%s6 + $0x18] sm:$0xff]
        %v809 = vld [vmem:[%s7] sm:$0x1]
        %v811 = vlaneseq
        %v812 = vshrl.u32 %v811, 7
        %v813 = vsub.s32 0, %v812
        %v814 = vrot.slane %v809, %v813
        %v817 = vsel %vm776, %v804, 0
        %819 = vmatprep.subr.mxu0 0.0
        %820 = vmatpush1.msra.mxu0 %v805
        %821 = vmatprep.subr.mxu0 0.0
        %822 = vmatpush1.msra.mxu0 %v806
        %823 = vmatprep.subr.mxu0 0.0
        %824 = vmatpush1.msra.mxu0 %v807
        %825 = vmatprep.subr.mxu0 0.0
        %826 = vmatpush1.msra.mxu0 %v808
        %827 = vmatprep.subr.mxu0 0.0
        %828 = vmatpush1.msra.mxu0 0.0
        %829 = vmatprep.subr.mxu0 0.0
        %830 = vmatpush1.msra.mxu0 0.0
        %831 = vmatprep.subr.mxu0 0.0
        %832 = vmatpush1.msra.mxu0 0.0
        %833 = vmatprep.subr.mxu0 0.0
        %834 = vmatpush1.msra.mxu0 0.0
        %835 = vmatprep.subr.mxu0 0.0
        %836 = vmatpush1.msra.mxu0 0.0
        %837 = vmatprep.subr.mxu0 0.0
        %838 = vmatpush1.msra.mxu0 0.0
        %839 = vmatprep.subr.mxu0 0.0
        %840 = vmatpush1.msra.mxu0 0.0
        %841 = vmatprep.subr.mxu0 0.0
        %842 = vmatpush1.msra.mxu0 0.0
        %843 = vmatprep.subr.mxu0 0.0
        %844 = vmatpush1.msra.mxu0 0.0
        %845 = vmatprep.subr.mxu0 0.0
        %846 = vmatpush1.msra.mxu0 0.0
        %847 = vmatprep.subr.mxu0 0.0
        %848 = vmatpush1.msra.mxu0 0.0
        %849 = vmatprep.subr.mxu0 0.0
        %850 = vmatpush1.msra.mxu0 0.0
        %851 = vmatprep.subr.mxu0 0.0
        %852 = vmatpush1.msra.mxu0 0.0
        %853 = vmatprep.subr.mxu0 0.0
        %854 = vmatpush1.msra.mxu0 0.0
        %855 = vmatprep.subr.mxu0 0.0
        %856 = vmatpush1.msra.mxu0 0.0
        %857 = vmatprep.subr.mxu0 0.0
        %858 = vmatpush1.msra.mxu0 0.0
        %859 = vmatprep.subr.mxu0 0.0
        %860 = vmatpush1.msra.mxu0 0.0
        %861 = vmatprep.subr.mxu0 0.0
        %862 = vmatpush1.msra.mxu0 0.0
        %863 = vmatprep.subr.mxu0 0.0
        %864 = vmatpush1.msra.mxu0 0.0
        %865 = vmatprep.subr.mxu0 0.0
        %866 = vmatpush1.msra.mxu0 0.0
        %867 = vmatprep.subr.mxu0 0.0
        %868 = vmatpush1.msra.mxu0 0.0
        %869 = vmatprep.subr.mxu0 0.0
        %870 = vmatpush1.msra.mxu0 0.0
        %871 = vmatprep.subr.mxu0 0.0
        %872 = vmatpush1.msra.mxu0 0.0
        %873 = vmatprep.subr.mxu0 0.0
        %874 = vmatpush1.msra.mxu0 0.0
        %875 = vmatprep.subr.mxu0 0.0
        %876 = vmatpush1.msra.mxu0 0.0
        %877 = vmatprep.subr.mxu0 0.0
        %878 = vmatpush1.msra.mxu0 0.0
        %879 = vmatprep.subr.mxu0 0.0
        %880 = vmatpush1.msra.mxu0 0.0
        %881 = vmatprep.subr.mxu0 0.0
        %882 = vmatpush1.msra.mxu0 0.0
        %883 = vmatprep.mubr.f32.mxu0 0.0
        %884 = vmatmul.mubr.f32.gmra.mrb[0].mxu0 %v817
        %v885 = vpop.f32.mrb[0].mxu0
        %v886 = vadd.f32 %v814, %v885
        %v887 = vpop.f32.mrb[0].mxu0
        %888 = vdwg.mxu0
        %v889 = vld [vmem:[%s8] sm:$0xff]
        %v890 = vld [vmem:[%s8 + $0x8] sm:$0xff]
        %v891 = vld [vmem:[%s8 + $0x10] sm:$0xff]
        %v892 = vld [vmem:[%s8 + $0x18] sm:$0xff]
        %894 = vrot.lane.b32.xlu0 %v886, 96
        %v895 = vpop.permute.xlu0 %894
        %vm896 = vcmask 64512
        %v897 = vsel %vm896, %v886, 0
        %v899 = vsel %vm896, %v895, 0
        %901 = vmatprep.subr.mxu0 0.0
        %902 = vmatpush1.xpose.msra.mxu0 %v899
        %903 = vmatprep.subr.mxu0 0.0
        %904 = vmatpush1.xpose.msra.mxu0 0.0
        %905 = vmatprep.subr.mxu0 0.0
        %906 = vmatpush1.xpose.msra.mxu0 0.0
        %907 = vmatprep.subr.mxu0 0.0
        %908 = vmatpush1.xpose.msra.mxu0 0.0
        %909 = vmatprep.subr.mxu0 0.0
        %910 = vmatpush1.xpose.msra.mxu0 0.0
        %911 = vmatprep.subr.mxu0 0.0
        %912 = vmatpush1.xpose.msra.mxu0 0.0
        %913 = vmatprep.subr.mxu0 0.0
        %914 = vmatpush1.xpose.msra.mxu0 0.0
        %915 = vmatprep.subr.mxu0 0.0
        %916 = vmatpush1.xpose.msra.mxu0 0.0
        %917 = vmatprep.subr.mxu0 0.0
        %918 = vmatpush1.xpose.msra.mxu0 0.0
        %919 = vmatprep.subr.mxu0 0.0
        %920 = vmatpush1.xpose.msra.mxu0 0.0
        %921 = vmatprep.subr.mxu0 0.0
        %922 = vmatpush1.xpose.msra.mxu0 0.0
        %923 = vmatprep.subr.mxu0 0.0
        %924 = vmatpush1.xpose.msra.mxu0 0.0
        %925 = vmatprep.subr.mxu0 0.0
        %926 = vmatpush1.xpose.msra.mxu0 0.0
        %927 = vmatprep.subr.mxu0 0.0
        %928 = vmatpush1.xpose.msra.mxu0 0.0
        %929 = vmatprep.subr.mxu0 0.0
        %930 = vmatpush1.xpose.msra.mxu0 0.0
        %931 = vmatprep.subr.mxu0 0.0
        %932 = vmatpush1.xpose.msra.mxu0 0.0
        %933 = vmatprep.subr.mxu0 0.0
        %934 = vmatpush1.xpose.msra.mxu0 0.0
        %935 = vmatprep.subr.mxu0 0.0
        %936 = vmatpush1.xpose.msra.mxu0 0.0
        %937 = vmatprep.subr.mxu0 0.0
        %938 = vmatpush1.xpose.msra.mxu0 0.0
        %939 = vmatprep.subr.mxu0 0.0
        %940 = vmatpush1.xpose.msra.mxu0 0.0
        %941 = vmatprep.subr.mxu0 0.0
        %942 = vmatpush1.xpose.msra.mxu0 0.0
        %943 = vmatprep.subr.mxu0 0.0
        %944 = vmatpush1.xpose.msra.mxu0 0.0
        %945 = vmatprep.subr.mxu0 0.0
        %946 = vmatpush1.xpose.msra.mxu0 0.0
        %947 = vmatprep.subr.mxu0 0.0
        %948 = vmatpush1.xpose.msra.mxu0 0.0
        %949 = vmatprep.subr.mxu0 0.0
        %950 = vmatpush1.xpose.msra.mxu0 0.0
        %951 = vmatprep.subr.mxu0 0.0
        %952 = vmatpush1.xpose.msra.mxu0 0.0
        %953 = vmatprep.subr.mxu0 0.0
        %954 = vmatpush1.xpose.msra.mxu0 0.0
        %955 = vmatprep.subr.mxu0 0.0
        %956 = vmatpush1.xpose.msra.mxu0 0.0
        %957 = vmatprep.subr.mxu0 0.0
        %958 = vmatpush1.xpose.msra.mxu0 0.0
        %959 = vmatprep.subr.mxu0 0.0
        %960 = vmatpush1.xpose.msra.mxu0 0.0
        %961 = vmatprep.subr.mxu0 0.0
        %962 = vmatpush1.xpose.msra.mxu0 0.0
        %963 = vmatprep.subr.mxu0 0.0
        %964 = vmatpush1.xpose.msra.mxu0 0.0
        %965 = vmatprep.mubr.f32.mxu0 0.0
        %966 = vmatmul.mubr.f32.gmra.mrb[0].mxu0 %v897
        %v967 = vpop.f32.mrb[0].mxu0
        %v968 = vadd.f32 0.0, %v967
        %v969 = vpop.f32.mrb[0].mxu0
        %970 = vdwg.mxu0
        %v971 = vmul.f32 %v968, 0.35355338
        %v972 = vsel %vm896, %v971, -inf
        %973 = vmax.xlane.f32.xlu0 %v972
        %v974 = vpop.xlane.xlu0 %973
        %v975 = vsub.f32 %v971, %v974
        %v976 = vmul.f32 %v975, 1.442695
        %v977 = vpow.pop %v976
        %v978 = vsel %vm896, %v977, 0.0
        %979 = vadd.xlane.f32.xlu0 %v978
        %v980 = vpop.xlane.xlu0 %979
        %v981 = vrcp.pop %v980
        %v982 = vmul.f32 %v977, %v981
        %983 = vrot.lane.b32.xlu0 %v886, 64
        %v984 = vpop.permute.xlu0 %983
        %v987 = vsel %vm896, %v982, 0
        %989 = vmatprep.subr.mxu0 0.0
        %990 = vmatpush1.msra.mxu0 %v984
        %991 = vmatprep.subr.mxu0 0.0
        %992 = vmatpush1.msra.mxu0 0.0
        %993 = vmatprep.subr.mxu0 0.0
        %994 = vmatpush1.msra.mxu0 0.0
        %995 = vmatprep.subr.mxu0 0.0
        %996 = vmatpush1.msra.mxu0 0.0
        %997 = vmatprep.subr.mxu0 0.0
        %998 = vmatpush1.msra.mxu0 0.0
        %999 = vmatprep.subr.mxu0 0.0
        %1000 = vmatpush1.msra.mxu0 0.0
        %1001 = vmatprep.subr.mxu0 0.0
        %1002 = vmatpush1.msra.mxu0 0.0
        %1003 = vmatprep.subr.mxu0 0.0
        %1004 = vmatpush1.msra.mxu0 0.0
        %1005 = vmatprep.subr.mxu0 0.0
        %1006 = vmatpush1.msra.mxu0 0.0
        %1007 = vmatprep.subr.mxu0 0.0
        %1008 = vmatpush1.msra.mxu0 0.0
        %1009 = vmatprep.subr.mxu0 0.0
        %1010 = vmatpush1.msra.mxu0 0.0
        %1011 = vmatprep.subr.mxu0 0.0
        %1012 = vmatpush1.msra.mxu0 0.0
        %1013 = vmatprep.subr.mxu0 0.0
        %1014 = vmatpush1.msra.mxu0 0.0
        %1015 = vmatprep.subr.mxu0 0.0
        %1016 = vmatpush1.msra.mxu0 0.0
        %1017 = vmatprep.subr.mxu0 0.0
        %1018 = vmatpush1.msra.mxu0 0.0
        %1019 = vmatprep.subr.mxu0 0.0
        %1020 = vmatpush1.msra.mxu0 0.0
        %1021 = vmatprep.subr.mxu0 0.0
        %1022 = vmatpush1.msra.mxu0 0.0
        %1023 = vmatprep.subr.mxu0 0.0
        %1024 = vmatpush1.msra.mxu0 0.0
        %1025 = vmatprep.subr.mxu0 0.0
        %1026 = vmatpush1.msra.mxu0 0.0
        %1027 = vmatprep.subr.mxu0 0.0
        %1028 = vmatpush1.msra.mxu0 0.0
        %1029 = vmatprep.subr.mxu0 0.0
        %1030 = vmatpush1.msra.mxu0 0.0
        %1031 = vmatprep.subr.mxu0 0.0
        %1032 = vmatpush1.msra.mxu0 0.0
        %1033 = vmatprep.subr.mxu0 0.0
        %1034 = vmatpush1.msra.mxu0 0.0
        %1035 = vmatprep.subr.mxu0 0.0
        %1036 = vmatpush1.msra.mxu0 0.0
        %1037 = vmatprep.subr.mxu0 0.0
        %1038 = vmatpush1.msra.mxu0 0.0
        %1039 = vmatprep.subr.mxu0 0.0
        %1040 = vmatpush1.msra.mxu0 0.0
        %1041 = vmatprep.subr.mxu0 0.0
        %1042 = vmatpush1.msra.mxu0 0.0
        %1043 = vmatprep.subr.mxu0 0.0
        %1044 = vmatpush1.msra.mxu0 0.0
        %1045 = vmatprep.subr.mxu0 0.0
        %1046 = vmatpush1.msra.mxu0 0.0
        %1047 = vmatprep.subr.mxu0 0.0
        %1048 = vmatpush1.msra.mxu0 0.0
        %1049 = vmatprep.subr.mxu0 0.0
        %1050 = vmatpush1.msra.mxu0 0.0
        %1051 = vmatprep.subr.mxu0 0.0
        %1052 = vmatpush1.msra.mxu0 0.0
        %1053 = vmatprep.mubr.f32.mxu0 0.0
        %1054 = vmatmul.mubr.f32.gmra.mrb[0].mxu0 %v987
        %v1055 = vpop.f32.mrb[0].mxu0
        %v1056 = vadd.f32 0.0, %v1055
        %v1057 = vpop.f32.mrb[0].mxu0
        %1058 = vdwg.mxu0
        %1059 = vrot.lane.b32.xlu0 %v886, 120
        %v1060 = vpop.permute.xlu0 %1059
        %1061 = vrot.lane.b32.xlu0 %v886, 88
        %v1062 = vpop.permute.xlu0 %1061
        %v1063 = vsel %vm896, %v1060, 0
        %v1065 = vsel %vm896, %v1062, 0
        %1067 = vmatprep.subr.mxu0 0.0
        %1068 = vmatpush1.xpose.msra.mxu0 %v1065
        %1069 = vmatprep.subr.mxu0 0.0
        %1070 = vmatpush1.xpose.msra.mxu0 0.0
        %1071 = vmatprep.subr.mxu0 0.0
        %1072 = vmatpush1.xpose.msra.mxu0 0.0
        %1073 = vmatprep.subr.mxu0 0.0
        %1074 = vmatpush1.xpose.msra.mxu0 0.0
        %1075 = vmatprep.subr.mxu0 0.0
        %1076 = vmatpush1.xpose.msra.mxu0 0.0
        %1077 = vmatprep.subr.mxu0 0.0
        %1078 = vmatpush1.xpose.msra.mxu0 0.0
        %1079 = vmatprep.subr.mxu0 0.0
        %1080 = vmatpush1.xpose.msra.mxu0 0.0
        %1081 = vmatprep.subr.mxu0 0.0
        %1082 = vmatpush1.xpose.msra.mxu0 0.0
        %1083 = vmatprep.subr.mxu0 0.0
        %1084 = vmatpush1.xpose.msra.mxu0 0.0
        %1085 = vmatprep.subr.mxu0 0.0
        %1086 = vmatpush1.xpose.msra.mxu0 0.0
        %1087 = vmatprep.subr.mxu0 0.0
        %1088 = vmatpush1.xpose.msra.mxu0 0.0
        %1089 = vmatprep.subr.mxu0 0.0
        %1090 = vmatpush1.xpose.msra.mxu0 0.0
        %1091 = vmatprep.subr.mxu0 0.0
        %1092 = vmatpush1.xpose.msra.mxu0 0.0
        %1093 = vmatprep.subr.mxu0 0.0
        %1094 = vmatpush1.xpose.msra.mxu0 0.0
        %1095 = vmatprep.subr.mxu0 0.0
        %1096 = vmatpush1.xpose.msra.mxu0 0.0
        %1097 = vmatprep.subr.mxu0 0.0
        %1098 = vmatpush1.xpose.msra.mxu0 0.0
        %1099 = vmatprep.subr.mxu0 0.0
        %1100 = vmatpush1.xpose.msra.mxu0 0.0
        %1101 = vmatprep.subr.mxu0 0.0
        %1102 = vmatpush1.xpose.msra.mxu0 0.0
        %1103 = vmatprep.subr.mxu0 0.0
        %1104 = vmatpush1.xpose.msra.mxu0 0.0
        %1105 = vmatprep.subr.mxu0 0.0
        %1106 = vmatpush1.xpose.msra.mxu0 0.0
        %1107 = vmatprep.subr.mxu0 0.0
        %1108 = vmatpush1.xpose.msra.mxu0 0.0
        %1109 = vmatprep.subr.mxu0 0.0
        %1110 = vmatpush1.xpose.msra.mxu0 0.0
        %1111 = vmatprep.subr.mxu0 0.0
        %1112 = vmatpush1.xpose.msra.mxu0 0.0
        %1113 = vmatprep.subr.mxu0 0.0
        %1114 = vmatpush1.xpose.msra.mxu0 0.0
        %1115 = vmatprep.subr.mxu0 0.0
        %1116 = vmatpush1.xpose.msra.mxu0 0.0
        %1117 = vmatprep.subr.mxu0 0.0
        %1118 = vmatpush1.xpose.msra.mxu0 0.0
        %1119 = vmatprep.subr.mxu0 0.0
        %1120 = vmatpush1.xpose.msra.mxu0 0.0
        %1121 = vmatprep.subr.mxu0 0.0
        %1122 = vmatpush1.xpose.msra.mxu0 0.0
        %1123 = vmatprep.subr.mxu0 0.0
        %1124 = vmatpush1.xpose.msra.mxu0 0.0
        %1125 = vmatprep.subr.mxu0 0.0
        %1126 = vmatpush1.xpose.msra.mxu0 0.0
        %1127 = vmatprep.subr.mxu0 0.0
        %1128 = vmatpush1.xpose.msra.mxu0 0.0
        %1129 = vmatprep.subr.mxu0 0.0
        %1130 = vmatpush1.xpose.msra.mxu0 0.0
        %1131 = vmatprep.mubr.f32.mxu0 0.0
        %1132 = vmatmul.mubr.f32.gmra.mrb[0].mxu0 %v1063
        %v1133 = vpop.f32.mrb[0].mxu0
        %v1134 = vadd.f32 0.0, %v1133
        %v1135 = vpop.f32.mrb[0].mxu0
        %1136 = vdwg.mxu0
        %v1137 = vmul.f32 %v1134, 0.35355338
        %v1138 = vsel %vm896, %v1137, -inf
        %1139 = vmax.xlane.f32.xlu0 %v1138
        %v1140 = vpop.xlane.xlu0 %1139
        %v1141 = vsub.f32 %v1137, %v1140
        %v1142 = vmul.f32 %v1141, 1.442695
        %v1143 = vpow.pop %v1142
        %v1144 = vsel %vm896, %v1143, 0.0
        %1145 = vadd.xlane.f32.xlu0 %v1144
        %v1146 = vpop.xlane.xlu0 %1145
        %v1147 = vrcp.pop %v1146
        %v1148 = vmul.f32 %v1143, %v1147
        %1149 = vrot.lane.b32.xlu0 %v886, 56
        %v1150 = vpop.permute.xlu0 %1149
        %v1153 = vsel %vm896, %v1148, 0
        %1155 = vmatprep.subr.mxu0 0.0
        %1156 = vmatpush1.msra.mxu0 %v1150
        %1157 = vmatprep.subr.mxu0 0.0
        %1158 = vmatpush1.msra.mxu0 0.0
        %1159 = vmatprep.subr.mxu0 0.0
        %1160 = vmatpush1.msra.mxu0 0.0
        %1161 = vmatprep.subr.mxu0 0.0
        %1162 = vmatpush1.msra.mxu0 0.0
        %1163 = vmatprep.subr.mxu0 0.0
        %1164 = vmatpush1.msra.mxu0 0.0
        %1165 = vmatprep.subr.mxu0 0.0
        %1166 = vmatpush1.msra.mxu0 0.0
        %1167 = vmatprep.subr.mxu0 0.0
        %1168 = vmatpush1.msra.mxu0 0.0
        %1169 = vmatprep.subr.mxu0 0.0
        %1170 = vmatpush1.msra.mxu0 0.0
        %1171 = vmatprep.subr.mxu0 0.0
        %1172 = vmatpush1.msra.mxu0 0.0
        %1173 = vmatprep.subr.mxu0 0.0
        %1174 = vmatpush1.msra.mxu0 0.0
        %1175 = vmatprep.subr.mxu0 0.0
        %1176 = vmatpush1.msra.mxu0 0.0
        %1177 = vmatprep.subr.mxu0 0.0
        %1178 = vmatpush1.msra.mxu0 0.0
        %1179 = vmatprep.subr.mxu0 0.0
        %1180 = vmatpush1.msra.mxu0 0.0
        %1181 = vmatprep.subr.mxu0 0.0
        %1182 = vmatpush1.msra.mxu0 0.0
        %1183 = vmatprep.subr.mxu0 0.0
        %1184 = vmatpush1.msra.mxu0 0.0
        %1185 = vmatprep.subr.mxu0 0.0
        %1186 = vmatpush1.msra.mxu0 0.0
        %1187 = vmatprep.subr.mxu0 0.0
        %1188 = vmatpush1.msra.mxu0 0.0
        %1189 = vmatprep.subr.mxu0 0.0
        %1190 = vmatpush1.msra.mxu0 0.0
        %1191 = vmatprep.subr.mxu0 0.0
        %1192 = vmatpush1.msra.mxu0 0.0
        %1193 = vmatprep.subr.mxu0 0.0
        %1194 = vmatpush1.msra.mxu0 0.0
        %1195 = vmatprep.subr.mxu0 0.0
        %1196 = vmatpush1.msra.mxu0 0.0
        %1197 = vmatprep.subr.mxu0 0.0
        %1198 = vmatpush1.msra.mxu0 0.0
        %1199 = vmatprep.subr.mxu0 0.0
        %1200 = vmatpush1.msra.mxu0 0.0
        %1201 = vmatprep.subr.mxu0 0.0
        %1202 = vmatpush1.msra.mxu0 0.0
        %1203 = vmatprep.subr.mxu0 0.0
        %1204 = vmatpush1.msra.mxu0 0.0
        %1205 = vmatprep.subr.mxu0 0.0
        %1206 = vmatpush1.msra.mxu0 0.0
        %1207 = vmatprep.subr.mxu0 0.0
        %1208 = vmatpush1.msra.mxu0 0.0
        %1209 = vmatprep.subr.mxu0 0.0
        %1210 = vmatpush1.msra.mxu0 0.0
        %1211 = vmatprep.subr.mxu0 0.0
        %1212 = vmatpush1.msra.mxu0 0.0
        %1213 = vmatprep.subr.mxu0 0.0
        %1214 = vmatpush1.msra.mxu0 0.0
        %1215 = vmatprep.subr.mxu0 0.0
        %1216 = vmatpush1.msra.mxu0 0.0
        %1217 = vmatprep.subr.mxu0 0.0
        %1218 = vmatpush1.msra.mxu0 0.0
        %1219 = vmatprep.mubr.f32.mxu0 0.0
        %1220 = vmatmul.mubr.f32.gmra.mrb[0].mxu0 %v1153
        %v1221 = vpop.f32.mrb[0].mxu0
        %v1222 = vadd.f32 0.0, %v1221
        %v1223 = vpop.f32.mrb[0].mxu0
        %1224 = vdwg.mxu0
        %v1226 = vsel %vm896, %v1222, 0
        %1228 = vmatprep.subr.mxu0 0.0
        %1229 = vmatpush1.msra.mxu0 %v890
        %1230 = vmatprep.subr.mxu0 0.0
        %1231 = vmatpush1.msra.mxu0 0.0
        %1232 = vmatprep.subr.mxu0 0.0
        %1233 = vmatpush1.msra.mxu0 0.0
        %1234 = vmatprep.subr.mxu0 0.0
        %1235 = vmatpush1.msra.mxu0 0.0
        %1236 = vmatprep.subr.mxu0 0.0
        %1237 = vmatpush1.msra.mxu0 0.0
        %1238 = vmatprep.subr.mxu0 0.0
        %1239 = vmatpush1.msra.mxu0 0.0
        %1240 = vmatprep.subr.mxu0 0.0
        %1241 = vmatpush1.msra.mxu0 0.0
        %1242 = vmatprep.subr.mxu0 0.0
        %1243 = vmatpush1.msra.mxu0 0.0
        %1244 = vmatprep.subr.mxu0 0.0
        %1245 = vmatpush1.msra.mxu0 0.0
        %1246 = vmatprep.subr.mxu0 0.0
        %1247 = vmatpush1.msra.mxu0 0.0
        %1248 = vmatprep.subr.mxu0 0.0
        %1249 = vmatpush1.msra.mxu0 0.0
        %1250 = vmatprep.subr.mxu0 0.0
        %1251 = vmatpush1.msra.mxu0 0.0
        %1252 = vmatprep.subr.mxu0 0.0
        %1253 = vmatpush1.msra.mxu0 0.0
        %1254 = vmatprep.subr.mxu0 0.0
        %1255 = vmatpush1.msra.mxu0 0.0
        %1256 = vmatprep.subr.mxu0 0.0
        %1257 = vmatpush1.msra.mxu0 0.0
        %1258 = vmatprep.subr.mxu0 0.0
        %1259 = vmatpush1.msra.mxu0 0.0
        %1260 = vmatprep.subr.mxu0 0.0
        %1261 = vmatpush1.msra.mxu0 0.0
        %1262 = vmatprep.subr.mxu0 0.0
        %1263 = vmatpush1.msra.mxu0 0.0
        %1264 = vmatprep.subr.mxu0 0.0
        %1265 = vmatpush1.msra.mxu0 0.0
        %1266 = vmatprep.subr.mxu0 0.0
        %1267 = vmatpush1.msra.mxu0 0.0
        %1268 = vmatprep.subr.mxu0 0.0
        %1269 = vmatpush1.msra.mxu0 0.0
        %1270 = vmatprep.subr.mxu0 0.0
        %1271 = vmatpush1.msra.mxu0 0.0
        %1272 = vmatprep.subr.mxu0 0.0
        %1273 = vmatpush1.msra.mxu0 0.0
        %1274 = vmatprep.subr.mxu0 0.0
        %1275 = vmatpush1.msra.mxu0 0.0
        %1276 = vmatprep.subr.mxu0 0.0
        %1277 = vmatpush1.msra.mxu0 0.0
        %1278 = vmatprep.subr.mxu0 0.0
        %1279 = vmatpush1.msra.mxu0 0.0
        %1280 = vmatprep.subr.mxu0 0.0
        %1281 = vmatpush1.msra.mxu0 0.0
        %1282 = vmatprep.subr.mxu0 0.0
        %1283 = vmatpush1.msra.mxu0 0.0
        %1284 = vmatprep.subr.mxu0 0.0
        %1285 = vmatpush1.msra.mxu0 0.0
        %1286 = vmatprep.subr.mxu0 0.0
        %1287 = vmatpush1.msra.mxu0 0.0
        %1288 = vmatprep.subr.mxu0 0.0
        %1289 = vmatpush1.msra.mxu0 0.0
        %1290 = vmatprep.subr.mxu0 0.0
        %1291 = vmatpush1.msra.mxu0 0.0
        %1292 = vmatprep.mubr.f32.mxu0 0.0
        %1293 = vmatmul.mubr.f32.gmra.mrb[0].mxu0 %v1226
        %v1294 = vpop.f32.mrb[0].mxu0
        %v1295 = vadd.f32 0.0, %v1294
        %v1296 = vpop.f32.mrb[0].mxu0
        %1297 = vdwg.mxu0
        %v1299 = vsel %vm896, %v1056, 0
        %1301 = vmatprep.subr.mxu0 0.0
        %1302 = vmatpush1.msra.mxu0 %v889
        %1303 = vmatprep.subr.mxu0 0.0
        %1304 = vmatpush1.msra.mxu0 0.0
        %1305 = vmatprep.subr.mxu0 0.0
        %1306 = vmatpush1.msra.mxu0 0.0
        %1307 = vmatprep.subr.mxu0 0.0
        %1308 = vmatpush1.msra.mxu0 0.0
        %1309 = vmatprep.subr.mxu0 0.0
        %1310 = vmatpush1.msra.mxu0 0.0
        %1311 = vmatprep.subr.mxu0 0.0
        %1312 = vmatpush1.msra.mxu0 0.0
        %1313 = vmatprep.subr.mxu0 0.0
        %1314 = vmatpush1.msra.mxu0 0.0
        %1315 = vmatprep.subr.mxu0 0.0
        %1316 = vmatpush1.msra.mxu0 0.0
        %1317 = vmatprep.subr.mxu0 0.0
        %1318 = vmatpush1.msra.mxu0 0.0
        %1319 = vmatprep.subr.mxu0 0.0
        %1320 = vmatpush1.msra.mxu0 0.0
        %1321 = vmatprep.subr.mxu0 0.0
        %1322 = vmatpush1.msra.mxu0 0.0
        %1323 = vmatprep.subr.mxu0 0.0
        %1324 = vmatpush1.msra.mxu0 0.0
        %1325 = vmatprep.subr.mxu0 0.0
        %1326 = vmatpush1.msra.mxu0 0.0
        %1327 = vmatprep.subr.mxu0 0.0
        %1328 = vmatpush1.msra.mxu0 0.0
        %1329 = vmatprep.subr.mxu0 0.0
        %1330 = vmatpush1.msra.mxu0 0.0
        %1331 = vmatprep.subr.mxu0 0.0
        %1332 = vmatpush1.msra.mxu0 0.0
        %1333 = vmatprep.subr.mxu0 0.0
        %1334 = vmatpush1.msra.mxu0 0.0
        %1335 = vmatprep.subr.mxu0 0.0
        %1336 = vmatpush1.msra.mxu0 0.0
        %1337 = vmatprep.subr.mxu0 0.0
        %1338 = vmatpush1.msra.mxu0 0.0
        %1339 = vmatprep.subr.mxu0 0.0
        %1340 = vmatpush1.msra.mxu0 0.0
        %1341 = vmatprep.subr.mxu0 0.0
        %1342 = vmatpush1.msra.mxu0 0.0
        %1343 = vmatprep.subr.mxu0 0.0
        %1344 = vmatpush1.msra.mxu0 0.0
        %1345 = vmatprep.subr.mxu0 0.0
        %1346 = vmatpush1.msra.mxu0 0.0
        %1347 = vmatprep.subr.mxu0 0.0
        %1348 = vmatpush1.msra.mxu0 0.0
        %1349 = vmatprep.subr.mxu0 0.0
        %1350 = vmatpush1.msra.mxu0 0.0
        %1351 = vmatprep.subr.mxu0 0.0
        %1352 = vmatpush1.msra.mxu0 0.0
        %1353 = vmatprep.subr.mxu0 0.0
        %1354 = vmatpush1.msra.mxu0 0.0
        %1355 = vmatprep.subr.mxu0 0.0
        %1356 = vmatpush1.msra.mxu0 0.0
        %1357 = vmatprep.subr.mxu0 0.0
        %1358 = vmatpush1.msra.mxu0 0.0
        %1359 = vmatprep.subr.mxu0 0.0
        %1360 = vmatpush1.msra.mxu0 0.0
        %1361 = vmatprep.subr.mxu0 0.0
        %1362 = vmatpush1.msra.mxu0 0.0
        %1363 = vmatprep.subr.mxu0 0.0
        %1364 = vmatpush1.msra.mxu0 0.0
        %1365 = vmatprep.mubr.f32.mxu0 0.0
        %1366 = vmatmul.mubr.f32.gmra.mrb[0].mxu0 %v1299
        %v1367 = vpop.f32.mrb[0].mxu0
        %v1368 = vadd.f32 %v1295, %v1367
        %v1369 = vpop.f32.mrb[0].mxu0
        %1370 = vdwg.mxu0
        %1371 = vrot.lane.b32.xlu0 %v886, 112
        %v1372 = vpop.permute.xlu0 %1371
        %1373 = vrot.lane.b32.xlu0 %v886, 80
        %v1374 = vpop.permute.xlu0 %1373
        %v1375 = vsel %vm896, %v1372, 0
        %v1377 = vsel %vm896, %v1374, 0
        %1379 = vmatprep.subr.mxu0 0.0
        %1380 = vmatpush1.xpose.msra.mxu0 %v1377
        %1381 = vmatprep.subr.mxu0 0.0
        %1382 = vmatpush1.xpose.msra.mxu0 0.0
        %1383 = vmatprep.subr.mxu0 0.0
        %1384 = vmatpush1.xpose.msra.mxu0 0.0
        %1385 = vmatprep.subr.mxu0 0.0
        %1386 = vmatpush1.xpose.msra.mxu0 0.0
        %1387 = vmatprep.subr.mxu0 0.0
        %1388 = vmatpush1.xpose.msra.mxu0 0.0
        %1389 = vmatprep.subr.mxu0 0.0
        %1390 = vmatpush1.xpose.msra.mxu0 0.0
        %1391 = vmatprep.subr.mxu0 0.0
        %1392 = vmatpush1.xpose.msra.mxu0 0.0
        %1393 = vmatprep.subr.mxu0 0.0
        %1394 = vmatpush1.xpose.msra.mxu0 0.0
        %1395 = vmatprep.subr.mxu0 0.0
        %1396 = vmatpush1.xpose.msra.mxu0 0.0
        %1397 = vmatprep.subr.mxu0 0.0
        %1398 = vmatpush1.xpose.msra.mxu0 0.0
        %1399 = vmatprep.subr.mxu0 0.0
        %1400 = vmatpush1.xpose.msra.mxu0 0.0
        %1401 = vmatprep.subr.mxu0 0.0
        %1402 = vmatpush1.xpose.msra.mxu0 0.0
        %1403 = vmatprep.subr.mxu0 0.0
        %1404 = vmatpush1.xpose.msra.mxu0 0.0
        %1405 = vmatprep.subr.mxu0 0.0
        %1406 = vmatpush1.xpose.msra.mxu0 0.0
        %1407 = vmatprep.subr.mxu0 0.0
        %1408 = vmatpush1.xpose.msra.mxu0 0.0
        %1409 = vmatprep.subr.mxu0 0.0
        %1410 = vmatpush1.xpose.msra.mxu0 0.0
        %1411 = vmatprep.subr.mxu0 0.0
        %1412 = vmatpush1.xpose.msra.mxu0 0.0
        %1413 = vmatprep.subr.mxu0 0.0
        %1414 = vmatpush1.xpose.msra.mxu0 0.0
        %1415 = vmatprep.subr.mxu0 0.0
        %1416 = vmatpush1.xpose.msra.mxu0 0.0
        %1417 = vmatprep.subr.mxu0 0.0
        %1418 = vmatpush1.xpose.msra.mxu0 0.0
        %1419 = vmatprep.subr.mxu0 0.0
        %1420 = vmatpush1.xpose.msra.mxu0 0.0
        %1421 = vmatprep.subr.mxu0 0.0
        %1422 = vmatpush1.xpose.msra.mxu0 0.0
        %1423 = vmatprep.subr.mxu0 0.0
        %1424 = vmatpush1.xpose.msra.mxu0 0.0
        %1425 = vmatprep.subr.mxu0 0.0
        %1426 = vmatpush1.xpose.msra.mxu0 0.0
        %1427 = vmatprep.subr.mxu0 0.0
        %1428 = vmatpush1.xpose.msra.mxu0 0.0
        %1429 = vmatprep.subr.mxu0 0.0
        %1430 = vmatpush1.xpose.msra.mxu0 0.0
        %1431 = vmatprep.subr.mxu0 0.0
        %1432 = vmatpush1.xpose.msra.mxu0 0.0
        %1433 = vmatprep.subr.mxu0 0.0
        %1434 = vmatpush1.xpose.msra.mxu0 0.0
        %1435 = vmatprep.subr.mxu0 0.0
        %1436 = vmatpush1.xpose.msra.mxu0 0.0
        %1437 = vmatprep.subr.mxu0 0.0
        %1438 = vmatpush1.xpose.msra.mxu0 0.0
        %1439 = vmatprep.subr.mxu0 0.0
        %1440 = vmatpush1.xpose.msra.mxu0 0.0
        %1441 = vmatprep.subr.mxu0 0.0
        %1442 = vmatpush1.xpose.msra.mxu0 0.0
        %1443 = vmatprep.mubr.f32.mxu0 0.0
        %1444 = vmatmul.mubr.f32.gmra.mrb[0].mxu0 %v1375
        %v1445 = vpop.f32.mrb[0].mxu0
        %v1446 = vadd.f32 0.0, %v1445
        %v1447 = vpop.f32.mrb[0].mxu0
        %1448 = vdwg.mxu0
        %v1449 = vmul.f32 %v1446, 0.35355338
        %v1450 = vsel %vm896, %v1449, -inf
        %1451 = vmax.xlane.f32.xlu0 %v1450
        %v1452 = vpop.xlane.xlu0 %1451
        %v1453 = vsub.f32 %v1449, %v1452
        %v1454 = vmul.f32 %v1453, 1.442695
        %v1455 = vpow.pop %v1454
        %v1456 = vsel %vm896, %v1455, 0.0
        %1457 = vadd.xlane.f32.xlu0 %v1456
        %v1458 = vpop.xlane.xlu0 %1457
        %v1459 = vrcp.pop %v1458
        %v1460 = vmul.f32 %v1455, %v1459
        %1461 = vrot.lane.b32.xlu0 %v886, 48
        %v1462 = vpop.permute.xlu0 %1461
        %v1465 = vsel %vm896, %v1460, 0
        %1467 = vmatprep.subr.mxu0 0.0
        %1468 = vmatpush1.msra.mxu0 %v1462
        %1469 = vmatprep.subr.mxu0 0.0
        %1470 = vmatpush1.msra.mxu0 0.0
        %1471 = vmatprep.subr.mxu0 0.0
        %1472 = vmatpush1.msra.mxu0 0.0
        %1473 = vmatprep.subr.mxu0 0.0
        %1474 = vmatpush1.msra.mxu0 0.0
        %1475 = vmatprep.subr.mxu0 0.0
        %1476 = vmatpush1.msra.mxu0 0.0
        %1477 = vmatprep.subr.mxu0 0.0
        %1478 = vmatpush1.msra.mxu0 0.0
        %1479 = vmatprep.subr.mxu0 0.0
        %1480 = vmatpush1.msra.mxu0 0.0
        %1481 = vmatprep.subr.mxu0 0.0
        %1482 = vmatpush1.msra.mxu0 0.0
        %1483 = vmatprep.subr.mxu0 0.0
        %1484 = vmatpush1.msra.mxu0 0.0
        %1485 = vmatprep.subr.mxu0 0.0
        %1486 = vmatpush1.msra.mxu0 0.0
        %1487 = vmatprep.subr.mxu0 0.0
        %1488 = vmatpush1.msra.mxu0 0.0
        %1489 = vmatprep.subr.mxu0 0.0
        %1490 = vmatpush1.msra.mxu0 0.0
        %1491 = vmatprep.subr.mxu0 0.0
        %1492 = vmatpush1.msra.mxu0 0.0
        %1493 = vmatprep.subr.mxu0 0.0
        %1494 = vmatpush1.msra.mxu0 0.0
        %1495 = vmatprep.subr.mxu0 0.0
        %1496 = vmatpush1.msra.mxu0 0.0
        %1497 = vmatprep.subr.mxu0 0.0
        %1498 = vmatpush1.msra.mxu0 0.0
        %1499 = vmatprep.subr.mxu0 0.0
        %1500 = vmatpush1.msra.mxu0 0.0
        %1501 = vmatprep.subr.mxu0 0.0
        %1502 = vmatpush1.msra.mxu0 0.0
        %1503 = vmatprep.subr.mxu0 0.0
        %1504 = vmatpush1.msra.mxu0 0.0
        %1505 = vmatprep.subr.mxu0 0.0
        %1506 = vmatpush1.msra.mxu0 0.0
        %1507 = vmatprep.subr.mxu0 0.0
        %1508 = vmatpush1.msra.mxu0 0.0
        %1509 = vmatprep.subr.mxu0 0.0
        %1510 = vmatpush1.msra.mxu0 0.0
        %1511 = vmatprep.subr.mxu0 0.0
        %1512 = vmatpush1.msra.mxu0 0.0
        %1513 = vmatprep.subr.mxu0 0.0
        %1514 = vmatpush1.msra.mxu0 0.0
        %1515 = vmatprep.subr.mxu0 0.0
        %1516 = vmatpush1.msra.mxu0 0.0
        %1517 = vmatprep.subr.mxu0 0.0
        %1518 = vmatpush1.msra.mxu0 0.0
        %1519 = vmatprep.subr.mxu0 0.0
        %1520 = vmatpush1.msra.mxu0 0.0
        %1521 = vmatprep.subr.mxu0 0.0
        %1522 = vmatpush1.msra.mxu0 0.0
        %1523 = vmatprep.subr.mxu0 0.0
        %1524 = vmatpush1.msra.mxu0 0.0
        %1525 = vmatprep.subr.mxu0 0.0
        %1526 = vmatpush1.msra.mxu0 0.0
        %1527 = vmatprep.subr.mxu0 0.0
        %1528 = vmatpush1.msra.mxu0 0.0
        %1529 = vmatprep.subr.mxu0 0.0
        %1530 = vmatpush1.msra.mxu0 0.0
        %1531 = vmatprep.mubr.f32.mxu0 0.0
        %1532 = vmatmul.mubr.f32.gmra.mrb[0].mxu0 %v1465
        %v1533 = vpop.f32.mrb[0].mxu0
        %v1534 = vadd.f32 0.0, %v1533
        %v1535 = vpop.f32.mrb[0].mxu0
        %1536 = vdwg.mxu0
        %v1538 = vsel %vm896, %v1534, 0
        %1540 = vmatprep.subr.mxu0 0.0
        %1541 = vmatpush1.msra.mxu0 %v891
        %1542 = vmatprep.subr.mxu0 0.0
        %1543 = vmatpush1.msra.mxu0 0.0
        %1544 = vmatprep.subr.mxu0 0.0
        %1545 = vmatpush1.msra.mxu0 0.0
        %1546 = vmatprep.subr.mxu0 0.0
        %1547 = vmatpush1.msra.mxu0 0.0
        %1548 = vmatprep.subr.mxu0 0.0
        %1549 = vmatpush1.msra.mxu0 0.0
        %1550 = vmatprep.subr.mxu0 0.0
        %1551 = vmatpush1.msra.mxu0 0.0
        %1552 = vmatprep.subr.mxu0 0.0
        %1553 = vmatpush1.msra.mxu0 0.0
        %1554 = vmatprep.subr.mxu0 0.0
        %1555 = vmatpush1.msra.mxu0 0.0
        %1556 = vmatprep.subr.mxu0 0.0
        %1557 = vmatpush1.msra.mxu0 0.0
        %1558 = vmatprep.subr.mxu0 0.0
        %1559 = vmatpush1.msra.mxu0 0.0
        %1560 = vmatprep.subr.mxu0 0.0
        %1561 = vmatpush1.msra.mxu0 0.0
        %1562 = vmatprep.subr.mxu0 0.0
        %1563 = vmatpush1.msra.mxu0 0.0
        %1564 = vmatprep.subr.mxu0 0.0
        %1565 = vmatpush1.msra.mxu0 0.0
        %1566 = vmatprep.subr.mxu0 0.0
        %1567 = vmatpush1.msra.mxu0 0.0
        %1568 = vmatprep.subr.mxu0 0.0
        %1569 = vmatpush1.msra.mxu0 0.0
        %1570 = vmatprep.subr.mxu0 0.0
        %1571 = vmatpush1.msra.mxu0 0.0
        %1572 = vmatprep.subr.mxu0 0.0
        %1573 = vmatpush1.msra.mxu0 0.0
        %1574 = vmatprep.subr.mxu0 0.0
        %1575 = vmatpush1.msra.mxu0 0.0
        %1576 = vmatprep.subr.mxu0 0.0
        %1577 = vmatpush1.msra.mxu0 0.0
        %1578 = vmatprep.subr.mxu0 0.0
        %1579 = vmatpush1.msra.mxu0 0.0
        %1580 = vmatprep.subr.mxu0 0.0
        %1581 = vmatpush1.msra.mxu0 0.0
        %1582 = vmatprep.subr.mxu0 0.0
        %1583 = vmatpush1.msra.mxu0 0.0
        %1584 = vmatprep.subr.mxu0 0.0
        %1585 = vmatpush1.msra.mxu0 0.0
        %1586 = vmatprep.subr.mxu0 0.0
        %1587 = vmatpush1.msra.mxu0 0.0
        %1588 = vmatprep.subr.mxu0 0.0
        %1589 = vmatpush1.msra.mxu0 0.0
        %1590 = vmatprep.subr.mxu0 0.0
        %1591 = vmatpush1.msra.mxu0 0.0
        %1592 = vmatprep.subr.mxu0 0.0
        %1593 = vmatpush1.msra.mxu0 0.0
        %1594 = vmatprep.subr.mxu0 0.0
        %1595 = vmatpush1.msra.mxu0 0.0
        %1596 = vmatprep.subr.mxu0 0.0
        %1597 = vmatpush1.msra.mxu0 0.0
        %1598 = vmatprep.subr.mxu0 0.0
        %1599 = vmatpush1.msra.mxu0 0.0
        %1600 = vmatprep.subr.mxu0 0.0
        %1601 = vmatpush1.msra.mxu0 0.0
        %1602 = vmatprep.subr.mxu0 0.0
        %1603 = vmatpush1.msra.mxu0 0.0
        %1604 = vmatprep.mubr.f32.mxu0 0.0
        %1605 = vmatmul.mubr.f32.gmra.mrb[0].mxu0 %v1538
        %v1606 = vpop.f32.mrb[0].mxu0
        %v1607 = vadd.f32 0.0, %v1606
        %v1608 = vpop.f32.mrb[0].mxu0
        %1609 = vdwg.mxu0
        %v1610 = vadd.f32 %v1368, %v1607
        %1611 = vrot.lane.b32.xlu0 %v886, 104
        %v1612 = vpop.permute.xlu0 %1611
        %1613 = vrot.lane.b32.xlu0 %v886, 72
        %v1614 = vpop.permute.xlu0 %1613
        %v1615 = vsel %vm896, %v1612, 0
        %v1617 = vsel %vm896, %v1614, 0
        %1619 = vmatprep.subr.mxu0 0.0
        %1620 = vmatpush1.xpose.msra.mxu0 %v1617
        %1621 = vmatprep.subr.mxu0 0.0
        %1622 = vmatpush1.xpose.msra.mxu0 0.0
        %1623 = vmatprep.subr.mxu0 0.0
        %1624 = vmatpush1.xpose.msra.mxu0 0.0
        %1625 = vmatprep.subr.mxu0 0.0
        %1626 = vmatpush1.xpose.msra.mxu0 0.0
        %1627 = vmatprep.subr.mxu0 0.0
        %1628 = vmatpush1.xpose.msra.mxu0 0.0
        %1629 = vmatprep.subr.mxu0 0.0
        %1630 = vmatpush1.xpose.msra.mxu0 0.0
        %1631 = vmatprep.subr.mxu0 0.0
        %1632 = vmatpush1.xpose.msra.mxu0 0.0
        %1633 = vmatprep.subr.mxu0 0.0
        %1634 = vmatpush1.xpose.msra.mxu0 0.0
        %1635 = vmatprep.subr.mxu0 0.0
        %1636 = vmatpush1.xpose.msra.mxu0 0.0
        %1637 = vmatprep.subr.mxu0 0.0
        %1638 = vmatpush1.xpose.msra.mxu0 0.0
        %1639 = vmatprep.subr.mxu0 0.0
        %1640 = vmatpush1.xpose.msra.mxu0 0.0
        %1641 = vmatprep.subr.mxu0 0.0
        %1642 = vmatpush1.xpose.msra.mxu0 0.0
        %1643 = vmatprep.subr.mxu0 0.0
        %1644 = vmatpush1.xpose.msra.mxu0 0.0
        %1645 = vmatprep.subr.mxu0 0.0
        %1646 = vmatpush1.xpose.msra.mxu0 0.0
        %1647 = vmatprep.subr.mxu0 0.0
        %1648 = vmatpush1.xpose.msra.mxu0 0.0
        %1649 = vmatprep.subr.mxu0 0.0
        %1650 = vmatpush1.xpose.msra.mxu0 0.0
        %1651 = vmatprep.subr.mxu0 0.0
        %1652 = vmatpush1.xpose.msra.mxu0 0.0
        %1653 = vmatprep.subr.mxu0 0.0
        %1654 = vmatpush1.xpose.msra.mxu0 0.0
        %1655 = vmatprep.subr.mxu0 0.0
        %1656 = vmatpush1.xpose.msra.mxu0 0.0
        %1657 = vmatprep.subr.mxu0 0.0
        %1658 = vmatpush1.xpose.msra.mxu0 0.0
        %1659 = vmatprep.subr.mxu0 0.0
        %1660 = vmatpush1.xpose.msra.mxu0 0.0
        %1661 = vmatprep.subr.mxu0 0.0
        %1662 = vmatpush1.xpose.msra.mxu0 0.0
        %1663 = vmatprep.subr.mxu0 0.0
        %1664 = vmatpush1.xpose.msra.mxu0 0.0
        %1665 = vmatprep.subr.mxu0 0.0
        %1666 = vmatpush1.xpose.msra.mxu0 0.0
        %1667 = vmatprep.subr.mxu0 0.0
        %1668 = vmatpush1.xpose.msra.mxu0 0.0
        %1669 = vmatprep.subr.mxu0 0.0
        %1670 = vmatpush1.xpose.msra.mxu0 0.0
        %1671 = vmatprep.subr.mxu0 0.0
        %1672 = vmatpush1.xpose.msra.mxu0 0.0
        %1673 = vmatprep.subr.mxu0 0.0
        %1674 = vmatpush1.xpose.msra.mxu0 0.0
        %1675 = vmatprep.subr.mxu0 0.0
        %1676 = vmatpush1.xpose.msra.mxu0 0.0
        %1677 = vmatprep.subr.mxu0 0.0
        %1678 = vmatpush1.xpose.msra.mxu0 0.0
        %1679 = vmatprep.subr.mxu0 0.0
        %1680 = vmatpush1.xpose.msra.mxu0 0.0
        %1681 = vmatprep.subr.mxu0 0.0
        %1682 = vmatpush1.xpose.msra.mxu0 0.0
        %1683 = vmatprep.mubr.f32.mxu0 0.0
        %1684 = vmatmul.mubr.f32.gmra.mrb[0].mxu0 %v1615
        %v1685 = vpop.f32.mrb[0].mxu0
        %v1686 = vadd.f32 0.0, %v1685
        %v1687 = vpop.f32.mrb[0].mxu0
        %1688 = vdwg.mxu0
        %v1689 = vmul.f32 %v1686, 0.35355338
        %v1690 = vsel %vm896, %v1689, -inf
        %1691 = vmax.xlane.f32.xlu0 %v1690
        %v1692 = vpop.xlane.xlu0 %1691
        %v1693 = vsub.f32 %v1689, %v1692
        %v1694 = vmul.f32 %v1693, 1.442695
        %v1695 = vpow.pop %v1694
        %v1696 = vsel %vm896, %v1695, 0.0
        %1697 = vadd.xlane.f32.xlu0 %v1696
        %v1698 = vpop.xlane.xlu0 %1697
        %v1699 = vrcp.pop %v1698
        %v1700 = vmul.f32 %v1695, %v1699
        %1701 = vrot.lane.b32.xlu0 %v886, 40
        %v1702 = vpop.permute.xlu0 %1701
        %v1705 = vsel %vm896, %v1700, 0
        %1707 = vmatprep.subr.mxu0 0.0
        %1708 = vmatpush1.msra.mxu0 %v1702
        %1709 = vmatprep.subr.mxu0 0.0
        %1710 = vmatpush1.msra.mxu0 0.0
        %1711 = vmatprep.subr.mxu0 0.0
        %1712 = vmatpush1.msra.mxu0 0.0
        %1713 = vmatprep.subr.mxu0 0.0
        %1714 = vmatpush1.msra.mxu0 0.0
        %1715 = vmatprep.subr.mxu0 0.0
        %1716 = vmatpush1.msra.mxu0 0.0
        %1717 = vmatprep.subr.mxu0 0.0
        %1718 = vmatpush1.msra.mxu0 0.0
        %1719 = vmatprep.subr.mxu0 0.0
        %1720 = vmatpush1.msra.mxu0 0.0
        %1721 = vmatprep.subr.mxu0 0.0
        %1722 = vmatpush1.msra.mxu0 0.0
        %1723 = vmatprep.subr.mxu0 0.0
        %1724 = vmatpush1.msra.mxu0 0.0
        %1725 = vmatprep.subr.mxu0 0.0
        %1726 = vmatpush1.msra.mxu0 0.0
        %1727 = vmatprep.subr.mxu0 0.0
        %1728 = vmatpush1.msra.mxu0 0.0
        %1729 = vmatprep.subr.mxu0 0.0
        %1730 = vmatpush1.msra.mxu0 0.0
        %1731 = vmatprep.subr.mxu0 0.0
        %1732 = vmatpush1.msra.mxu0 0.0
        %1733 = vmatprep.subr.mxu0 0.0
        %1734 = vmatpush1.msra.mxu0 0.0
        %1735 = vmatprep.subr.mxu0 0.0
        %1736 = vmatpush1.msra.mxu0 0.0
        %1737 = vmatprep.subr.mxu0 0.0
        %1738 = vmatpush1.msra.mxu0 0.0
        %1739 = vmatprep.subr.mxu0 0.0
        %1740 = vmatpush1.msra.mxu0 0.0
        %1741 = vmatprep.subr.mxu0 0.0
        %1742 = vmatpush1.msra.mxu0 0.0
        %1743 = vmatprep.subr.mxu0 0.0
        %1744 = vmatpush1.msra.mxu0 0.0
        %1745 = vmatprep.subr.mxu0 0.0
        %1746 = vmatpush1.msra.mxu0 0.0
        %1747 = vmatprep.subr.mxu0 0.0
        %1748 = vmatpush1.msra.mxu0 0.0
        %1749 = vmatprep.subr.mxu0 0.0
        %1750 = vmatpush1.msra.mxu0 0.0
        %1751 = vmatprep.subr.mxu0 0.0
        %1752 = vmatpush1.msra.mxu0 0.0
        %1753 = vmatprep.subr.mxu0 0.0
        %1754 = vmatpush1.msra.mxu0 0.0
        %1755 = vmatprep.subr.mxu0 0.0
        %1756 = vmatpush1.msra.mxu0 0.0
        %1757 = vmatprep.subr.mxu0 0.0
        %1758 = vmatpush1.msra.mxu0 0.0
        %1759 = vmatprep.subr.mxu0 0.0
        %1760 = vmatpush1.msra.mxu0 0.0
        %1761 = vmatprep.subr.mxu0 0.0
        %1762 = vmatpush1.msra.mxu0 0.0
        %1763 = vmatprep.subr.mxu0 0.0
        %1764 = vmatpush1.msra.mxu0 0.0
        %1765 = vmatprep.subr.mxu0 0.0
        %1766 = vmatpush1.msra.mxu0 0.0
        %1767 = vmatprep.subr.mxu0 0.0
        %1768 = vmatpush1.msra.mxu0 0.0
        %1769 = vmatprep.subr.mxu0 0.0
        %1770 = vmatpush1.msra.mxu0 0.0
        %1771 = vmatprep.mubr.f32.mxu0 0.0
        %1772 = vmatmul.mubr.f32.gmra.mrb[0].mxu0 %v1705
        %v1773 = vpop.f32.mrb[0].mxu0
        %v1774 = vadd.f32 0.0, %v1773
        %v1775 = vpop.f32.mrb[0].mxu0
        %1776 = vdwg.mxu0
        %v1778 = vsel %vm896, %v1774, 0
        %1780 = vmatprep.subr.mxu0 0.0
        %1781 = vmatpush1.msra.mxu0 %v892
        %1782 = vmatprep.subr.mxu0 0.0
        %1783 = vmatpush1.msra.mxu0 0.0
        %1784 = vmatprep.subr.mxu0 0.0
        %1785 = vmatpush1.msra.mxu0 0.0
        %1786 = vmatprep.subr.mxu0 0.0
        %1787 = vmatpush1.msra.mxu0 0.0
        %1788 = vmatprep.subr.mxu0 0.0
        %1789 = vmatpush1.msra.mxu0 0.0
        %1790 = vmatprep.subr.mxu0 0.0
        %1791 = vmatpush1.msra.mxu0 0.0
        %1792 = vmatprep.subr.mxu0 0.0
        %1793 = vmatpush1.msra.mxu0 0.0
        %1794 = vmatprep.subr.mxu0 0.0
        %1795 = vmatpush1.msra.mxu0 0.0
        %1796 = vmatprep.subr.mxu0 0.0
        %1797 = vmatpush1.msra.mxu0 0.0
        %1798 = vmatprep.subr.mxu0 0.0
        %1799 = vmatpush1.msra.mxu0 0.0
        %1800 = vmatprep.subr.mxu0 0.0
        %1801 = vmatpush1.msra.mxu0 0.0
        %1802 = vmatprep.subr.mxu0 0.0
        %1803 = vmatpush1.msra.mxu0 0.0
        %1804 = vmatprep.subr.mxu0 0.0
        %1805 = vmatpush1.msra.mxu0 0.0
        %1806 = vmatprep.subr.mxu0 0.0
        %1807 = vmatpush1.msra.mxu0 0.0
        %1808 = vmatprep.subr.mxu0 0.0
        %1809 = vmatpush1.msra.mxu0 0.0
        %1810 = vmatprep.subr.mxu0 0.0
        %1811 = vmatpush1.msra.mxu0 0.0
        %1812 = vmatprep.subr.mxu0 0.0
        %1813 = vmatpush1.msra.mxu0 0.0
        %1814 = vmatprep.subr.mxu0 0.0
        %1815 = vmatpush1.msra.mxu0 0.0
        %1816 = vmatprep.subr.mxu0 0.0
        %1817 = vmatpush1.msra.mxu0 0.0
        %1818 = vmatprep.subr.mxu0 0.0
        %1819 = vmatpush1.msra.mxu0 0.0
        %1820 = vmatprep.subr.mxu0 0.0
        %1821 = vmatpush1.msra.mxu0 0.0
        %1822 = vmatprep.subr.mxu0 0.0
        %1823 = vmatpush1.msra.mxu0 0.0
        %1824 = vmatprep.subr.mxu0 0.0
        %1825 = vmatpush1.msra.mxu0 0.0
        %1826 = vmatprep.subr.mxu0 0.0
        %1827 = vmatpush1.msra.mxu0 0.0
        %1828 = vmatprep.subr.mxu0 0.0
        %1829 = vmatpush1.msra.mxu0 0.0
        %1830 = vmatprep.subr.mxu0 0.0
        %1831 = vmatpush1.msra.mxu0 0.0
        %1832 = vmatprep.subr.mxu0 0.0
        %1833 = vmatpush1.msra.mxu0 0.0
        %1834 = vmatprep.subr.mxu0 0.0
        %1835 = vmatpush1.msra.mxu0 0.0
        %1836 = vmatprep.subr.mxu0 0.0
        %1837 = vmatpush1.msra.mxu0 0.0
        %1838 = vmatprep.subr.mxu0 0.0
        %1839 = vmatpush1.msra.mxu0 0.0
        %1840 = vmatprep.subr.mxu0 0.0
        %1841 = vmatpush1.msra.mxu0 0.0
        %1842 = vmatprep.subr.mxu0 0.0
        %1843 = vmatpush1.msra.mxu0 0.0
        %1844 = vmatprep.mubr.f32.mxu0 0.0
        %1845 = vmatmul.mubr.f32.gmra.mrb[0].mxu0 %v1778
        %v1846 = vpop.f32.mrb[0].mxu0
        %v1847 = vadd.f32 0.0, %v1846
        %v1848 = vpop.f32.mrb[0].mxu0
        %1849 = vdwg.mxu0
        %v1850 = vadd.f32 %v1610, %v1847
        %v1851 = vadd.f32 %v773, %v1850
        %v1852 = vld [vmem:[%s9] sm:$0x1]
        %v1854 = vlaneseq
        %v1855 = vshrl.u32 %v1854, 7
        %v1856 = vsub.s32 0, %v1855
        %v1857 = vrot.slane %v1852, %v1856
        %v1859 = vadd.f32 %v1851, %v1857
        %v1860 = vld [vmem:[%s10] sm:$0x1]
        %v1861 = vld [vmem:[%s11] sm:$0x1]
        %v1862 = vsel %vm776, %v1859, 0.0
        %1863 = vadd.xlane.f32.xlu0 %v1862
        %v1864 = vpop.xlane.xlu0 %1863
        %v1865 = vmul.f32 %v1864, %v780
        %v1866 = vsub.f32 %v1859, %v1865
        %v1867 = vmul.f32 %v1866, %v1866
        %v1868 = vsel %vm776, %v1867, 0.0
        %1869 = vadd.xlane.f32.xlu0 %v1868
        %v1870 = vpop.xlane.xlu0 %1869
        %v1871 = vmul.f32 %v1870, %v780
        %v1872 = vadd.f32 %v1871, 1e-06
        %v1873 = vrsqrt.pop %v1872
        %v1874 = vmul.f32 %v1866, %v1873
        %v1876 = vlaneseq
        %v1877 = vshrl.u32 %v1876, 7
        %v1878 = vsub.s32 0, %v1877
        %v1879 = vrot.slane %v1860, %v1878
        %v1881 = vmul.f32 %v1874, %v1879
        %v1883 = vlaneseq
        %v1884 = vshrl.u32 %v1883, 7
        %v1885 = vsub.s32 0, %v1884
        %v1886 = vrot.slane %v1861, %v1885
        %v1888 = vadd.f32 %v1881, %v1886
        %v1889 = vld [vmem:[%s12] sm:$0xff]
        %v1890 = vld [vmem:[%s12 + $0x8] sm:$0xff]
        %v1891 = vld [vmem:[%s12 + $0x10] sm:$0xff]
        %v1892 = vld [vmem:[%s12 + $0x18] sm:$0xff]
        %v1893 = vld [vmem:[%s13] sm:$0x1]
        %v1895 = vlaneseq
        %v1896 = vshrl.u32 %v1895, 7
        %v1897 = vsub.s32 0, %v1896
        %v1898 = vrot.slane %v1893, %v1897
        %v1901 = vsel %vm776, %v1888, 0
        %1903 = vmatprep.subr.mxu0 0.0
        %1904 = vmatpush1.msra.mxu0 %v1889
        %1905 = vmatprep.subr.mxu0 0.0
        %1906 = vmatpush1.msra.mxu0 %v1890
        %1907 = vmatprep.subr.mxu0 0.0
        %1908 = vmatpush1.msra.mxu0 %v1891
        %1909 = vmatprep.subr.mxu0 0.0
        %1910 = vmatpush1.msra.mxu0 %v1892
        %1911 = vmatprep.subr.mxu0 0.0
        %1912 = vmatpush1.msra.mxu0 0.0
        %1913 = vmatprep.subr.mxu0 0.0
        %1914 = vmatpush1.msra.mxu0 0.0
        %1915 = vmatprep.subr.mxu0 0.0
        %1916 = vmatpush1.msra.mxu0 0.0
        %1917 = vmatprep.subr.mxu0 0.0
        %1918 = vmatpush1.msra.mxu0 0.0
        %1919 = vmatprep.subr.mxu0 0.0
        %1920 = vmatpush1.msra.mxu0 0.0
        %1921 = vmatprep.subr.mxu0 0.0
        %1922 = vmatpush1.msra.mxu0 0.0
        %1923 = vmatprep.subr.mxu0 0.0
        %1924 = vmatpush1.msra.mxu0 0.0
        %1925 = vmatprep.subr.mxu0 0.0
        %1926 = vmatpush1.msra.mxu0 0.0
        %1927 = vmatprep.subr.mxu0 0.0
        %1928 = vmatpush1.msra.mxu0 0.0
        %1929 = vmatprep.subr.mxu0 0.0
        %1930 = vmatpush1.msra.mxu0 0.0
        %1931 = vmatprep.subr.mxu0 0.0
        %1932 = vmatpush1.msra.mxu0 0.0
        %1933 = vmatprep.subr.mxu0 0.0
        %1934 = vmatpush1.msra.mxu0 0.0
        %1935 = vmatprep.subr.mxu0 0.0
        %1936 = vmatpush1.msra.mxu0 0.0
        %1937 = vmatprep.subr.mxu0 0.0
        %1938 = vmatpush1.msra.mxu0 0.0
        %1939 = vmatprep.subr.mxu0 0.0
        %1940 = vmatpush1.msra.mxu0 0.0
        %1941 = vmatprep.subr.mxu0 0.0
        %1942 = vmatpush1.msra.mxu0 0.0
        %1943 = vmatprep.subr.mxu0 0.0
        %1944 = vmatpush1.msra.mxu0 0.0
        %1945 = vmatprep.subr.mxu0 0.0
        %1946 = vmatpush1.msra.mxu0 0.0
        %1947 = vmatprep.subr.mxu0 0.0
        %1948 = vmatpush1.msra.mxu0 0.0
        %1949 = vmatprep.subr.mxu0 0.0
        %1950 = vmatpush1.msra.mxu0 0.0
        %1951 = vmatprep.subr.mxu0 0.0
        %1952 = vmatpush1.msra.mxu0 0.0
        %1953 = vmatprep.subr.mxu0 0.0
        %1954 = vmatpush1.msra.mxu0 0.0
        %1955 = vmatprep.subr.mxu0 0.0
        %1956 = vmatpush1.msra.mxu0 0.0
        %1957 = vmatprep.subr.mxu0 0.0
        %1958 = vmatpush1.msra.mxu0 0.0
        %1959 = vmatprep.subr.mxu0 0.0
        %1960 = vmatpush1.msra.mxu0 0.0
        %1961 = vmatprep.subr.mxu0 0.0
        %1962 = vmatpush1.msra.mxu0 0.0
        %1963 = vmatprep.subr.mxu0 0.0
        %1964 = vmatpush1.msra.mxu0 0.0
        %1965 = vmatprep.subr.mxu0 0.0
        %1966 = vmatpush1.msra.mxu0 0.0
        %1967 = vmatprep.mubr.f32.mxu0 0.0
        %1968 = vmatmul.mubr.f32.gmra.mrb[0].mxu0 %v1901
        %v1969 = vpop.f32.mrb[0].mxu0
        %v1970 = vadd.f32 %v1898, %v1969
        %v1971 = vpop.f32.mrb[0].mxu0
        %1972 = vdwg.mxu0
        %v1973 = vmul.f32 %v1970, 0.5
        %v1974 = vmul.f32 %v1970, 0.70710677
        %v1975 = verf.f32.pop %v1974
        %v1976 = vadd.f32 %v1975, 1.0
        %v1977 = vmul.f32 %v1973, %v1976
        %v1978 = vld [vmem:[%s14] sm:$0xff]
        %v1979 = vld [vmem:[%s14 + $0x8] sm:$0xff]
        %v1980 = vld [vmem:[%s14 + $0x10] sm:$0xff]
        %v1981 = vld [vmem:[%s14 + $0x18] sm:$0xff]
        %v1982 = vld [vmem:[%s14 + $0x20] sm:$0xff]
        %v1983 = vld [vmem:[%s14 + $0x28] sm:$0xff]
        %v1984 = vld [vmem:[%s14 + $0x30] sm:$0xff]
        %v1985 = vld [vmem:[%s14 + $0x38] sm:$0xff]
        %v1986 = vld [vmem:[%s14 + $0x40] sm:$0xff]
        %v1987 = vld [vmem:[%s14 + $0x48] sm:$0xff]
        %v1988 = vld [vmem:[%s14 + $0x50] sm:$0xff]
        %v1989 = vld [vmem:[%s14 + $0x58] sm:$0xff]
        %v1990 = vld [vmem:[%s14 + $0x60] sm:$0xff]
        %v1991 = vld [vmem:[%s14 + $0x68] sm:$0xff]
        %v1992 = vld [vmem:[%s14 + $0x70] sm:$0xff]
        %v1993 = vld [vmem:[%s14 + $0x78] sm:$0xff]
        %v1994 = vld [vmem:[%s15] sm:$0x1]
        %v1996 = vlaneseq
        %v1997 = vshrl.u32 %v1996, 7
        %v1998 = vsub.s32 0, %v1997
        %v1999 = vrot.slane %v1994, %v1998
        %2001 = vmatprep.subr.mxu0 0.0
        %2002 = vmatpush1.msra.mxu0 %v1978
        %2003 = vmatprep.subr.mxu0 0.0
        %2004 = vmatpush1.msra.mxu0 %v1979
        %2005 = vmatprep.subr.mxu0 0.0
        %2006 = vmatpush1.msra.mxu0 %v1980
        %2007 = vmatprep.subr.mxu0 0.0
        %2008 = vmatpush1.msra.mxu0 %v1981
        %2009 = vmatprep.subr.mxu0 0.0
        %2010 = vmatpush1.msra.mxu0 %v1982
        %2011 = vmatprep.subr.mxu0 0.0
        %2012 = vmatpush1.msra.mxu0 %v1983
        %2013 = vmatprep.subr.mxu0 0.0
        %2014 = vmatpush1.msra.mxu0 %v1984
        %2015 = vmatprep.subr.mxu0 0.0
        %2016 = vmatpush1.msra.mxu0 %v1985
        %2017 = vmatprep.subr.mxu0 0.0
        %2018 = vmatpush1.msra.mxu0 %v1986
        %2019 = vmatprep.subr.mxu0 0.0
        %2020 = vmatpush1.msra.mxu0 %v1987
        %2021 = vmatprep.subr.mxu0 0.0
        %2022 = vmatpush1.msra.mxu0 %v1988
        %2023 = vmatprep.subr.mxu0 0.0
        %2024 = vmatpush1.msra.mxu0 %v1989
        %2025 = vmatprep.subr.mxu0 0.0
        %2026 = vmatpush1.msra.mxu0 %v1990
        %2027 = vmatprep.subr.mxu0 0.0
        %2028 = vmatpush1.msra.mxu0 %v1991
        %2029 = vmatprep.subr.mxu0 0.0
        %2030 = vmatpush1.msra.mxu0 %v1992
        %2031 = vmatprep.subr.mxu0 0.0
        %2032 = vmatpush1.msra.mxu0 %v1993
        %2033 = vmatprep.subr.mxu0 0.0
        %2034 = vmatpush1.msra.mxu0 0.0
        %2035 = vmatprep.subr.mxu0 0.0
        %2036 = vmatpush1.msra.mxu0 0.0
        %2037 = vmatprep.subr.mxu0 0.0
        %2038 = vmatpush1.msra.mxu0 0.0
        %2039 = vmatprep.subr.mxu0 0.0
        %2040 = vmatpush1.msra.mxu0 0.0
        %2041 = vmatprep.subr.mxu0 0.0
        %2042 = vmatpush1.msra.mxu0 0.0
        %2043 = vmatprep.subr.mxu0 0.0
        %2044 = vmatpush1.msra.mxu0 0.0
        %2045 = vmatprep.subr.mxu0 0.0
        %2046 = vmatpush1.msra.mxu0 0.0
        %2047 = vmatprep.subr.mxu0 0.0
        %2048 = vmatpush1.msra.mxu0 0.0
        %2049 = vmatprep.subr.mxu0 0.0
        %2050 = vmatpush1.msra.mxu0 0.0
        %2051 = vmatprep.subr.mxu0 0.0
        %2052 = vmatpush1.msra.mxu0 0.0
        %2053 = vmatprep.subr.mxu0 0.0
        %2054 = vmatpush1.msra.mxu0 0.0
        %2055 = vmatprep.subr.mxu0 0.0
        %2056 = vmatpush1.msra.mxu0 0.0
        %2057 = vmatprep.subr.mxu0 0.0
        %2058 = vmatpush1.msra.mxu0 0.0
        %2059 = vmatprep.subr.mxu0 0.0
        %2060 = vmatpush1.msra.mxu0 0.0
        %2061 = vmatprep.subr.mxu0 0.0
        %2062 = vmatpush1.msra.mxu0 0.0
        %2063 = vmatprep.subr.mxu0 0.0
        %2064 = vmatpush1.msra.mxu0 0.0
        %2065 = vmatprep.mubr.f32.mxu0 0.0
        %2066 = vmatmul.mubr.f32.gmra.mrb[0].mxu0 %v1977
        %v2067 = vpop.f32.mrb[0].mxu0
        %v2068 = vadd.f32 %v1999, %v2067
        %v2069 = vpop.f32.mrb[0].mxu0
        %2070 = vdwg.mxu0
        %v2071 = vadd.f32 %v1859, %v2068
        %s2072 = scalar_lea.vmem %s4, 1
        %v2073 = vld [vmem:[%s2072] sm:$0x1]
        %s2074 = scalar_lea.vmem %s5, 1
        %v2075 = vld [vmem:[%s2074] sm:$0x1]
        %v2076 = vsel %vm776, %v2071, 0.0
        %2077 = vadd.xlane.f32.xlu0 %v2076
        %v2078 = vpop.xlane.xlu0 %2077
        %v2079 = vmul.f32 %v2078, %v780
        %v2080 = vsub.f32 %v2071, %v2079
        %v2081 = vmul.f32 %v2080, %v2080
        %v2082 = vsel %vm776, %v2081, 0.0
        %2083 = vadd.xlane.f32.xlu0 %v2082
        %v2084 = vpop.xlane.xlu0 %2083
        %v2085 = vmul.f32 %v2084, %v780
        %v2086 = vadd.f32 %v2085, 1e-06
        %v2087 = vrsqrt.pop %v2086
        %v2088 = vmul.f32 %v2080, %v2087
        %v2090 = vlaneseq
        %v2091 = vshrl.u32 %v2090, 7
        %v2092 = vsub.s32 0, %v2091
        %v2093 = vrot.slane %v2073, %v2092
        %v2095 = vmul.f32 %v2088, %v2093
        %v2097 = vlaneseq
        %v2098 = vshrl.u32 %v2097, 7
        %v2099 = vsub.s32 0, %v2098
        %v2100 = vrot.slane %v2075, %v2099
        %v2102 = vadd.f32 %v2095, %v2100
        %s2103 = scalar_lea.vmem %s6, 32
        %v2104 = vld [vmem:[%s2103] sm:$0xff]
        %v2105 = vld [vmem:[%s2103 + $0x8] sm:$0xff]
        %v2106 = vld [vmem:[%s2103 + $0x10] sm:$0xff]
        %v2107 = vld [vmem:[%s2103 + $0x18] sm:$0xff]
        %s2108 = scalar_lea.vmem %s7, 1
        %v2109 = vld [vmem:[%s2108] sm:$0x1]
        %v2111 = vlaneseq
        %v2112 = vshrl.u32 %v2111, 7
        %v2113 = vsub.s32 0, %v2112
        %v2114 = vrot.slane %v2109, %v2113
        %v2117 = vsel %vm776, %v2102, 0
        %2119 = vmatprep.subr.mxu0 0.0
        %2120 = vmatpush1.msra.mxu0 %v2104
        %2121 = vmatprep.subr.mxu0 0.0
        %2122 = vmatpush1.msra.mxu0 %v2105
        %2123 = vmatprep.subr.mxu0 0.0
        %2124 = vmatpush1.msra.mxu0 %v2106
        %2125 = vmatprep.subr.mxu0 0.0
        %2126 = vmatpush1.msra.mxu0 %v2107
        %2127 = vmatprep.subr.mxu0 0.0
        %2128 = vmatpush1.msra.mxu0 0.0
        %2129 = vmatprep.subr.mxu0 0.0
        %2130 = vmatpush1.msra.mxu0 0.0
        %2131 = vmatprep.subr.mxu0 0.0
        %2132 = vmatpush1.msra.mxu0 0.0
        %2133 = vmatprep.subr.mxu0 0.0
        %2134 = vmatpush1.msra.mxu0 0.0
        %2135 = vmatprep.subr.mxu0 0.0
        %2136 = vmatpush1.msra.mxu0 0.0
        %2137 = vmatprep.subr.mxu0 0.0
        %2138 = vmatpush1.msra.mxu0 0.0
        %2139 = vmatprep.subr.mxu0 0.0
        %2140 = vmatpush1.msra.mxu0 0.0
        %2141 = vmatprep.subr.mxu0 0.0
        %2142 = vmatpush1.msra.mxu0 0.0
        %2143 = vmatprep.subr.mxu0 0.0
        %2144 = vmatpush1.msra.mxu0 0.0
        %2145 = vmatprep.subr.mxu0 0.0
        %2146 = vmatpush1.msra.mxu0 0.0
        %2147 = vmatprep.subr.mxu0 0.0
        %2148 = vmatpush1.msra.mxu0 0.0
        %2149 = vmatprep.subr.mxu0 0.0
        %2150 = vmatpush1.msra.mxu0 0.0
        %2151 = vmatprep.subr.mxu0 0.0
        %2152 = vmatpush1.msra.mxu0 0.0
        %2153 = vmatprep.subr.mxu0 0.0
        %2154 = vmatpush1.msra.mxu0 0.0
        %2155 = vmatprep.subr.mxu0 0.0
        %2156 = vmatpush1.msra.mxu0 0.0
        %2157 = vmatprep.subr.mxu0 0.0
        %2158 = vmatpush1.msra.mxu0 0.0
        %2159 = vmatprep.subr.mxu0 0.0
        %2160 = vmatpush1.msra.mxu0 0.0
        %2161 = vmatprep.subr.mxu0 0.0
        %2162 = vmatpush1.msra.mxu0 0.0
        %2163 = vmatprep.subr.mxu0 0.0
        %2164 = vmatpush1.msra.mxu0 0.0
        %2165 = vmatprep.subr.mxu0 0.0
        %2166 = vmatpush1.msra.mxu0 0.0
        %2167 = vmatprep.subr.mxu0 0.0
        %2168 = vmatpush1.msra.mxu0 0.0
        %2169 = vmatprep.subr.mxu0 0.0
        %2170 = vmatpush1.msra.mxu0 0.0
        %2171 = vmatprep.subr.mxu0 0.0
        %2172 = vmatpush1.msra.mxu0 0.0
        %2173 = vmatprep.subr.mxu0 0.0
        %2174 = vmatpush1.msra.mxu0 0.0
        %2175 = vmatprep.subr.mxu0 0.0
        %2176 = vmatpush1.msra.mxu0 0.0
        %2177 = vmatprep.subr.mxu0 0.0
        %2178 = vmatpush1.msra.mxu0 0.0
        %2179 = vmatprep.subr.mxu0 0.0
        %2180 = vmatpush1.msra.mxu0 0.0
        %2181 = vmatprep.subr.mxu0 0.0
        %2182 = vmatpush1.msra.mxu0 0.0
        %2183 = vmatprep.mubr.f32.mxu0 0.0
        %2184 = vmatmul.mubr.f32.gmra.mrb[0].mxu0 %v2117
        %v2185 = vpop.f32.mrb[0].mxu0
        %v2186 = vadd.f32 %v2114, %v2185
        %v2187 = vpop.f32.mrb[0].mxu0
        %2188 = vdwg.mxu0
        %s2189 = scalar_lea.vmem %s8, 32
        %v2190 = vld [vmem:[%s2189] sm:$0xff]
        %v2191 = vld [vmem:[%s2189 + $0x8] sm:$0xff]
        %v2192 = vld [vmem:[%s2189 + $0x10] sm:$0xff]
        %v2193 = vld [vmem:[%s2189 + $0x18] sm:$0xff]
        %2195 = vrot.lane.b32.xlu0 %v2186, 96
        %v2196 = vpop.permute.xlu0 %2195
        %v2197 = vsel %vm896, %v2186, 0
        %v2199 = vsel %vm896, %v2196, 0
        %2201 = vmatprep.subr.mxu0 0.0
        %2202 = vmatpush1.xpose.msra.mxu0 %v2199
        %2203 = vmatprep.subr.mxu0 0.0
        %2204 = vmatpush1.xpose.msra.mxu0 0.0
        %2205 = vmatprep.subr.mxu0 0.0
        %2206 = vmatpush1.xpose.msra.mxu0 0.0
        %2207 = vmatprep.subr.mxu0 0.0
        %2208 = vmatpush1.xpose.msra.mxu0 0.0
        %2209 = vmatprep.subr.mxu0 0.0
        %2210 = vmatpush1.xpose.msra.mxu0 0.0
        %2211 = vmatprep.subr.mxu0 0.0
        %2212 = vmatpush1.xpose.msra.mxu0 0.0
        %2213 = vmatprep.subr.mxu0 0.0
        %2214 = vmatpush1.xpose.msra.mxu0 0.0
        %2215 = vmatprep.subr.mxu0 0.0
        %2216 = vmatpush1.xpose.msra.mxu0 0.0
        %2217 = vmatprep.subr.mxu0 0.0
        %2218 = vmatpush1.xpose.msra.mxu0 0.0
        %2219 = vmatprep.subr.mxu0 0.0
        %2220 = vmatpush1.xpose.msra.mxu0 0.0
        %2221 = vmatprep.subr.mxu0 0.0
        %2222 = vmatpush1.xpose.msra.mxu0 0.0
        %2223 = vmatprep.subr.mxu0 0.0
        %2224 = vmatpush1.xpose.msra.mxu0 0.0
        %2225 = vmatprep.subr.mxu0 0.0
        %2226 = vmatpush1.xpose.msra.mxu0 0.0
        %2227 = vmatprep.subr.mxu0 0.0
        %2228 = vmatpush1.xpose.msra.mxu0 0.0
        %2229 = vmatprep.subr.mxu0 0.0
        %2230 = vmatpush1.xpose.msra.mxu0 0.0
        %2231 = vmatprep.subr.mxu0 0.0
        %2232 = vmatpush1.xpose.msra.mxu0 0.0
        %2233 = vmatprep.subr.mxu0 0.0
        %2234 = vmatpush1.xpose.msra.mxu0 0.0
        %2235 = vmatprep.subr.mxu0 0.0
        %2236 = vmatpush1.xpose.msra.mxu0 0.0
        %2237 = vmatprep.subr.mxu0 0.0
        %2238 = vmatpush1.xpose.msra.mxu0 0.0
        %2239 = vmatprep.subr.mxu0 0.0
        %2240 = vmatpush1.xpose.msra.mxu0 0.0
        %2241 = vmatprep.subr.mxu0 0.0
        %2242 = vmatpush1.xpose.msra.mxu0 0.0
        %2243 = vmatprep.subr.mxu0 0.0
        %2244 = vmatpush1.xpose.msra.mxu0 0.0
        %2245 = vmatprep.subr.mxu0 0.0
        %2246 = vmatpush1.xpose.msra.mxu0 0.0
        %2247 = vmatprep.subr.mxu0 0.0
        %2248 = vmatpush1.xpose.msra.mxu0 0.0
        %2249 = vmatprep.subr.mxu0 0.0
        %2250 = vmatpush1.xpose.msra.mxu0 0.0
        %2251 = vmatprep.subr.mxu0 0.0
        %2252 = vmatpush1.xpose.msra.mxu0 0.0
        %2253 = vmatprep.subr.mxu0 0.0
        %2254 = vmatpush1.xpose.msra.mxu0 0.0
        %2255 = vmatprep.subr.mxu0 0.0
        %2256 = vmatpush1.xpose.msra.mxu0 0.0
        %2257 = vmatprep.subr.mxu0 0.0
        %2258 = vmatpush1.xpose.msra.mxu0 0.0
        %2259 = vmatprep.subr.mxu0 0.0
        %2260 = vmatpush1.xpose.msra.mxu0 0.0
        %2261 = vmatprep.subr.mxu0 0.0
        %2262 = vmatpush1.xpose.msra.mxu0 0.0
        %2263 = vmatprep.subr.mxu0 0.0
        %2264 = vmatpush1.xpose.msra.mxu0 0.0
        %2265 = vmatprep.mubr.f32.mxu0 0.0
        %2266 = vmatmul.mubr.f32.gmra.mrb[0].mxu0 %v2197
        %v2267 = vpop.f32.mrb[0].mxu0
        %v2268 = vadd.f32 0.0, %v2267
        %v2269 = vpop.f32.mrb[0].mxu0
        %2270 = vdwg.mxu0
        %v2271 = vmul.f32 %v2268, 0.35355338
        %v2272 = vsel %vm896, %v2271, -inf
        %2273 = vmax.xlane.f32.xlu0 %v2272
        %v2274 = vpop.xlane.xlu0 %2273
        %v2275 = vsub.f32 %v2271, %v2274
        %v2276 = vmul.f32 %v2275, 1.442695
        %v2277 = vpow.pop %v2276
        %v2278 = vsel %vm896, %v2277, 0.0
        %2279 = vadd.xlane.f32.xlu0 %v2278
        %v2280 = vpop.xlane.xlu0 %2279
        %v2281 = vrcp.pop %v2280
        %v2282 = vmul.f32 %v2277, %v2281
        %2283 = vrot.lane.b32.xlu0 %v2186, 64
        %v2284 = vpop.permute.xlu0 %2283
        %v2287 = vsel %vm896, %v2282, 0
        %2289 = vmatprep.subr.mxu0 0.0
        %2290 = vmatpush1.msra.mxu0 %v2284
        %2291 = vmatprep.subr.mxu0 0.0
        %2292 = vmatpush1.msra.mxu0 0.0
        %2293 = vmatprep.subr.mxu0 0.0
        %2294 = vmatpush1.msra.mxu0 0.0
        %2295 = vmatprep.subr.mxu0 0.0
        %2296 = vmatpush1.msra.mxu0 0.0
        %2297 = vmatprep.subr.mxu0 0.0
        %2298 = vmatpush1.msra.mxu0 0.0
        %2299 = vmatprep.subr.mxu0 0.0
        %2300 = vmatpush1.msra.mxu0 0.0
        %2301 = vmatprep.subr.mxu0 0.0
        %2302 = vmatpush1.msra.mxu0 0.0
        %2303 = vmatprep.subr.mxu0 0.0
        %2304 = vmatpush1.msra.mxu0 0.0
        %2305 = vmatprep.subr.mxu0 0.0
        %2306 = vmatpush1.msra.mxu0 0.0
        %2307 = vmatprep.subr.mxu0 0.0
        %2308 = vmatpush1.msra.mxu0 0.0
        %2309 = vmatprep.subr.mxu0 0.0
        %2310 = vmatpush1.msra.mxu0 0.0
        %2311 = vmatprep.subr.mxu0 0.0
        %2312 = vmatpush1.msra.mxu0 0.0
        %2313 = vmatprep.subr.mxu0 0.0
        %2314 = vmatpush1.msra.mxu0 0.0
        %2315 = vmatprep.subr.mxu0 0.0
        %2316 = vmatpush1.msra.mxu0 0.0
        %2317 = vmatprep.subr.mxu0 0.0
        %2318 = vmatpush1.msra.mxu0 0.0
        %2319 = vmatprep.subr.mxu0 0.0
        %2320 = vmatpush1.msra.mxu0 0.0
        %2321 = vmatprep.subr.mxu0 0.0
        %2322 = vmatpush1.msra.mxu0 0.0
        %2323 = vmatprep.subr.mxu0 0.0
        %2324 = vmatpush1.msra.mxu0 0.0
        %2325 = vmatprep.subr.mxu0 0.0
        %2326 = vmatpush1.msra.mxu0 0.0
        %2327 = vmatprep.subr.mxu0 0.0
        %2328 = vmatpush1.msra.mxu0 0.0
        %2329 = vmatprep.subr.mxu0 0.0
        %2330 = vmatpush1.msra.mxu0 0.0
        %2331 = vmatprep.subr.mxu0 0.0
        %2332 = vmatpush1.msra.mxu0 0.0
        %2333 = vmatprep.subr.mxu0 0.0
        %2334 = vmatpush1.msra.mxu0 0.0
        %2335 = vmatprep.subr.mxu0 0.0
        %2336 = vmatpush1.msra.mxu0 0.0
        %2337 = vmatprep.subr.mxu0 0.0
        %2338 = vmatpush1.msra.mxu0 0.0
        %2339 = vmatprep.subr.mxu0 0.0
        %2340 = vmatpush1.msra.mxu0 0.0
        %2341 = vmatprep.subr.mxu0 0.0
        %2342 = vmatpush1.msra.mxu0 0.0
        %2343 = vmatprep.subr.mxu0 0.0
        %2344 = vmatpush1.msra.mxu0 0.0
        %2345 = vmatprep.subr.mxu0 0.0
        %2346 = vmatpush1.msra.mxu0 0.0
        %2347 = vmatprep.subr.mxu0 0.0
        %2348 = vmatpush1.msra.mxu0 0.0
        %2349 = vmatprep.subr.mxu0 0.0
        %2350 = vmatpush1.msra.mxu0 0.0
        %2351 = vmatprep.subr.mxu0 0.0
        %2352 = vmatpush1.msra.mxu0 0.0
        %2353 = vmatprep.mubr.f32.mxu0 0.0
        %2354 = vmatmul.mubr.f32.gmra.mrb[0].mxu0 %v2287
        %v2355 = vpop.f32.mrb[0].mxu0
        %v2356 = vadd.f32 0.0, %v2355
        %v2357 = vpop.f32.mrb[0].mxu0
        %2358 = vdwg.mxu0
        %2359 = vrot.lane.b32.xlu0 %v2186, 120
        %v2360 = vpop.permute.xlu0 %2359
        %2361 = vrot.lane.b32.xlu0 %v2186, 88
        %v2362 = vpop.permute.xlu0 %2361
        %v2363 = vsel %vm896, %v2360, 0
        %v2365 = vsel %vm896, %v2362, 0
        %2367 = vmatprep.subr.mxu0 0.0
        %2368 = vmatpush1.xpose.msra.mxu0 %v2365
        %2369 = vmatprep.subr.mxu0 0.0
        %2370 = vmatpush1.xpose.msra.mxu0 0.0
        %2371 = vmatprep.subr.mxu0 0.0
        %2372 = vmatpush1.xpose.msra.mxu0 0.0
        %2373 = vmatprep.subr.mxu0 0.0
        %2374 = vmatpush1.xpose.msra.mxu0 0.0
        %2375 = vmatprep.subr.mxu0 0.0
        %2376 = vmatpush1.xpose.msra.mxu0 0.0
        %2377 = vmatprep.subr.mxu0 0.0
        %2378 = vmatpush1.xpose.msra.mxu0 0.0
        %2379 = vmatprep.subr.mxu0 0.0
        %2380 = vmatpush1.xpose.msra.mxu0 0.0
        %2381 = vmatprep.subr.mxu0 0.0
        %2382 = vmatpush1.xpose.msra.mxu0 0.0
        %2383 = vmatprep.subr.mxu0 0.0
        %2384 = vmatpush1.xpose.msra.mxu0 0.0
        %2385 = vmatprep.subr.mxu0 0.0
        %2386 = vmatpush1.xpose.msra.mxu0 0.0
        %2387 = vmatprep.subr.mxu0 0.0
        %2388 = vmatpush1.xpose.msra.mxu0 0.0
        %2389 = vmatprep.subr.mxu0 0.0
        %2390 = vmatpush1.xpose.msra.mxu0 0.0
        %2391 = vmatprep.subr.mxu0 0.0
        %2392 = vmatpush1.xpose.msra.mxu0 0.0
        %2393 = vmatprep.subr.mxu0 0.0
        %2394 = vmatpush1.xpose.msra.mxu0 0.0
        %2395 = vmatprep.subr.mxu0 0.0
        %2396 = vmatpush1.xpose.msra.mxu0 0.0
        %2397 = vmatprep.subr.mxu0 0.0
        %2398 = vmatpush1.xpose.msra.mxu0 0.0
        %2399 = vmatprep.subr.mxu0 0.0
        %2400 = vmatpush1.xpose.msra.mxu0 0.0
        %2401 = vmatprep.subr.mxu0 0.0
        %2402 = vmatpush1.xpose.msra.mxu0 0.0
        %2403 = vmatprep.subr.mxu0 0.0
        %2404 = vmatpush1.xpose.msra.mxu0 0.0
        %2405 = vmatprep.subr.mxu0 0.0
        %2406 = vmatpush1.xpose.msra.mxu0 0.0
        %2407 = vmatprep.subr.mxu0 0.0
        %2408 = vmatpush1.xpose.msra.mxu0 0.0
        %2409 = vmatprep.subr.mxu0 0.0
        %2410 = vmatpush1.xpose.msra.mxu0 0.0
        %2411 = vmatprep.subr.mxu0 0.0
        %2412 = vmatpush1.xpose.msra.mxu0 0.0
        %2413 = vmatprep.subr.mxu0 0.0
        %2414 = vmatpush1.xpose.msra.mxu0 0.0
        %2415 = vmatprep.subr.mxu0 0.0
        %2416 = vmatpush1.xpose.msra.mxu0 0.0
        %2417 = vmatprep.subr.mxu0 0.0
        %2418 = vmatpush1.xpose.msra.mxu0 0.0
        %2419 = vmatprep.subr.mxu0 0.0
        %2420 = vmatpush1.xpose.msra.mxu0 0.0
        %2421 = vmatprep.subr.mxu0 0.0
        %2422 = vmatpush1.xpose.msra.mxu0 0.0
        %2423 = vmatprep.subr.mxu0 0.0
        %2424 = vmatpush1.xpose.msra.mxu0 0.0
        %2425 = vmatprep.subr.mxu0 0.0
        %2426 = vmatpush1.xpose.msra.mxu0 0.0
        %2427 = vmatprep.subr.mxu0 0.0
        %2428 = vmatpush1.xpose.msra.mxu0 0.0
        %2429 = vmatprep.subr.mxu0 0.0
        %2430 = vmatpush1.xpose.msra.mxu0 0.0
        %2431 = vmatprep.mubr.f32.mxu0 0.0
        %2432 = vmatmul.mubr.f32.gmra.mrb[0].mxu0 %v2363
        %v2433 = vpop.f32.mrb[0].mxu0
        %v2434 = vadd.f32 0.0, %v2433
        %v2435 = vpop.f32.mrb[0].mxu0
        %2436 = vdwg.mxu0
        %v2437 = vmul.f32 %v2434, 0.35355338
        %v2438 = vsel %vm896, %v2437, -inf
        %2439 = vmax.xlane.f32.xlu0 %v2438
        %v2440 = vpop.xlane.xlu0 %2439
        %v2441 = vsub.f32 %v2437, %v2440
        %v2442 = vmul.f32 %v2441, 1.442695
        %v2443 = vpow.pop %v2442
        %v2444 = vsel %vm896, %v2443, 0.0
        %2445 = vadd.xlane.f32.xlu0 %v2444
        %v2446 = vpop.xlane.xlu0 %2445
        %v2447 = vrcp.pop %v2446
        %v2448 = vmul.f32 %v2443, %v2447
        %2449 = vrot.lane.b32.xlu0 %v2186, 56
        %v2450 = vpop.permute.xlu0 %2449
        %v2453 = vsel %vm896, %v2448, 0
        %2455 = vmatprep.subr.mxu0 0.0
        %2456 = vmatpush1.msra.mxu0 %v2450
        %2457 = vmatprep.subr.mxu0 0.0
        %2458 = vmatpush1.msra.mxu0 0.0
        %2459 = vmatprep.subr.mxu0 0.0
        %2460 = vmatpush1.msra.mxu0 0.0
        %2461 = vmatprep.subr.mxu0 0.0
        %2462 = vmatpush1.msra.mxu0 0.0
        %2463 = vmatprep.subr.mxu0 0.0
        %2464 = vmatpush1.msra.mxu0 0.0
        %2465 = vmatprep.subr.mxu0 0.0
        %2466 = vmatpush1.msra.mxu0 0.0
        %2467 = vmatprep.subr.mxu0 0.0
        %2468 = vmatpush1.msra.mxu0 0.0
        %2469 = vmatprep.subr.mxu0 0.0
        %2470 = vmatpush1.msra.mxu0 0.0
        %2471 = vmatprep.subr.mxu0 0.0
        %2472 = vmatpush1.msra.mxu0 0.0
        %2473 = vmatprep.subr.mxu0 0.0
        %2474 = vmatpush1.msra.mxu0 0.0
        %2475 = vmatprep.subr.mxu0 0.0
        %2476 = vmatpush1.msra.mxu0 0.0
        %2477 = vmatprep.subr.mxu0 0.0
        %2478 = vmatpush1.msra.mxu0 0.0
        %2479 = vmatprep.subr.mxu0 0.0
        %2480 = vmatpush1.msra.mxu0 0.0
        %2481 = vmatprep.subr.mxu0 0.0
        %2482 = vmatpush1.msra.mxu0 0.0
        %2483 = vmatprep.subr.mxu0 0.0
        %2484 = vmatpush1.msra.mxu0 0.0
        %2485 = vmatprep.subr.mxu0 0.0
        %2486 = vmatpush1.msra.mxu0 0.0
        %2487 = vmatprep.subr.mxu0 0.0
        %2488 = vmatpush1.msra.mxu0 0.0
        %2489 = vmatprep.subr.mxu0 0.0
        %2490 = vmatpush1.msra.mxu0 0.0
        %2491 = vmatprep.subr.mxu0 0.0
        %2492 = vmatpush1.msra.mxu0 0.0
        %2493 = vmatprep.subr.mxu0 0.0
        %2494 = vmatpush1.msra.mxu0 0.0
        %2495 = vmatprep.subr.mxu0 0.0
        %2496 = vmatpush1.msra.mxu0 0.0
        %2497 = vmatprep.subr.mxu0 0.0
        %2498 = vmatpush1.msra.mxu0 0.0
        %2499 = vmatprep.subr.mxu0 0.0
        %2500 = vmatpush1.msra.mxu0 0.0
        %2501 = vmatprep.subr.mxu0 0.0
        %2502 = vmatpush1.msra.mxu0 0.0
        %2503 = vmatprep.subr.mxu0 0.0
        %2504 = vmatpush1.msra.mxu0 0.0
        %2505 = vmatprep.subr.mxu0 0.0
        %2506 = vmatpush1.msra.mxu0 0.0
        %2507 = vmatprep.subr.mxu0 0.0
        %2508 = vmatpush1.msra.mxu0 0.0
        %2509 = vmatprep.subr.mxu0 0.0
        %2510 = vmatpush1.msra.mxu0 0.0
        %2511 = vmatprep.subr.mxu0 0.0
        %2512 = vmatpush1.msra.mxu0 0.0
        %2513 = vmatprep.subr.mxu0 0.0
        %2514 = vmatpush1.msra.mxu0 0.0
        %2515 = vmatprep.subr.mxu0 0.0
        %2516 = vmatpush1.msra.mxu0 0.0
        %2517 = vmatprep.subr.mxu0 0.0
        %2518 = vmatpush1.msra.mxu0 0.0
        %2519 = vmatprep.mubr.f32.mxu0 0.0
        %2520 = vmatmul.mubr.f32.gmra.mrb[0].mxu0 %v2453
        %v2521 = vpop.f32.mrb[0].mxu0
        %v2522 = vadd.f32 0.0, %v2521
        %v2523 = vpop.f32.mrb[0].mxu0
        %2524 = vdwg.mxu0
        %v2526 = vsel %vm896, %v2522, 0
        %2528 = vmatprep.subr.mxu0 0.0
        %2529 = vmatpush1.msra.mxu0 %v2191
        %2530 = vmatprep.subr.mxu0 0.0
        %2531 = vmatpush1.msra.mxu0 0.0
        %2532 = vmatprep.subr.mxu0 0.0
        %2533 = vmatpush1.msra.mxu0 0.0
        %2534 = vmatprep.subr.mxu0 0.0
        %2535 = vmatpush1.msra.mxu0 0.0
        %2536 = vmatprep.subr.mxu0 0.0
        %2537 = vmatpush1.msra.mxu0 0.0
        %2538 = vmatprep.subr.mxu0 0.0
        %2539 = vmatpush1.msra.mxu0 0.0
        %2540 = vmatprep.subr.mxu0 0.0
        %2541 = vmatpush1.msra.mxu0 0.0
        %2542 = vmatprep.subr.mxu0 0.0
        %2543 = vmatpush1.msra.mxu0 0.0
        %2544 = vmatprep.subr.mxu0 0.0
        %2545 = vmatpush1.msra.mxu0 0.0
        %2546 = vmatprep.subr.mxu0 0.0
        %2547 = vmatpush1.msra.mxu0 0.0
        %2548 = vmatprep.subr.mxu0 0.0
        %2549 = vmatpush1.msra.mxu0 0.0
        %2550 = vmatprep.subr.mxu0 0.0
        %2551 = vmatpush1.msra.mxu0 0.0
        %2552 = vmatprep.subr.mxu0 0.0
        %2553 = vmatpush1.msra.mxu0 0.0
        %2554 = vmatprep.subr.mxu0 0.0
        %2555 = vmatpush1.msra.mxu0 0.0
        %2556 = vmatprep.subr.mxu0 0.0
        %2557 = vmatpush1.msra.mxu0 0.0
        %2558 = vmatprep.subr.mxu0 0.0
        %2559 = vmatpush1.msra.mxu0 0.0
        %2560 = vmatprep.subr.mxu0 0.0
        %2561 = vmatpush1.msra.mxu0 0.0
        %2562 = vmatprep.subr.mxu0 0.0
        %2563 = vmatpush1.msra.mxu0 0.0
        %2564 = vmatprep.subr.mxu0 0.0
        %2565 = vmatpush1.msra.mxu0 0.0
        %2566 = vmatprep.subr.mxu0 0.0
        %2567 = vmatpush1.msra.mxu0 0.0
        %2568 = vmatprep.subr.mxu0 0.0
        %2569 = vmatpush1.msra.mxu0 0.0
        %2570 = vmatprep.subr.mxu0 0.0
        %2571 = vmatpush1.msra.mxu0 0.0
        %2572 = vmatprep.subr.mxu0 0.0
        %2573 = vmatpush1.msra.mxu0 0.0
        %2574 = vmatprep.subr.mxu0 0.0
        %2575 = vmatpush1.msra.mxu0 0.0
        %2576 = vmatprep.subr.mxu0 0.0
        %2577 = vmatpush1.msra.mxu0 0.0
        %2578 = vmatprep.subr.mxu0 0.0
        %2579 = vmatpush1.msra.mxu0 0.0
        %2580 = vmatprep.subr.mxu0 0.0
        %2581 = vmatpush1.msra.mxu0 0.0
        %2582 = vmatprep.subr.mxu0 0.0
        %2583 = vmatpush1.msra.mxu0 0.0
        %2584 = vmatprep.subr.mxu0 0.0
        %2585 = vmatpush1.msra.mxu0 0.0
        %2586 = vmatprep.subr.mxu0 0.0
        %2587 = vmatpush1.msra.mxu0 0.0
        %2588 = vmatprep.subr.mxu0 0.0
        %2589 = vmatpush1.msra.mxu0 0.0
        %2590 = vmatprep.subr.mxu0 0.0
        %2591 = vmatpush1.msra.mxu0 0.0
        %2592 = vmatprep.mubr.f32.mxu0 0.0
        %2593 = vmatmul.mubr.f32.gmra.mrb[0].mxu0 %v2526
        %v2594 = vpop.f32.mrb[0].mxu0
        %v2595 = vadd.f32 0.0, %v2594
        %v2596 = vpop.f32.mrb[0].mxu0
        %2597 = vdwg.mxu0
        %v2599 = vsel %vm896, %v2356, 0
        %2601 = vmatprep.subr.mxu0 0.0
        %2602 = vmatpush1.msra.mxu0 %v2190
        %2603 = vmatprep.subr.mxu0 0.0
        %2604 = vmatpush1.msra.mxu0 0.0
        %2605 = vmatprep.subr.mxu0 0.0
        %2606 = vmatpush1.msra.mxu0 0.0
        %2607 = vmatprep.subr.mxu0 0.0
        %2608 = vmatpush1.msra.mxu0 0.0
        %2609 = vmatprep.subr.mxu0 0.0
        %2610 = vmatpush1.msra.mxu0 0.0
        %2611 = vmatprep.subr.mxu0 0.0
        %2612 = vmatpush1.msra.mxu0 0.0
        %2613 = vmatprep.subr.mxu0 0.0
        %2614 = vmatpush1.msra.mxu0 0.0
        %2615 = vmatprep.subr.mxu0 0.0
        %2616 = vmatpush1.msra.mxu0 0.0
        %2617 = vmatprep.subr.mxu0 0.0
        %2618 = vmatpush1.msra.mxu0 0.0
        %2619 = vmatprep.subr.mxu0 0.0
        %2620 = vmatpush1.msra.mxu0 0.0
        %2621 = vmatprep.subr.mxu0 0.0
        %2622 = vmatpush1.msra.mxu0 0.0
        %2623 = vmatprep.subr.mxu0 0.0
        %2624 = vmatpush1.msra.mxu0 0.0
        %2625 = vmatprep.subr.mxu0 0.0
        %2626 = vmatpush1.msra.mxu0 0.0
        %2627 = vmatprep.subr.mxu0 0.0
        %2628 = vmatpush1.msra.mxu0 0.0
        %2629 = vmatprep.subr.mxu0 0.0
        %2630 = vmatpush1.msra.mxu0 0.0
        %2631 = vmatprep.subr.mxu0 0.0
        %2632 = vmatpush1.msra.mxu0 0.0
        %2633 = vmatprep.subr.mxu0 0.0
        %2634 = vmatpush1.msra.mxu0 0.0
        %2635 = vmatprep.subr.mxu0 0.0
        %2636 = vmatpush1.msra.mxu0 0.0
        %2637 = vmatprep.subr.mxu0 0.0
        %2638 = vmatpush1.msra.mxu0 0.0
        %2639 = vmatprep.subr.mxu0 0.0
        %2640 = vmatpush1.msra.mxu0 0.0
        %2641 = vmatprep.subr.mxu0 0.0
        %2642 = vmatpush1.msra.mxu0 0.0
        %2643 = vmatprep.subr.mxu0 0.0
        %2644 = vmatpush1.msra.mxu0 0.0
        %2645 = vmatprep.subr.mxu0 0.0
        %2646 = vmatpush1.msra.mxu0 0.0
        %2647 = vmatprep.subr.mxu0 0.0
        %2648 = vmatpush1.msra.mxu0 0.0
        %2649 = vmatprep.subr.mxu0 0.0
        %2650 = vmatpush1.msra.mxu0 0.0
        %2651 = vmatprep.subr.mxu0 0.0
        %2652 = vmatpush1.msra.mxu0 0.0
        %2653 = vmatprep.subr.mxu0 0.0
        %2654 = vmatpush1.msra.mxu0 0.0
        %2655 = vmatprep.subr.mxu0 0.0
        %2656 = vmatpush1.msra.mxu0 0.0
        %2657 = vmatprep.subr.mxu0 0.0
        %2658 = vmatpush1.msra.mxu0 0.0
        %2659 = vmatprep.subr.mxu0 0.0
        %2660 = vmatpush1.msra.mxu0 0.0
        %2661 = vmatprep.subr.mxu0 0.0
        %2662 = vmatpush1.msra.mxu0 0.0
        %2663 = vmatprep.subr.mxu0 0.0
        %2664 = vmatpush1.msra.mxu0 0.0
        %2665 = vmatprep.mubr.f32.mxu0 0.0
        %2666 = vmatmul.mubr.f32.gmra.mrb[0].mxu0 %v2599
        %v2667 = vpop.f32.mrb[0].mxu0
        %v2668 = vadd.f32 %v2595, %v2667
        %v2669 = vpop.f32.mrb[0].mxu0
        %2670 = vdwg.mxu0
        %2671 = vrot.lane.b32.xlu0 %v2186, 112
        %v2672 = vpop.permute.xlu0 %2671
        %2673 = vrot.lane.b32.xlu0 %v2186, 80
        %v2674 = vpop.permute.xlu0 %2673
        %v2675 = vsel %vm896, %v2672, 0
        %v2677 = vsel %vm896, %v2674, 0
        %2679 = vmatprep.subr.mxu0 0.0
        %2680 = vmatpush1.xpose.msra.mxu0 %v2677
        %2681 = vmatprep.subr.mxu0 0.0
        %2682 = vmatpush1.xpose.msra.mxu0 0.0
        %2683 = vmatprep.subr.mxu0 0.0
        %2684 = vmatpush1.xpose.msra.mxu0 0.0
        %2685 = vmatprep.subr.mxu0 0.0
        %2686 = vmatpush1.xpose.msra.mxu0 0.0
        %2687 = vmatprep.subr.mxu0 0.0
        %2688 = vmatpush1.xpose.msra.mxu0 0.0
        %2689 = vmatprep.subr.mxu0 0.0
        %2690 = vmatpush1.xpose.msra.mxu0 0.0
        %2691 = vmatprep.subr.mxu0 0.0
        %2692 = vmatpush1.xpose.msra.mxu0 0.0
        %2693 = vmatprep.subr.mxu0 0.0
        %2694 = vmatpush1.xpose.msra.mxu0 0.0
        %2695 = vmatprep.subr.mxu0 0.0
        %2696 = vmatpush1.xpose.msra.mxu0 0.0
        %2697 = vmatprep.subr.mxu0 0.0
        %2698 = vmatpush1.xpose.msra.mxu0 0.0
        %2699 = vmatprep.subr.mxu0 0.0
        %2700 = vmatpush1.xpose.msra.mxu0 0.0
        %2701 = vmatprep.subr.mxu0 0.0
        %2702 = vmatpush1.xpose.msra.mxu0 0.0
        %2703 = vmatprep.subr.mxu0 0.0
        %2704 = vmatpush1.xpose.msra.mxu0 0.0
        %2705 = vmatprep.subr.mxu0 0.0
        %2706 = vmatpush1.xpose.msra.mxu0 0.0
        %2707 = vmatprep.subr.mxu0 0.0
        %2708 = vmatpush1.xpose.msra.mxu0 0.0
        %2709 = vmatprep.subr.mxu0 0.0
        %2710 = vmatpush1.xpose.msra.mxu0 0.0
        %2711 = vmatprep.subr.mxu0 0.0
        %2712 = vmatpush1.xpose.msra.mxu0 0.0
        %2713 = vmatprep.subr.mxu0 0.0
        %2714 = vmatpush1.xpose.msra.mxu0 0.0
        %2715 = vmatprep.subr.mxu0 0.0
        %2716 = vmatpush1.xpose.msra.mxu0 0.0
        %2717 = vmatprep.subr.mxu0 0.0
        %2718 = vmatpush1.xpose.msra.mxu0 0.0
        %2719 = vmatprep.subr.mxu0 0.0
        %2720 = vmatpush1.xpose.msra.mxu0 0.0
        %2721 = vmatprep.subr.mxu0 0.0
        %2722 = vmatpush1.xpose.msra.mxu0 0.0
        %2723 = vmatprep.subr.mxu0 0.0
        %2724 = vmatpush1.xpose.msra.mxu0 0.0
        %2725 = vmatprep.subr.mxu0 0.0
        %2726 = vmatpush1.xpose.msra.mxu0 0.0
        %2727 = vmatprep.subr.mxu0 0.0
        %2728 = vmatpush1.xpose.msra.mxu0 0.0
        %2729 = vmatprep.subr.mxu0 0.0
        %2730 = vmatpush1.xpose.msra.mxu0 0.0
        %2731 = vmatprep.subr.mxu0 0.0
        %2732 = vmatpush1.xpose.msra.mxu0 0.0
        %2733 = vmatprep.subr.mxu0 0.0
        %2734 = vmatpush1.xpose.msra.mxu0 0.0
        %2735 = vmatprep.subr.mxu0 0.0
        %2736 = vmatpush1.xpose.msra.mxu0 0.0
        %2737 = vmatprep.subr.mxu0 0.0
        %2738 = vmatpush1.xpose.msra.mxu0 0.0
        %2739 = vmatprep.subr.mxu0 0.0
        %2740 = vmatpush1.xpose.msra.mxu0 0.0
        %2741 = vmatprep.subr.mxu0 0.0
        %2742 = vmatpush1.xpose.msra.mxu0 0.0
        %2743 = vmatprep.mubr.f32.mxu0 0.0
        %2744 = vmatmul.mubr.f32.gmra.mrb[0].mxu0 %v2675
        %v2745 = vpop.f32.mrb[0].mxu0
        %v2746 = vadd.f32 0.0, %v2745
        %v2747 = vpop.f32.mrb[0].mxu0
        %2748 = vdwg.mxu0
        %v2749 = vmul.f32 %v2746, 0.35355338
        %v2750 = vsel %vm896, %v2749, -inf
        %2751 = vmax.xlane.f32.xlu0 %v2750
        %v2752 = vpop.xlane.xlu0 %2751
        %v2753 = vsub.f32 %v2749, %v2752
        %v2754 = vmul.f32 %v2753, 1.442695
        %v2755 = vpow.pop %v2754
        %v2756 = vsel %vm896, %v2755, 0.0
        %2757 = vadd.xlane.f32.xlu0 %v2756
        %v2758 = vpop.xlane.xlu0 %2757
        %v2759 = vrcp.pop %v2758
        %v2760 = vmul.f32 %v2755, %v2759
        %2761 = vrot.lane.b32.xlu0 %v2186, 48
        %v2762 = vpop.permute.xlu0 %2761
        %v2765 = vsel %vm896, %v2760, 0
        %2767 = vmatprep.subr.mxu0 0.0
        %2768 = vmatpush1.msra.mxu0 %v2762
        %2769 = vmatprep.subr.mxu0 0.0
        %2770 = vmatpush1.msra.mxu0 0.0
        %2771 = vmatprep.subr.mxu0 0.0
        %2772 = vmatpush1.msra.mxu0 0.0
        %2773 = vmatprep.subr.mxu0 0.0
        %2774 = vmatpush1.msra.mxu0 0.0
        %2775 = vmatprep.subr.mxu0 0.0
        %2776 = vmatpush1.msra.mxu0 0.0
        %2777 = vmatprep.subr.mxu0 0.0
        %2778 = vmatpush1.msra.mxu0 0.0
        %2779 = vmatprep.subr.mxu0 0.0
        %2780 = vmatpush1.msra.mxu0 0.0
        %2781 = vmatprep.subr.mxu0 0.0
        %2782 = vmatpush1.msra.mxu0 0.0
        %2783 = vmatprep.subr.mxu0 0.0
        %2784 = vmatpush1.msra.mxu0 0.0
        %2785 = vmatprep.subr.mxu0 0.0
        %2786 = vmatpush1.msra.mxu0 0.0
        %2787 = vmatprep.subr.mxu0 0.0
        %2788 = vmatpush1.msra.mxu0 0.0
        %2789 = vmatprep.subr.mxu0 0.0
        %2790 = vmatpush1.msra.mxu0 0.0
        %2791 = vmatprep.subr.mxu0 0.0
        %2792 = vmatpush1.msra.mxu0 0.0
        %2793 = vmatprep.subr.mxu0 0.0
        %2794 = vmatpush1.msra.mxu0 0.0
        %2795 = vmatprep.subr.mxu0 0.0
        %2796 = vmatpush1.msra.mxu0 0.0
        %2797 = vmatprep.subr.mxu0 0.0
        %2798 = vmatpush1.msra.mxu0 0.0
        %2799 = vmatprep.subr.mxu0 0.0
        %2800 = vmatpush1.msra.mxu0 0.0
        %2801 = vmatprep.subr.mxu0 0.0
        %2802 = vmatpush1.msra.mxu0 0.0
        %2803 = vmatprep.subr.mxu0 0.0
        %2804 = vmatpush1.msra.mxu0 0.0
        %2805 = vmatprep.subr.mxu0 0.0
        %2806 = vmatpush1.msra.mxu0 0.0
        %2807 = vmatprep.subr.mxu0 0.0
        %2808 = vmatpush1.msra.mxu0 0.0
        %2809 = vmatprep.subr.mxu0 0.0
        %2810 = vmatpush1.msra.mxu0 0.0
        %2811 = vmatprep.subr.mxu0 0.0
        %2812 = vmatpush1.msra.mxu0 0.0
        %2813 = vmatprep.subr.mxu0 0.0
        %2814 = vmatpush1.msra.mxu0 0.0
        %2815 = vmatprep.subr.mxu0 0.0
        %2816 = vmatpush1.msra.mxu0 0.0
        %2817 = vmatprep.subr.mxu0 0.0
        %2818 = vmatpush1.msra.mxu0 0.0
        %2819 = vmatprep.subr.mxu0 0.0
        %2820 = vmatpush1.msra.mxu0 0.0
        %2821 = vmatprep.subr.mxu0 0.0
        %2822 = vmatpush1.msra.mxu0 0.0
        %2823 = vmatprep.subr.mxu0 0.0
        %2824 = vmatpush1.msra.mxu0 0.0
        %2825 = vmatprep.subr.mxu0 0.0
        %2826 = vmatpush1.msra.mxu0 0.0
        %2827 = vmatprep.subr.mxu0 0.0
        %2828 = vmatpush1.msra.mxu0 0.0
        %2829 = vmatprep.subr.mxu0 0.0
        %2830 = vmatpush1.msra.mxu0 0.0
        %2831 = vmatprep.mubr.f32.mxu0 0.0
        %2832 = vmatmul.mubr.f32.gmra.mrb[0].mxu0 %v2765
        %v2833 = vpop.f32.mrb[0].mxu0
        %v2834 = vadd.f32 0.0, %v2833
        %v2835 = vpop.f32.mrb[0].mxu0
        %2836 = vdwg.mxu0
        %v2838 = vsel %vm896, %v2834, 0
        %2840 = vmatprep.subr.mxu0 0.0
        %2841 = vmatpush1.msra.mxu0 %v2192
        %2842 = vmatprep.subr.mxu0 0.0
        %2843 = vmatpush1.msra.mxu0 0.0
        %2844 = vmatprep.subr.mxu0 0.0
        %2845 = vmatpush1.msra.mxu0 0.0
        %2846 = vmatprep.subr.mxu0 0.0
        %2847 = vmatpush1.msra.mxu0 0.0
        %2848 = vmatprep.subr.mxu0 0.0
        %2849 = vmatpush1.msra.mxu0 0.0
        %2850 = vmatprep.subr.mxu0 0.0
        %2851 = vmatpush1.msra.mxu0 0.0
        %2852 = vmatprep.subr.mxu0 0.0
        %2853 = vmatpush1.msra.mxu0 0.0
        %2854 = vmatprep.subr.mxu0 0.0
        %2855 = vmatpush1.msra.mxu0 0.0
        %2856 = vmatprep.subr.mxu0 0.0
        %2857 = vmatpush1.msra.mxu0 0.0
        %2858 = vmatprep.subr.mxu0 0.0
        %2859 = vmatpush1.msra.mxu0 0.0
        %2860 = vmatprep.subr.mxu0 0.0
        %2861 = vmatpush1.msra.mxu0 0.0
        %2862 = vmatprep.subr.mxu0 0.0
        %2863 = vmatpush1.msra.mxu0 0.0
        %2864 = vmatprep.subr.mxu0 0.0
        %2865 = vmatpush1.msra.mxu0 0.0
        %2866 = vmatprep.subr.mxu0 0.0
        %2867 = vmatpush1.msra.mxu0 0.0
        %2868 = vmatprep.subr.mxu0 0.0
        %2869 = vmatpush1.msra.mxu0 0.0
        %2870 = vmatprep.subr.mxu0 0.0
        %2871 = vmatpush1.msra.mxu0 0.0
        %2872 = vmatprep.subr.mxu0 0.0
        %2873 = vmatpush1.msra.mxu0 0.0
        %2874 = vmatprep.subr.mxu0 0.0
        %2875 = vmatpush1.msra.mxu0 0.0
        %2876 = vmatprep.subr.mxu0 0.0
        %2877 = vmatpush1.msra.mxu0 0.0
        %2878 = vmatprep.subr.mxu0 0.0
        %2879 = vmatpush1.msra.mxu0 0.0
        %2880 = vmatprep.subr.mxu0 0.0
        %2881 = vmatpush1.msra.mxu0 0.0
        %2882 = vmatprep.subr.mxu0 0.0
        %2883 = vmatpush1.msra.mxu0 0.0
        %2884 = vmatprep.subr.mxu0 0.0
        %2885 = vmatpush1.msra.mxu0 0.0
        %2886 = vmatprep.subr.mxu0 0.0
        %2887 = vmatpush1.msra.mxu0 0.0
        %2888 = vmatprep.subr.mxu0 0.0
        %2889 = vmatpush1.msra.mxu0 0.0
        %2890 = vmatprep.subr.mxu0 0.0
        %2891 = vmatpush1.msra.mxu0 0.0
        %2892 = vmatprep.subr.mxu0 0.0
        %2893 = vmatpush1.msra.mxu0 0.0
        %2894 = vmatprep.subr.mxu0 0.0
        %2895 = vmatpush1.msra.mxu0 0.0
        %2896 = vmatprep.subr.mxu0 0.0
        %2897 = vmatpush1.msra.mxu0 0.0
        %2898 = vmatprep.subr.mxu0 0.0
        %2899 = vmatpush1.msra.mxu0 0.0
        %2900 = vmatprep.subr.mxu0 0.0
        %2901 = vmatpush1.msra.mxu0 0.0
        %2902 = vmatprep.subr.mxu0 0.0
        %2903 = vmatpush1.msra.mxu0 0.0
        %2904 = vmatprep.mubr.f32.mxu0 0.0
        %2905 = vmatmul.mubr.f32.gmra.mrb[0].mxu0 %v2838
        %v2906 = vpop.f32.mrb[0].mxu0
        %v2907 = vadd.f32 0.0, %v2906
        %v2908 = vpop.f32.mrb[0].mxu0
        %2909 = vdwg.mxu0
        %v2910 = vadd.f32 %v2668, %v2907
        %2911 = vrot.lane.b32.xlu0 %v2186, 104
        %v2912 = vpop.permute.xlu0 %2911
        %2913 = vrot.lane.b32.xlu0 %v2186, 72
        %v2914 = vpop.permute.xlu0 %2913
        %v2915 = vsel %vm896, %v2912, 0
        %v2917 = vsel %vm896, %v2914, 0
        %2919 = vmatprep.subr.mxu0 0.0
        %2920 = vmatpush1.xpose.msra.mxu0 %v2917
        %2921 = vmatprep.subr.mxu0 0.0
        %2922 = vmatpush1.xpose.msra.mxu0 0.0
        %2923 = vmatprep.subr.mxu0 0.0
        %2924 = vmatpush1.xpose.msra.mxu0 0.0
        %2925 = vmatprep.subr.mxu0 0.0
        %2926 = vmatpush1.xpose.msra.mxu0 0.0
        %2927 = vmatprep.subr.mxu0 0.0
        %2928 = vmatpush1.xpose.msra.mxu0 0.0
        %2929 = vmatprep.subr.mxu0 0.0
        %2930 = vmatpush1.xpose.msra.mxu0 0.0
        %2931 = vmatprep.subr.mxu0 0.0
        %2932 = vmatpush1.xpose.msra.mxu0 0.0
        %2933 = vmatprep.subr.mxu0 0.0
        %2934 = vmatpush1.xpose.msra.mxu0 0.0
        %2935 = vmatprep.subr.mxu0 0.0
        %2936 = vmatpush1.xpose.msra.mxu0 0.0
        %2937 = vmatprep.subr.mxu0 0.0
        %2938 = vmatpush1.xpose.msra.mxu0 0.0
        %2939 = vmatprep.subr.mxu0 0.0
        %2940 = vmatpush1.xpose.msra.mxu0 0.0
        %2941 = vmatprep.subr.mxu0 0.0
        %2942 = vmatpush1.xpose.msra.mxu0 0.0
        %2943 = vmatprep.subr.mxu0 0.0
        %2944 = vmatpush1.xpose.msra.mxu0 0.0
        %2945 = vmatprep.subr.mxu0 0.0
        %2946 = vmatpush1.xpose.msra.mxu0 0.0
        %2947 = vmatprep.subr.mxu0 0.0
        %2948 = vmatpush1.xpose.msra.mxu0 0.0
        %2949 = vmatprep.subr.mxu0 0.0
        %2950 = vmatpush1.xpose.msra.mxu0 0.0
        %2951 = vmatprep.subr.mxu0 0.0
        %2952 = vmatpush1.xpose.msra.mxu0 0.0
        %2953 = vmatprep.subr.mxu0 0.0
        %2954 = vmatpush1.xpose.msra.mxu0 0.0
        %2955 = vmatprep.subr.mxu0 0.0
        %2956 = vmatpush1.xpose.msra.mxu0 0.0
        %2957 = vmatprep.subr.mxu0 0.0
        %2958 = vmatpush1.xpose.msra.mxu0 0.0
        %2959 = vmatprep.subr.mxu0 0.0
        %2960 = vmatpush1.xpose.msra.mxu0 0.0
        %2961 = vmatprep.subr.mxu0 0.0
        %2962 = vmatpush1.xpose.msra.mxu0 0.0
        %2963 = vmatprep.subr.mxu0 0.0
        %2964 = vmatpush1.xpose.msra.mxu0 0.0
        %2965 = vmatprep.subr.mxu0 0.0
        %2966 = vmatpush1.xpose.msra.mxu0 0.0
        %2967 = vmatprep.subr.mxu0 0.0
        %2968 = vmatpush1.xpose.msra.mxu0 0.0
        %2969 = vmatprep.subr.mxu0 0.0
        %2970 = vmatpush1.xpose.msra.mxu0 0.0
        %2971 = vmatprep.subr.mxu0 0.0
        %2972 = vmatpush1.xpose.msra.mxu0 0.0
        %2973 = vmatprep.subr.mxu0 0.0
        %2974 = vmatpush1.xpose.msra.mxu0 0.0
        %2975 = vmatprep.subr.mxu0 0.0
        %2976 = vmatpush1.xpose.msra.mxu0 0.0
        %2977 = vmatprep.subr.mxu0 0.0
        %2978 = vmatpush1.xpose.msra.mxu0 0.0
        %2979 = vmatprep.subr.mxu0 0.0
        %2980 = vmatpush1.xpose.msra.mxu0 0.0
        %2981 = vmatprep.subr.mxu0 0.0
        %2982 = vmatpush1.xpose.msra.mxu0 0.0
        %2983 = vmatprep.mubr.f32.mxu0 0.0
        %2984 = vmatmul.mubr.f32.gmra.mrb[0].mxu0 %v2915
        %v2985 = vpop.f32.mrb[0].mxu0
        %v2986 = vadd.f32 0.0, %v2985
        %v2987 = vpop.f32.mrb[0].mxu0
        %2988 = vdwg.mxu0
        %v2989 = vmul.f32 %v2986, 0.35355338
        %v2990 = vsel %vm896, %v2989, -inf
        %2991 = vmax.xlane.f32.xlu0 %v2990
        %v2992 = vpop.xlane.xlu0 %2991
        %v2993 = vsub.f32 %v2989, %v2992
        %v2994 = vmul.f32 %v2993, 1.442695
        %v2995 = vpow.pop %v2994
        %v2996 = vsel %vm896, %v2995, 0.0
        %2997 = vadd.xlane.f32.xlu0 %v2996
        %v2998 = vpop.xlane.xlu0 %2997
        %v2999 = vrcp.pop %v2998
        %v3000 = vmul.f32 %v2995, %v2999
        %3001 = vrot.lane.b32.xlu0 %v2186, 40
        %v3002 = vpop.permute.xlu0 %3001
        %v3005 = vsel %vm896, %v3000, 0
        %3007 = vmatprep.subr.mxu0 0.0
        %3008 = vmatpush1.msra.mxu0 %v3002
        %3009 = vmatprep.subr.mxu0 0.0
        %3010 = vmatpush1.msra.mxu0 0.0
        %3011 = vmatprep.subr.mxu0 0.0
        %3012 = vmatpush1.msra.mxu0 0.0
        %3013 = vmatprep.subr.mxu0 0.0
        %3014 = vmatpush1.msra.mxu0 0.0
        %3015 = vmatprep.subr.mxu0 0.0
        %3016 = vmatpush1.msra.mxu0 0.0
        %3017 = vmatprep.subr.mxu0 0.0
        %3018 = vmatpush1.msra.mxu0 0.0
        %3019 = vmatprep.subr.mxu0 0.0
        %3020 = vmatpush1.msra.mxu0 0.0
        %3021 = vmatprep.subr.mxu0 0.0
        %3022 = vmatpush1.msra.mxu0 0.0
        %3023 = vmatprep.subr.mxu0 0.0
        %3024 = vmatpush1.msra.mxu0 0.0
        %3025 = vmatprep.subr.mxu0 0.0
        %3026 = vmatpush1.msra.mxu0 0.0
        %3027 = vmatprep.subr.mxu0 0.0
        %3028 = vmatpush1.msra.mxu0 0.0
        %3029 = vmatprep.subr.mxu0 0.0
        %3030 = vmatpush1.msra.mxu0 0.0
        %3031 = vmatprep.subr.mxu0 0.0
        %3032 = vmatpush1.msra.mxu0 0.0
        %3033 = vmatprep.subr.mxu0 0.0
        %3034 = vmatpush1.msra.mxu0 0.0
        %3035 = vmatprep.subr.mxu0 0.0
        %3036 = vmatpush1.msra.mxu0 0.0
        %3037 = vmatprep.subr.mxu0 0.0
        %3038 = vmatpush1.msra.mxu0 0.0
        %3039 = vmatprep.subr.mxu0 0.0
        %3040 = vmatpush1.msra.mxu0 0.0
        %3041 = vmatprep.subr.mxu0 0.0
        %3042 = vmatpush1.msra.mxu0 0.0
        %3043 = vmatprep.subr.mxu0 0.0
        %3044 = vmatpush1.msra.mxu0 0.0
        %3045 = vmatprep.subr.mxu0 0.0
        %3046 = vmatpush1.msra.mxu0 0.0
        %3047 = vmatprep.subr.mxu0 0.0
        %3048 = vmatpush1.msra.mxu0 0.0
        %3049 = vmatprep.subr.mxu0 0.0
        %3050 = vmatpush1.msra.mxu0 0.0
        %3051 = vmatprep.subr.mxu0 0.0
        %3052 = vmatpush1.msra.mxu0 0.0
        %3053 = vmatprep.subr.mxu0 0.0
        %3054 = vmatpush1.msra.mxu0 0.0
        %3055 = vmatprep.subr.mxu0 0.0
        %3056 = vmatpush1.msra.mxu0 0.0
        %3057 = vmatprep.subr.mxu0 0.0
        %3058 = vmatpush1.msra.mxu0 0.0
        %3059 = vmatprep.subr.mxu0 0.0
        %3060 = vmatpush1.msra.mxu0 0.0
        %3061 = vmatprep.subr.mxu0 0.0
        %3062 = vmatpush1.msra.mxu0 0.0
        %3063 = vmatprep.subr.mxu0 0.0
        %3064 = vmatpush1.msra.mxu0 0.0
        %3065 = vmatprep.subr.mxu0 0.0
        %3066 = vmatpush1.msra.mxu0 0.0
        %3067 = vmatprep.subr.mxu0 0.0
        %3068 = vmatpush1.msra.mxu0 0.0
        %3069 = vmatprep.subr.mxu0 0.0
        %3070 = vmatpush1.msra.mxu0 0.0
        %3071 = vmatprep.mubr.f32.mxu0 0.0
        %3072 = vmatmul.mubr.f32.gmra.mrb[0].mxu0 %v3005
        %v3073 = vpop.f32.mrb[0].mxu0
        %v3074 = vadd.f32 0.0, %v3073
        %v3075 = vpop.f32.mrb[0].mxu0
        %3076 = vdwg.mxu0
        %v3078 = vsel %vm896, %v3074, 0
        %3080 = vmatprep.subr.mxu0 0.0
        %3081 = vmatpush1.msra.mxu0 %v2193
        %3082 = vmatprep.subr.mxu0 0.0
        %3083 = vmatpush1.msra.mxu0 0.0
        %3084 = vmatprep.subr.mxu0 0.0
        %3085 = vmatpush1.msra.mxu0 0.0
        %3086 = vmatprep.subr.mxu0 0.0
        %3087 = vmatpush1.msra.mxu0 0.0
        %3088 = vmatprep.subr.mxu0 0.0
        %3089 = vmatpush1.msra.mxu0 0.0
        %3090 = vmatprep.subr.mxu0 0.0
        %3091 = vmatpush1.msra.mxu0 0.0
        %3092 = vmatprep.subr.mxu0 0.0
        %3093 = vmatpush1.msra.mxu0 0.0
        %3094 = vmatprep.subr.mxu0 0.0
        %3095 = vmatpush1.msra.mxu0 0.0
        %3096 = vmatprep.subr.mxu0 0.0
        %3097 = vmatpush1.msra.mxu0 0.0
        %3098 = vmatprep.subr.mxu0 0.0
        %3099 = vmatpush1.msra.mxu0 0.0
        %3100 = vmatprep.subr.mxu0 0.0
        %3101 = vmatpush1.msra.mxu0 0.0
        %3102 = vmatprep.subr.mxu0 0.0
        %3103 = vmatpush1.msra.mxu0 0.0
        %3104 = vmatprep.subr.mxu0 0.0
        %3105 = vmatpush1.msra.mxu0 0.0
        %3106 = vmatprep.subr.mxu0 0.0
        %3107 = vmatpush1.msra.mxu0 0.0
        %3108 = vmatprep.subr.mxu0 0.0
        %3109 = vmatpush1.msra.mxu0 0.0
        %3110 = vmatprep.subr.mxu0 0.0
        %3111 = vmatpush1.msra.mxu0 0.0
        %3112 = vmatprep.subr.mxu0 0.0
        %3113 = vmatpush1.msra.mxu0 0.0
        %3114 = vmatprep.subr.mxu0 0.0
        %3115 = vmatpush1.msra.mxu0 0.0
        %3116 = vmatprep.subr.mxu0 0.0
        %3117 = vmatpush1.msra.mxu0 0.0
        %3118 = vmatprep.subr.mxu0 0.0
        %3119 = vmatpush1.msra.mxu0 0.0
        %3120 = vmatprep.subr.mxu0 0.0
        %3121 = vmatpush1.msra.mxu0 0.0
        %3122 = vmatprep.subr.mxu0 0.0
        %3123 = vmatpush1.msra.mxu0 0.0
        %3124 = vmatprep.subr.mxu0 0.0
        %3125 = vmatpush1.msra.mxu0 0.0
        %3126 = vmatprep.subr.mxu0 0.0
        %3127 = vmatpush1.msra.mxu0 0.0
        %3128 = vmatprep.subr.mxu0 0.0
        %3129 = vmatpush1.msra.mxu0 0.0
        %3130 = vmatprep.subr.mxu0 0.0
        %3131 = vmatpush1.msra.mxu0 0.0
        %3132 = vmatprep.subr.mxu0 0.0
        %3133 = vmatpush1.msra.mxu0 0.0
        %3134 = vmatprep.subr.mxu0 0.0
        %3135 = vmatpush1.msra.mxu0 0.0
        %3136 = vmatprep.subr.mxu0 0.0
        %3137 = vmatpush1.msra.mxu0 0.0
        %3138 = vmatprep.subr.mxu0 0.0
        %3139 = vmatpush1.msra.mxu0 0.0
        %3140 = vmatprep.subr.mxu0 0.0
        %3141 = vmatpush1.msra.mxu0 0.0
        %3142 = vmatprep.subr.mxu0 0.0
        %3143 = vmatpush1.msra.mxu0 0.0
        %3144 = vmatprep.mubr.f32.mxu0 0.0
        %3145 = vmatmul.mubr.f32.gmra.mrb[0].mxu0 %v3078
        %v3146 = vpop.f32.mrb[0].mxu0
        %v3147 = vadd.f32 0.0, %v3146
        %v3148 = vpop.f32.mrb[0].mxu0
        %3149 = vdwg.mxu0
        %v3150 = vadd.f32 %v2910, %v3147
        %v3151 = vadd.f32 %v2071, %v3150
        %s3152 = scalar_lea.vmem %s9, 1
        %v3153 = vld [vmem:[%s3152] sm:$0x1]
        %v3155 = vlaneseq
        %v3156 = vshrl.u32 %v3155, 7
        %v3157 = vsub.s32 0, %v3156
        %v3158 = vrot.slane %v3153, %v3157
        %v3160 = vadd.f32 %v3151, %v3158
        %s3161 = scalar_lea.vmem %s10, 1
        %v3162 = vld [vmem:[%s3161] sm:$0x1]
        %s3163 = scalar_lea.vmem %s11, 1
        %v3164 = vld [vmem:[%s3163] sm:$0x1]
        %v3165 = vsel %vm776, %v3160, 0.0
        %3166 = vadd.xlane.f32.xlu0 %v3165
        %v3167 = vpop.xlane.xlu0 %3166
        %v3168 = vmul.f32 %v3167, %v780
        %v3169 = vsub.f32 %v3160, %v3168
        %v3170 = vmul.f32 %v3169, %v3169
        %v3171 = vsel %vm776, %v3170, 0.0
        %3172 = vadd.xlane.f32.xlu0 %v3171
        %v3173 = vpop.xlane.xlu0 %3172
        %v3174 = vmul.f32 %v3173, %v780
        %v3175 = vadd.f32 %v3174, 1e-06
        %v3176 = vrsqrt.pop %v3175
        %v3177 = vmul.f32 %v3169, %v3176
        %v3179 = vlaneseq
        %v3180 = vshrl.u32 %v3179, 7
        %v3181 = vsub.s32 0, %v3180
        %v3182 = vrot.slane %v3162, %v3181
        %v3184 = vmul.f32 %v3177, %v3182
        %v3186 = vlaneseq
        %v3187 = vshrl.u32 %v3186, 7
        %v3188 = vsub.s32 0, %v3187
        %v3189 = vrot.slane %v3164, %v3188
        %v3191 = vadd.f32 %v3184, %v3189
        %s3192 = scalar_lea.vmem %s12, 32
        %v3193 = vld [vmem:[%s3192] sm:$0xff]
        %v3194 = vld [vmem:[%s3192 + $0x8] sm:$0xff]
        %v3195 = vld [vmem:[%s3192 + $0x10] sm:$0xff]
        %v3196 = vld [vmem:[%s3192 + $0x18] sm:$0xff]
        %s3197 = scalar_lea.vmem %s13, 1
        %v3198 = vld [vmem:[%s3197] sm:$0x1]
        %v3200 = vlaneseq
        %v3201 = vshrl.u32 %v3200, 7
        %v3202 = vsub.s32 0, %v3201
        %v3203 = vrot.slane %v3198, %v3202
        %v3206 = vsel %vm776, %v3191, 0
        %3208 = vmatprep.subr.mxu0 0.0
        %3209 = vmatpush1.msra.mxu0 %v3193
        %3210 = vmatprep.subr.mxu0 0.0
        %3211 = vmatpush1.msra.mxu0 %v3194
        %3212 = vmatprep.subr.mxu0 0.0
        %3213 = vmatpush1.msra.mxu0 %v3195
        %3214 = vmatprep.subr.mxu0 0.0
        %3215 = vmatpush1.msra.mxu0 %v3196
        %3216 = vmatprep.subr.mxu0 0.0
        %3217 = vmatpush1.msra.mxu0 0.0
        %3218 = vmatprep.subr.mxu0 0.0
        %3219 = vmatpush1.msra.mxu0 0.0
        %3220 = vmatprep.subr.mxu0 0.0
        %3221 = vmatpush1.msra.mxu0 0.0
        %3222 = vmatprep.subr.mxu0 0.0
        %3223 = vmatpush1.msra.mxu0 0.0
        %3224 = vmatprep.subr.mxu0 0.0
        %3225 = vmatpush1.msra.mxu0 0.0
        %3226 = vmatprep.subr.mxu0 0.0
        %3227 = vmatpush1.msra.mxu0 0.0
        %3228 = vmatprep.subr.mxu0 0.0
        %3229 = vmatpush1.msra.mxu0 0.0
        %3230 = vmatprep.subr.mxu0 0.0
        %3231 = vmatpush1.msra.mxu0 0.0
        %3232 = vmatprep.subr.mxu0 0.0
        %3233 = vmatpush1.msra.mxu0 0.0
        %3234 = vmatprep.subr.mxu0 0.0
        %3235 = vmatpush1.msra.mxu0 0.0
        %3236 = vmatprep.subr.mxu0 0.0
        %3237 = vmatpush1.msra.mxu0 0.0
        %3238 = vmatprep.subr.mxu0 0.0
        %3239 = vmatpush1.msra.mxu0 0.0
        %3240 = vmatprep.subr.mxu0 0.0
        %3241 = vmatpush1.msra.mxu0 0.0
        %3242 = vmatprep.subr.mxu0 0.0
        %3243 = vmatpush1.msra.mxu0 0.0
        %3244 = vmatprep.subr.mxu0 0.0
        %3245 = vmatpush1.msra.mxu0 0.0
        %3246 = vmatprep.subr.mxu0 0.0
        %3247 = vmatpush1.msra.mxu0 0.0
        %3248 = vmatprep.subr.mxu0 0.0
        %3249 = vmatpush1.msra.mxu0 0.0
        %3250 = vmatprep.subr.mxu0 0.0
        %3251 = vmatpush1.msra.mxu0 0.0
        %3252 = vmatprep.subr.mxu0 0.0
        %3253 = vmatpush1.msra.mxu0 0.0
        %3254 = vmatprep.subr.mxu0 0.0
        %3255 = vmatpush1.msra.mxu0 0.0
        %3256 = vmatprep.subr.mxu0 0.0
        %3257 = vmatpush1.msra.mxu0 0.0
        %3258 = vmatprep.subr.mxu0 0.0
        %3259 = vmatpush1.msra.mxu0 0.0
        %3260 = vmatprep.subr.mxu0 0.0
        %3261 = vmatpush1.msra.mxu0 0.0
        %3262 = vmatprep.subr.mxu0 0.0
        %3263 = vmatpush1.msra.mxu0 0.0
        %3264 = vmatprep.subr.mxu0 0.0
        %3265 = vmatpush1.msra.mxu0 0.0
        %3266 = vmatprep.subr.mxu0 0.0
        %3267 = vmatpush1.msra.mxu0 0.0
        %3268 = vmatprep.subr.mxu0 0.0
        %3269 = vmatpush1.msra.mxu0 0.0
        %3270 = vmatprep.subr.mxu0 0.0
        %3271 = vmatpush1.msra.mxu0 0.0
        %3272 = vmatprep.mubr.f32.mxu0 0.0
        %3273 = vmatmul.mubr.f32.gmra.mrb[0].mxu0 %v3206
        %v3274 = vpop.f32.mrb[0].mxu0
        %v3275 = vadd.f32 %v3203, %v3274
        %v3276 = vpop.f32.mrb[0].mxu0
        %3277 = vdwg.mxu0
        %v3278 = vmul.f32 %v3275, 0.5
        %v3279 = vmul.f32 %v3275, 0.70710677
        %v3280 = verf.f32.pop %v3279
        %v3281 = vadd.f32 %v3280, 1.0
        %v3282 = vmul.f32 %v3278, %v3281
        %s3283 = scalar_lea.vmem %s14, 128
        %v3284 = vld [vmem:[%s3283] sm:$0xff]
        %v3285 = vld [vmem:[%s3283 + $0x8] sm:$0xff]
        %v3286 = vld [vmem:[%s3283 + $0x10] sm:$0xff]
        %v3287 = vld [vmem:[%s3283 + $0x18] sm:$0xff]
        %v3288 = vld [vmem:[%s3283 + $0x20] sm:$0xff]
        %v3289 = vld [vmem:[%s3283 + $0x28] sm:$0xff]
        %v3290 = vld [vmem:[%s3283 + $0x30] sm:$0xff]
        %v3291 = vld [vmem:[%s3283 + $0x38] sm:$0xff]
        %v3292 = vld [vmem:[%s3283 + $0x40] sm:$0xff]
        %v3293 = vld [vmem:[%s3283 + $0x48] sm:$0xff]
        %v3294 = vld [vmem:[%s3283 + $0x50] sm:$0xff]
        %v3295 = vld [vmem:[%s3283 + $0x58] sm:$0xff]
        %v3296 = vld [vmem:[%s3283 + $0x60] sm:$0xff]
        %v3297 = vld [vmem:[%s3283 + $0x68] sm:$0xff]
        %v3298 = vld [vmem:[%s3283 + $0x70] sm:$0xff]
        %v3299 = vld [vmem:[%s3283 + $0x78] sm:$0xff]
        %s3300 = scalar_lea.vmem %s15, 1
        %v3301 = vld [vmem:[%s3300] sm:$0x1]
        %v3303 = vlaneseq
        %v3304 = vshrl.u32 %v3303, 7
        %v3305 = vsub.s32 0, %v3304
        %v3306 = vrot.slane %v3301, %v3305
        %3308 = vmatprep.subr.mxu0 0.0
        %3309 = vmatpush1.msra.mxu0 %v3284
        %3310 = vmatprep.subr.mxu0 0.0
        %3311 = vmatpush1.msra.mxu0 %v3285
        %3312 = vmatprep.subr.mxu0 0.0
        %3313 = vmatpush1.msra.mxu0 %v3286
        %3314 = vmatprep.subr.mxu0 0.0
        %3315 = vmatpush1.msra.mxu0 %v3287
        %3316 = vmatprep.subr.mxu0 0.0
        %3317 = vmatpush1.msra.mxu0 %v3288
        %3318 = vmatprep.subr.mxu0 0.0
        %3319 = vmatpush1.msra.mxu0 %v3289
        %3320 = vmatprep.subr.mxu0 0.0
        %3321 = vmatpush1.msra.mxu0 %v3290
        %3322 = vmatprep.subr.mxu0 0.0
        %3323 = vmatpush1.msra.mxu0 %v3291
        %3324 = vmatprep.subr.mxu0 0.0
        %3325 = vmatpush1.msra.mxu0 %v3292
        %3326 = vmatprep.subr.mxu0 0.0
        %3327 = vmatpush1.msra.mxu0 %v3293
        %3328 = vmatprep.subr.mxu0 0.0
        %3329 = vmatpush1.msra.mxu0 %v3294
        %3330 = vmatprep.subr.mxu0 0.0
        %3331 = vmatpush1.msra.mxu0 %v3295
        %3332 = vmatprep.subr.mxu0 0.0
        %3333 = vmatpush1.msra.mxu0 %v3296
        %3334 = vmatprep.subr.mxu0 0.0
        %3335 = vmatpush1.msra.mxu0 %v3297
        %3336 = vmatprep.subr.mxu0 0.0
        %3337 = vmatpush1.msra.mxu0 %v3298
        %3338 = vmatprep.subr.mxu0 0.0
        %3339 = vmatpush1.msra.mxu0 %v3299
        %3340 = vmatprep.subr.mxu0 0.0
        %3341 = vmatpush1.msra.mxu0 0.0
        %3342 = vmatprep.subr.mxu0 0.0
        %3343 = vmatpush1.msra.mxu0 0.0
        %3344 = vmatprep.subr.mxu0 0.0
        %3345 = vmatpush1.msra.mxu0 0.0
        %3346 = vmatprep.subr.mxu0 0.0
        %3347 = vmatpush1.msra.mxu0 0.0
        %3348 = vmatprep.subr.mxu0 0.0
        %3349 = vmatpush1.msra.mxu0 0.0
        %3350 = vmatprep.subr.mxu0 0.0
        %3351 = vmatpush1.msra.mxu0 0.0
        %3352 = vmatprep.subr.mxu0 0.0
        %3353 = vmatpush1.msra.mxu0 0.0
        %3354 = vmatprep.subr.mxu0 0.0
        %3355 = vmatpush1.msra.mxu0 0.0
        %3356 = vmatprep.subr.mxu0 0.0
        %3357 = vmatpush1.msra.mxu0 0.0
        %3358 = vmatprep.subr.mxu0 0.0
        %3359 = vmatpush1.msra.mxu0 0.0
        %3360 = vmatprep.subr.mxu0 0.0
        %3361 = vmatpush1.msra.mxu0 0.0
        %3362 = vmatprep.subr.mxu0 0.0
        %3363 = vmatpush1.msra.mxu0 0.0
        %3364 = vmatprep.subr.mxu0 0.0
        %3365 = vmatpush1.msra.mxu0 0.0
        %3366 = vmatprep.subr.mxu0 0.0
        %3367 = vmatpush1.msra.mxu0 0.0
        %3368 = vmatprep.subr.mxu0 0.0
        %3369 = vmatpush1.msra.mxu0 0.0
        %3370 = vmatprep.subr.mxu0 0.0
        %3371 = vmatpush1.msra.mxu0 0.0
        %3372 = vmatprep.mubr.f32.mxu0 0.0
        %3373 = vmatmul.mubr.f32.gmra.mrb[0].mxu0 %v3282
        %v3374 = vpop.f32.mrb[0].mxu0
        %v3375 = vadd.f32 %v3306, %v3374
        %v3376 = vpop.f32.mrb[0].mxu0
        %3377 = vdwg.mxu0
        %v3378 = vadd.f32 %v3160, %v3375
        %v3379 = vld [vmem:[%s16] sm:$0x1]
        %v3380 = vld [vmem:[%s17] sm:$0x1]
        %v3381 = vsel %vm776, %v3378, 0.0
        %3382 = vadd.xlane.f32.xlu0 %v3381
        %v3383 = vpop.xlane.xlu0 %3382
        %v3384 = vmul.f32 %v3383, %v780
        %v3385 = vsub.f32 %v3378, %v3384
        %v3386 = vmul.f32 %v3385, %v3385
        %v3387 = vsel %vm776, %v3386, 0.0
        %3388 = vadd.xlane.f32.xlu0 %v3387
        %v3389 = vpop.xlane.xlu0 %3388
        %v3390 = vmul.f32 %v3389, %v780
        %v3391 = vadd.f32 %v3390, 1e-06
        %v3392 = vrsqrt.pop %v3391
        %v3393 = vmul.f32 %v3385, %v3392
        %v3395 = vlaneseq
        %v3396 = vshrl.u32 %v3395, 7
        %v3397 = vsub.s32 0, %v3396
        %v3398 = vrot.slane %v3379, %v3397
        %v3400 = vmul.f32 %v3393, %v3398
        %v3402 = vlaneseq
        %v3403 = vshrl.u32 %v3402, 7
        %v3404 = vsub.s32 0, %v3403
        %v3405 = vrot.slane %v3380, %v3404
        %v3407 = vadd.f32 %v3400, %v3405
        %3408 = vst.msk [vmem:[%s568] sm:$0xff] %vm776, %v3407
        %s3409 = sand.u32 %s423, 1
        %s3410 = scalar_lea.sflag [#allocation3], %s3409
        %s3411 = sand.u32 %s423, 1
        %s3412 = smul.addr %s3411, 8
        %s3413 = scalar_lea.vmem [#allocation2], %s3412
        // Predicated region
        $region93: #{visual_encoder_forward.1} parent=91 // pred_check
          %p3414 = pneg %p433
        $region94: #{visual_encoder_forward.1} parent=91 // pred_check_branch
          %3416 = sbr.rel (%p3414) target = $region96
        $region95: #{visual_encoder_forward.1} parent=91 // pred_region
          %s3418 = ssub.s32 128, 128
          %3419 = vsyncadd %s3410, %s3418
          %s3420 = smul.addr %s32, 128
          %s3421 = scalar_lea.hbm %s18, %s3420
          %s3423 = sshll.u32 %s3413, 4
          %s3424 = int_to_ptr.vmem [resolvable:$true] %s3423
          %3426 = dma.vmem_to_hbm [thread:$0]  %s3424, 128, %s3421, %s3410
        $region96: #{visual_encoder_forward.1} parent=91 // pred_fallthru
          _
      $region92: #{visual_encoder_forward.1} parent=5 // pred_fallthru
        _
      %p3427 = scmp.le.s32.totalorder 2, %s27
      // Predicated region
      $region97: #{visual_encoder_forward.1} parent=5 // pred_check
        %p3428 = pneg %p3427
      $region98: #{visual_encoder_forward.1} parent=5 // pred_check_branch
        %3430 = sbr.rel (%p3428) target = $region100
      $region99: #{visual_encoder_forward.1} parent=5 // pred_region
        %s3431 = ssub.s32 %s27, 2
        // Predicated region
        $region101: #{visual_encoder_forward.1} parent=99 // pred_check
          %p3432 = pneg %p439
        $region102: #{visual_encoder_forward.1} parent=99 // pred_check_branch
          %3434 = sbr.rel (%p3432) target = $region104
        $region103: #{visual_encoder_forward.1} parent=99 // pred_region
          %s3435 = sand.u32 %s424, 1
          %s3436 = scalar_lea.sflag [#allocation3], %s3435
          %s3437 = sand.u32 %s424, 1
          %s3438 = smul.addr %s3437, 8
          %s3439 = scalar_lea.vmem [#allocation2], %s3438
          %3440 = dma.done %s3436, 128
        $region104: #{visual_encoder_forward.1} parent=99 // pred_fallthru
          _
      $region100: #{visual_encoder_forward.1} parent=5 // pred_fallthru
        _
    $region6: #{visual_encoder_forward.1} parent=1 // loop_footer
      %s31 = sadd.s32 1, %s27
    $region7: #{visual_encoder_forward.1} parent=1 // loop_footer_branch
      %26 = sbr.rel target = $region3
    $region8: #{visual_encoder_forward.1} parent=1 // loop_exit
      _
    %3441 = vsyncpa [#allocation3], 1
    %s3442 = scalar_lea.sflag [#allocation3], 1
    %3443 = vsyncpa %s3442, 1

</llo_original>
